<compile_context>
chip_gen: v5e
topology: v5e:2x2
jax: 0.10.0
libtpu: 0.0.40
codegen_flags: <defaults>
</compile_context>

<pallas_src>
import jax
import jax.numpy as jnp
from jax import lax
from jax.experimental import pallas as pl
from jax.experimental.pallas import tpu as pltpu

EPS = 1e-5
VMEM_LIMIT = 48 * 1024 * 1024


def _cdiv(a, b):
    return -(-a // b)


def _round_up(x, m):
    return ((x + m - 1) // m) * m


def _pick_m_tile(m, target=2048):
    """Row tiling: pad m to a multiple of 8, pick a tile <= ~target that is a
    multiple of 8; returns (tile, n_tiles, padded_m)."""
    m8 = _round_up(max(m, 8), 8)
    nt = _cdiv(m8, target)
    tm = _round_up(_cdiv(m8, nt), 8)
    return tm, nt, tm * nt


def _pick_k_tile(k, cap=2560):
    """K tiling for the fused matmul: untiled if small, else the largest
    multiple-of-128 divisor <= cap, else pad K up to a multiple of 2048."""
    if k <= cap:
        return k, k
    best = 0
    for tk in range(128, cap + 1, 128):
        if k % tk == 0:
            best = tk
    if best:
        return best, k
    return 2048, _round_up(k, 2048)


def _bn_scale_shift(p):
    scale = p["gamma"] / jnp.sqrt(p["var"] + EPS)
    shift = p["beta"] - p["mean"] * scale
    return (scale.reshape(1, -1).astype(jnp.float32),
            shift.reshape(1, -1).astype(jnp.float32))


# ----------------------------------------------------------------------------
# Generic fused matmul kernel (MXU):  y = epilogue( (x*in_aff) @ w )
# Used for: stem conv (K=27), stride-2 3x3 convs (K=9*Cin), 1x1 downsample
# convs, and the final FC.  Epilogue = out affine (+PReLU) (+residual add).
# ----------------------------------------------------------------------------
def _make_matmul_kernel(has_in, has_prelu, has_res):
    def kernel(*args):
        it = iter(args)
        x_ref = next(it)
        w_ref = next(it)
        in_sc = next(it) if has_in else None
        in_sh = next(it) if has_in else None
        res_ref = next(it) if has_res else None
        out_sc = next(it)
        out_sh = next(it)
        alpha = next(it) if has_prelu else None
        o_ref = next(it)
        acc_ref = next(it)

        k = pl.program_id(1)

        @pl.when(k == 0)
        def _():
            acc_ref[...] = jnp.zeros_like(acc_ref)

        xv = x_ref[...]
        if has_in:
            xv = (xv.astype(jnp.float32) * in_sc[...] + in_sh[...]).astype(
                jnp.bfloat16)
        else:
            xv = xv.astype(jnp.bfloat16)
        acc_ref[...] += jnp.dot(xv, w_ref[...],
                                preferred_element_type=jnp.float32)

        @pl.when(k == pl.num_programs(1) - 1)
        def _():
            y = acc_ref[...] * out_sc[...] + out_sh[...]
            if has_prelu:
                y = jnp.where(y > 0, y, alpha[...] * y)
            if has_res:
                y = y + res_ref[...]
            o_ref[...] = y.astype(o_ref.dtype)

    return kernel


def fused_matmul(x, w, out_scale, out_shift, *, in_scale=None, in_shift=None,
                 residual=None, prelu_alpha=None, out_dtype=jnp.bfloat16,
                 target_tm=2048):
    """x: (M, K), w: (K, Cout) -> (M, Cout) with fused affine epilogue."""
    M, K = x.shape
    Cout = w.shape[-1]
    has_in = in_scale is not None
    has_res = residual is not None
    has_prelu = prelu_alpha is not None

    tm, nmt, Mpad = _pick_m_tile(M, target_tm)
    tk, Kpad = _pick_k_tile(K)
    nkt = Kpad // tk

    xb = x.astype(jnp.bfloat16)
    if Mpad != M or Kpad != K:
        xb = jnp.pad(xb, ((0, Mpad - M), (0, Kpad - K)))
    wb = w.astype(jnp.bfloat16)
    if Kpad != K:
        wb = jnp.pad(wb, ((0, Kpad - K), (0, 0)))

    inputs = [xb, wb]
    in_specs = [pl.BlockSpec((tm, tk), lambda m, k: (m, k)),
                pl.BlockSpec((tk, Cout), lambda m, k: (k, 0))]
    if has_in:
        isc = jnp.asarray(in_scale, jnp.float32).reshape(1, K)
        ish = jnp.asarray(in_shift, jnp.float32).reshape(1, K)
        if Kpad != K:
            isc = jnp.pad(isc, ((0, 0), (0, Kpad - K)))
            ish = jnp.pad(ish, ((0, 0), (0, Kpad - K)))
        inputs += [isc, ish]
        in_specs += [pl.BlockSpec((1, tk), lambda m, k: (0, k))] * 2
    if has_res:
        res = jnp.asarray(residual, jnp.float32)
        if Mpad != M:
            res = jnp.pad(res, ((0, Mpad - M), (0, 0)))
        inputs.append(res)
        in_specs.append(pl.BlockSpec((tm, Cout), lambda m, k: (m, 0)))
    inputs += [jnp.asarray(out_scale, jnp.float32).reshape(1, Cout),
               jnp.asarray(out_shift, jnp.float32).reshape(1, Cout)]
    in_specs += [pl.BlockSpec((1, Cout), lambda m, k: (0, 0))] * 2
    if has_prelu:
        inputs.append(jnp.asarray(prelu_alpha, jnp.float32).reshape(1, Cout))
        in_specs.append(pl.BlockSpec((1, Cout), lambda m, k: (0, 0)))

    y = pl.pallas_call(
        _make_matmul_kernel(has_in, has_prelu, has_res),
        out_shape=jax.ShapeDtypeStruct((Mpad, Cout), out_dtype),
        grid_spec=pltpu.PrefetchScalarGridSpec(
            num_scalar_prefetch=0,
            grid=(nmt, nkt),
            in_specs=in_specs,
            out_specs=pl.BlockSpec((tm, Cout), lambda m, k: (m, 0)),
            scratch_shapes=[pltpu.VMEM((tm, Cout), jnp.float32)],
        ),
        compiler_params=pltpu.CompilerParams(
            dimension_semantics=("parallel", "arbitrary"),
            vmem_limit_bytes=VMEM_LIMIT),
    )(*inputs)
    return y[:M]


# ----------------------------------------------------------------------------
# Stride-1 3x3 conv with a manual halo DMA (no im2col materialization).
# Computes outputs at padded resolution (border rows are garbage and sliced
# off).  Optional fused input affine (pre-BN, masked to preserve the zero
# padding) and fused output affine (+PReLU).
# ----------------------------------------------------------------------------
def _make_conv3x3_kernel(H, W, tm, R, has_in, has_prelu):
    Wp = W + 2
    P = (H + 2) * Wp

    def kernel(*args):
        it = iter(args)
        x_hbm = next(it)
        w_ref = next(it)
        in_sc = next(it) if has_in else None
        in_sh = next(it) if has_in else None
        out_sc = next(it)
        out_sh = next(it)
        alpha = next(it) if has_prelu else None
        o_ref = next(it)
        xbuf = next(it)
        sem = next(it)

        i = pl.program_id(0)
        nt = pl.num_programs(0)

        def start(tile, slot):
            src = x_hbm.at[pl.ds(pl.multiple_of(tile * tm, 8), R), :]
            pltpu.make_async_copy(src, xbuf.at[slot], sem.at[slot]).start()

        @pl.when(i == 0)
        def _():
            start(0, 0)

        @pl.when(i + 1 < nt)
        def _():
            start(i + 1, (i + 1) % 2)

        slot = i % 2
        pltpu.make_async_copy(x_hbm.at[pl.ds(0, R), :], xbuf.at[slot],
                              sem.at[slot]).wait()

        xt = xbuf[slot]                                  # (R, Cin) bf16
        if has_in:
            # Apply the folded pre-BN affine only to interior pixels so the
            # conv still sees exact zero padding at the image border.
            rows = i * tm + lax.broadcasted_iota(jnp.int32, (R, 1), 0)
            q = rows % P
            hp = q // Wp
            wp = q - hp * Wp
            interior = (hp >= 1) & (hp <= H) & (wp >= 1) & (wp <= W)
            xt = jnp.where(interior,
                           xt.astype(jnp.float32) * in_sc[...] + in_sh[...],
                           0.0).astype(jnp.bfloat16)

        acc = jnp.zeros(o_ref.shape, jnp.float32)
        for kh in range(3):
            for kw in range(3):
                off = kh * Wp + kw
                acc = acc + jnp.dot(xt[off:off + tm, :], w_ref[kh * 3 + kw],
                                    preferred_element_type=jnp.float32)

        y = acc * out_sc[...] + out_sh[...]
        if has_prelu:
            y = jnp.where(y > 0, y, alpha[...] * y)
        o_ref[...] = y.astype(o_ref.dtype)

    return kernel


def conv3x3_s1_fused(x, w, out_scale, out_shift, *, in_scale=None,
                     in_shift=None, prelu_alpha=None, target_tm=2048):
    """x: (N,H,W,Cin) NHWC, w: (3,3,Cin,Cout); stride 1, padding 1, no bias."""
    N, H, W, Cin = x.shape
    Cout = w.shape[-1]
    has_in = in_scale is not None
    has_prelu = prelu_alpha is not None

    xp = jnp.pad(x.astype(jnp.bfloat16), ((0, 0), (1, 1), (1, 1), (0, 0)))
    Mp = N * (H + 2) * (W + 2)
    xp = xp.reshape(Mp, Cin)

    halo = 2 * (W + 2) + 2
    tm, nt, Mout = _pick_m_tile(Mp, target_tm)
    R = tm + halo
    xp = jnp.pad(xp, ((0, Mout + halo - Mp), (0, 0)))

    w9 = w.reshape(9, Cin, Cout).astype(jnp.bfloat16)

    inputs = [xp, w9]
    in_specs = [pl.BlockSpec(memory_space=pl.ANY),
                pl.BlockSpec((9, Cin, Cout), lambda i: (0, 0, 0))]
    if has_in:
        inputs += [jnp.asarray(in_scale, jnp.float32).reshape(1, Cin),
                   jnp.asarray(in_shift, jnp.float32).reshape(1, Cin)]
        in_specs += [pl.BlockSpec((1, Cin), lambda i: (0, 0))] * 2
    inputs += [jnp.asarray(out_scale, jnp.float32).reshape(1, Cout),
               jnp.asarray(out_shift, jnp.float32).reshape(1, Cout)]
    in_specs += [pl.BlockSpec((1, Cout), lambda i: (0, 0))] * 2
    if has_prelu:
        inputs.append(jnp.asarray(prelu_alpha, jnp.float32).reshape(1, Cout))
        in_specs.append(pl.BlockSpec((1, Cout), lambda i: (0, 0)))

    y = pl.pallas_call(
        _make_conv3x3_kernel(H, W, tm, R, has_in, has_prelu),
        out_shape=jax.ShapeDtypeStruct((Mout, Cout), jnp.bfloat16),
        grid_spec=pltpu.PrefetchScalarGridSpec(
            num_scalar_prefetch=0,
            grid=(nt,),
            in_specs=in_specs,
            out_specs=pl.BlockSpec((tm, Cout), lambda i: (i, 0)),
            scratch_shapes=[pltpu.VMEM((2, R, Cin), jnp.bfloat16),
                            pltpu.SemaphoreType.DMA((2,))],
        ),
        # "arbitrary": the manual cross-step double-buffering requires the
        # grid to run sequentially on one core.
        compiler_params=pltpu.CompilerParams(
            dimension_semantics=("arbitrary",),
            vmem_limit_bytes=VMEM_LIMIT),
    )(*inputs)
    return y[:Mp].reshape(N, H + 2, W + 2, Cout)[:, :H, :W, :]


# ----------------------------------------------------------------------------
# Small channel-concat im2col (used only where it is cheap: the Cin=3 stem and
# stride-2 convs at output resolution).  Tap order (kh, kw) row-major matches
# w.reshape(9*Cin, Cout).
# ----------------------------------------------------------------------------
def _im2col_concat(x, stride):
    N, H, W, C = x.shape
    xp = jnp.pad(x, ((0, 0), (1, 1), (1, 1), (0, 0)))
    Ho = (H + 2 - 3) // stride + 1
    Wo = (W + 2 - 3) // stride + 1
    parts = []
    for kh in range(3):
        for kw in range(3):
            parts.append(xp[:, kh:kh + stride * (Ho - 1) + 1:stride,
                            kw:kw + stride * (Wo - 1) + 1:stride, :])
    return jnp.concatenate(parts, axis=-1)


# ----------------------------------------------------------------------------
# Parameter construction (deterministic, matches module __init__ shapes)
# ----------------------------------------------------------------------------
def _bn_params(c):
    return dict(gamma=jnp.ones((c,), jnp.float32),
                beta=jnp.zeros((c,), jnp.float32),
                mean=jnp.zeros((c,), jnp.float32),
                var=jnp.ones((c,), jnp.float32))


def init_iresnet_params(key, layers=(1, 1, 1, 1), num_features=512):
    keys = iter(jax.random.split(key, 256))

    def conv_w(cin, cout, k):
        # nn.init.normal_(m.weight, 0, 0.1); stored as HWIO
        return 0.1 * jax.random.normal(next(keys), (k, k, cin, cout), jnp.float32)

    params = {}
    params["conv1_w"] = conv_w(3, 64, 3)
    params["bn1"] = _bn_params(64)
    params["prelu"] = jnp.full((64,), 0.25, jnp.float32)

    inplanes = 64
    all_layers = []
    for planes, n_blocks in zip((64, 128, 256, 512), layers):
        layer = []
        for bi in range(n_blocks):
            stride = 2 if bi == 0 else 1
            blk = dict(
                stride=stride,
                bn1=_bn_params(inplanes),
                conv1_w=conv_w(inplanes, planes, 3),
                bn2=_bn_params(planes),
                prelu=jnp.full((planes,), 0.25, jnp.float32),
                conv2_w=conv_w(planes, planes, 3),
                bn3=_bn_params(planes),
            )
            if stride != 1 or inplanes != planes:
                blk["ds_conv_w"] = conv_w(inplanes, planes, 1)[0, 0]  # (Cin, Cout)
                blk["ds_bn"] = _bn_params(planes)
            layer.append(blk)
            inplanes = planes
        all_layers.append(layer)
    params["layers"] = all_layers

    params["bn2"] = _bn_params(512)
    fc_in = 512 * 7 * 7
    bound = 1.0 / (fc_in ** 0.5)  # nn.Linear default init
    params["fc_w"] = jax.random.uniform(next(keys), (fc_in, num_features),
                                        jnp.float32, -bound, bound)
    params["fc_b"] = jax.random.uniform(next(keys), (num_features,),
                                        jnp.float32, -bound, bound)
    params["features"] = _bn_params(num_features)  # weight frozen at 1.0, bias 0
    return params


# ----------------------------------------------------------------------------
# Forward
# ----------------------------------------------------------------------------
def ibasic_block(x, p):
    stride = p["stride"]
    N, H, W, Cin = x.shape
    Cout = p["conv2_w"].shape[-1]
    bn1_s, bn1_b = _bn_scale_shift(p["bn1"])
    bn2_s, bn2_b = _bn_scale_shift(p["bn2"])
    bn3_s, bn3_b = _bn_scale_shift(p["bn3"])

    # conv1 (stride 1): bn1 applied in-kernel on the input tile; bn2 + PReLU
    # fused into the epilogue.
    out = conv3x3_s1_fused(x, p["conv1_w"], bn2_s, bn2_b,
                           in_scale=bn1_s, in_shift=bn1_b,
                           prelu_alpha=p["prelu"])

    # Identity path: 1x1 (strided) conv + BN as one fused matmul.
    if "ds_conv_w" in p:
        ds_s, ds_b = _bn_scale_shift(p["ds_bn"])
        xs = x[:, ::stride, ::stride, :] if stride > 1 else x
        identity = fused_matmul(xs.reshape(-1, Cin), p["ds_conv_w"], ds_s, ds_b,
                                out_dtype=jnp.float32)
    else:
        identity = None

    if stride == 1:
        # TODO(synk): on this (rarely used) path the residual is added in XLA
        # after the conv instead of inside the kernel epilogue.
        y = conv3x3_s1_fused(out, p["conv2_w"], bn3_s, bn3_b)
        if identity is None:
            return y + x
        return y + identity.reshape(y.shape).astype(y.dtype)

    # stride-2 conv2: channel-concat im2col at the (small) output resolution,
    # one fused matmul with K = 9*planes, bn3 + residual fused in the epilogue.
    cols = _im2col_concat(out, stride)                     # (N, Ho, Wo, 9*planes)
    Nn, Ho, Wo, K9 = cols.shape
    y = fused_matmul(cols.reshape(-1, K9), p["conv2_w"].reshape(K9, Cout),
                     bn3_s, bn3_b, residual=identity, out_dtype=jnp.bfloat16)
    return y.reshape(Nn, Ho, Wo, Cout)


def iresnet_forward(x_nchw, params):
    x = jnp.transpose(x_nchw, (0, 2, 3, 1)).astype(jnp.bfloat16)  # NCHW -> NHWC

    # Stem (Cin=3): fold all 27 (kh,kw,ci) taps into one K=27 matmul with
    # bn1 + PReLU fused into the epilogue.
    bn1_s, bn1_b = _bn_scale_shift(params["bn1"])
    cols = _im2col_concat(x, 1)
    N, H, W, K9 = cols.shape
    Cout = params["conv1_w"].shape[-1]
    x = fused_matmul(cols.reshape(-1, K9), params["conv1_w"].reshape(K9, Cout),
                     bn1_s, bn1_b, prelu_alpha=params["prelu"],
                     out_dtype=jnp.bfloat16).reshape(N, H, W, Cout)

    for layer in params["layers"]:
        for blk in layer:
            x = ibasic_block(x, blk)

    # bn2 folded into the FC input affine (expanded to the NCHW flatten order);
    # fc bias and the final BatchNorm1d folded into the FC output affine.
    N, Hf, Wf, C = x.shape
    xf = jnp.transpose(x, (0, 3, 1, 2)).reshape(N, C * Hf * Wf)
    bn2_s, bn2_b = _bn_scale_shift(params["bn2"])
    in_s = jnp.repeat(bn2_s.reshape(-1), Hf * Wf).reshape(1, -1)
    in_b = jnp.repeat(bn2_b.reshape(-1), Hf * Wf).reshape(1, -1)
    f_s, f_b = _bn_scale_shift(params["features"])
    out_scale = f_s
    out_shift = params["fc_b"].reshape(1, -1) * f_s + f_b
    # dropout(p=0) is identity.
    y = fused_matmul(xf, params["fc_w"], out_scale, out_shift,
                     in_scale=in_s, in_shift=in_b, out_dtype=jnp.float32)
    return y


if __name__ == "__main__":
    key = jax.random.PRNGKey(0)
    pkey, xkey = jax.random.split(key)
    # Small IResNet config: layers=[1,1,1,1]; input spatial must be 112
    # (fc_scale = 7*7 after four stride-2 stages).
    params = init_iresnet_params(pkey, layers=(1, 1, 1, 1), num_features=512)
    x = jax.random.normal(xkey, (2, 3, 112, 112), jnp.float32)  # NCHW like PyTorch

    out = iresnet_forward(x, params)
    jax.block_until_ready(out)
    assert out.shape == (2, 512) and out.dtype == jnp.float32
    assert bool(jnp.all(jnp.isfinite(out)))
    print("KERNEL_OK")
</pallas_src>

<mosaic_0001>
module attributes {stable_mosaic.version = 11 : i64} {
  func.func @kernel(%arg0: i32, %arg1: i32, %arg2: memref<1936x27xbf16, #tpu.memory_space<vmem>>, %arg3: memref<27x64xbf16, #tpu.memory_space<vmem>>, %arg4: memref<1x64xf32, #tpu.memory_space<vmem>>, %arg5: memref<1x64xf32, #tpu.memory_space<vmem>>, %arg6: memref<1x64xf32, #tpu.memory_space<vmem>>, %arg7: memref<1936x64xbf16, #tpu.memory_space<vmem>>, %arg8: memref<1936x64xf32, #tpu.memory_space<vmem>>) attributes {dimension_semantics = [#tpu.dimension_semantics<parallel>, #tpu.dimension_semantics<arbitrary>], iteration_bounds = array<i64: 13, 1>, scalar_prefetch = 0 : i64, scratch_operands = 1 : i64, tpu.core_type = #tpu.core_type<tc>, window_params = [{transform_indices = @transform_0, window_bounds = array<i64: 1936, 27>}, {transform_indices = @transform_1, window_bounds = array<i64: 27, 64>}, {pipeline_mode = #tpu.pipeline_mode<synchronous>, transform_indices = @transform_2, window_bounds = array<i64: 1, 64>}, {pipeline_mode = #tpu.pipeline_mode<synchronous>, transform_indices = @transform_3, window_bounds = array<i64: 1, 64>}, {pipeline_mode = #tpu.pipeline_mode<synchronous>, transform_indices = @transform_4, window_bounds = array<i64: 1, 64>}, {transform_indices = @transform_5, window_bounds = array<i64: 1936, 64>}]} {
    %c0_i32 = arith.constant 0 : i32
    %0 = arith.cmpi eq, %arg1, %c0_i32 : i32
    %1 = arith.extui %0 : i1 to i32
    %c0_i32_0 = arith.constant 0 : i32
    %2 = arith.cmpi ne, %1, %c0_i32_0 : i32
    scf.if %2 {
      %cst_10 = arith.constant 0.000000e+00 : f32
      %12 = vector.broadcast %cst_10 : f32 to vector<1936x64xf32>
      %c0_11 = arith.constant 0 : index
      %c0_12 = arith.constant 0 : index
      %13 = vector.load %arg8[%c0_11, %c0_12] : memref<1936x64xf32, #tpu.memory_space<vmem>>, vector<1936x64xf32>
      tpu.vector_store %arg8[%c0_11, %c0_12], %12 {strides = array<i32>} : memref<1936x64xf32, #tpu.memory_space<vmem>>, vector<1936x64xf32>,
    } else {
    }
    %c0 = arith.constant 0 : index
    %c0_1 = arith.constant 0 : index
    %3 = vector.load %arg2[%c0, %c0_1] : memref<1936x27xbf16, #tpu.memory_space<vmem>>, vector<1936x27xbf16>
    %c0_2 = arith.constant 0 : index
    %c0_3 = arith.constant 0 : index
    %4 = vector.load %arg8[%c0_2, %c0_3] : memref<1936x64xf32, #tpu.memory_space<vmem>>, vector<1936x64xf32>
    %c0_4 = arith.constant 0 : index
    %c0_5 = arith.constant 0 : index
    %5 = vector.load %arg3[%c0_4, %c0_5] : memref<27x64xbf16, #tpu.memory_space<vmem>>, vector<27x64xbf16>
    %cst = arith.constant dense<0.000000e+00> : vector<1936x64xf32>
    %6 = tpu.matmul %3, %5, %cst {dimension_numbers = #tpu.dot_dimension_numbers<[1], [0], [0], [1], [0, 0, 1, 1], [], []>} : vector<1936x27xbf16>, vector<27x64xbf16>, vector<1936x64xf32> -> vector<1936x64xf32>
    %7 = arith.addf %4, %6 : vector<1936x64xf32>
    %c0_6 = arith.constant 0 : index
    %c0_7 = arith.constant 0 : index
    %8 = vector.load %arg8[%c0_6, %c0_7] : memref<1936x64xf32, #tpu.memory_space<vmem>>, vector<1936x64xf32>
    tpu.vector_store %arg8[%c0_6, %c0_7], %7 {strides = array<i32>} : memref<1936x64xf32, #tpu.memory_space<vmem>>, vector<1936x64xf32>,
    %c0_i32_8 = arith.constant 0 : i32
    %9 = arith.cmpi eq, %arg1, %c0_i32_8 : i32
    %10 = arith.extui %9 : i1 to i32
    %c0_i32_9 = arith.constant 0 : i32
    %11 = arith.cmpi ne, %10, %c0_i32_9 : i32
    scf.if %11 {
      %c0_10 = arith.constant 0 : index
      %c0_11 = arith.constant 0 : index
      %12 = vector.load %arg8[%c0_10, %c0_11] : memref<1936x64xf32, #tpu.memory_space<vmem>>, vector<1936x64xf32>
      %c0_12 = arith.constant 0 : index
      %c0_13 = arith.constant 0 : index
      %13 = vector.load %arg4[%c0_12, %c0_13] : memref<1x64xf32, #tpu.memory_space<vmem>>, vector<1x64xf32>
      %14 = vector.broadcast %13 : vector<1x64xf32> to vector<1936x64xf32>
      %15 = arith.mulf %12, %14 : vector<1936x64xf32>
      %c0_14 = arith.constant 0 : index
      %c0_15 = arith.constant 0 : index
      %16 = vector.load %arg5[%c0_14, %c0_15] : memref<1x64xf32, #tpu.memory_space<vmem>>, vector<1x64xf32>
      %17 = vector.broadcast %16 : vector<1x64xf32> to vector<1936x64xf32>
      %18 = arith.addf %15, %17 : vector<1936x64xf32>
      %cst_16 = arith.constant 0.000000e+00 : f32
      %19 = vector.broadcast %cst_16 : f32 to vector<1936x64xf32>
      %20 = arith.cmpf ogt, %18, %19 : vector<1936x64xf32>
      %c0_17 = arith.constant 0 : index
      %c0_18 = arith.constant 0 : index
      %21 = vector.load %arg6[%c0_17, %c0_18] : memref<1x64xf32, #tpu.memory_space<vmem>>, vector<1x64xf32>
      %22 = vector.broadcast %21 : vector<1x64xf32> to vector<1936x64xf32>
      %23 = arith.mulf %22, %18 : vector<1936x64xf32>
      %24 = arith.select %20, %18, %23 : vector<1936x64xi1>, vector<1936x64xf32>
      %25 = arith.truncf %24 : vector<1936x64xf32> to vector<1936x64xbf16>
      %c0_19 = arith.constant 0 : index
      %c0_20 = arith.constant 0 : index
      %26 = vector.load %arg7[%c0_19, %c0_20] : memref<1936x64xbf16, #tpu.memory_space<vmem>>, vector<1936x64xbf16>
      tpu.vector_store %arg7[%c0_19, %c0_20], %25 {strides = array<i32>} : memref<1936x64xbf16, #tpu.memory_space<vmem>>, vector<1936x64xbf16>,
    } else {
    }
    return
  }
  func.func @transform_0(%arg0: i32, %arg1: i32) -> (i32, i32) {
    %c0_i32 = arith.constant 0 : i32
    return %arg0, %arg1 : i32, i32
  }
  func.func @transform_1(%arg0: i32, %arg1: i32) -> (i32, i32) {
    %c0_i32 = arith.constant 0 : i32
    %c0_i32_0 = arith.constant 0 : i32
    return %arg1, %c0_i32 : i32, i32
  }
  func.func @transform_2(%arg0: i32, %arg1: i32) -> (i32, i32) {
    %c0_i32 = arith.constant 0 : i32
    %c0_i32_0 = arith.constant 0 : i32
    %c0_i32_1 = arith.constant 0 : i32
    return %c0_i32, %c0_i32_0 : i32, i32
  }
  func.func @transform_3(%arg0: i32, %arg1: i32) -> (i32, i32) {
    %c0_i32 = arith.constant 0 : i32
    %c0_i32_0 = arith.constant 0 : i32
    %c0_i32_1 = arith.constant 0 : i32
    return %c0_i32, %c0_i32_0 : i32, i32
  }
  func.func @transform_4(%arg0: i32, %arg1: i32) -> (i32, i32) {
    %c0_i32 = arith.constant 0 : i32
    %c0_i32_0 = arith.constant 0 : i32
    %c0_i32_1 = arith.constant 0 : i32
    return %c0_i32, %c0_i32_0 : i32, i32
  }
  func.func @transform_5(%arg0: i32, %arg1: i32) -> (i32, i32) {
    %c0_i32 = arith.constant 0 : i32
    %c0_i32_0 = arith.constant 0 : i32
    return %arg0, %c0_i32 : i32, i32
  }
}

</mosaic_0001>

<llo_original>
// kernel: tpu_custom_call.1
$region0: #{tpu_custom_call.1}
  #allocation0 [shape = 'u32[]', space=smem, size = 0x4, offset = 0x4, fixed_abs, tag = 'smem constant byte address 0x4 - core index']
  #allocation1 [shape = 'u32[72,128]{1,0:T(1,128)}', space=vmem, size = 0x9000, scoped, tag = 'internal scratch']
  #allocation2 [shape = 'f32[1936,64]{1,0:T(8,128)}', space=vmem, size = 0xf2000, scoped, tag = 'scratch operand']
  %s0 = inlined_call_operand.vmem [shape: bf16[25168,27], index: 0, kind: input, shape index: {}]
  %s1 = inlined_call_operand.vmem [shape: bf16[27,64], index: 1, kind: input, shape index: {}]
  %s2 = inlined_call_operand.vmem [shape: f32[1,64], index: 2, kind: input, shape index: {}]
  %s3 = inlined_call_operand.vmem [shape: f32[1,64], index: 3, kind: input, shape index: {}]
  %s4 = inlined_call_operand.vmem [shape: f32[1,64], index: 4, kind: input, shape index: {}]
  %s5 = inlined_call_operand.vmem [shape: bf16[25168,64], index: 5, kind: output, shape index: {}]
  %s6 = sld [smem:[#allocation0]]
  $region61: #{tpu_custom_call.1} parent=0
    _
  %s8 = ssub.s32 1, %s6
  %s9 = scalar_select 0, %s8, %s6
  loop: start=0, step=1, limit=15
  $region2: #{tpu_custom_call.1} parent=0 // loop_pre_header
    _
  $region3: #{tpu_custom_call.1} parent=0 // loop_header
    %s11 = sphi 0, %s15
    %p12 = scmp.ge.s32.totalorder %s11, 15
    %s18 = sphi 0, %s30
    %s19 = sphi 0, %s26
    %s20 = sphi 0, %s18
    %s21 = sphi 0, %s19
    %s22 = sphi 0, %s20
    %s23 = sphi 0, %s21
    %s35 = sphi 0, %s37
    %s38 = sphi 0, %s35
    %s39 = sphi 0, %s38
    %s55 = sphi 0, %s39
    %s61 = sphi 0, %s63
    %s64 = sphi 0, %s61
    %s65 = sphi 0, %s64
    %s81 = sphi 0, %s65
    %s85 = sphi 0, %s85
    %s87 = sphi 0, %s85
    %s88 = sphi 0, %s87
    %s102 = sphi 0, %s88
    %s106 = sphi 0, %s106
    %s108 = sphi 0, %s106
    %s109 = sphi 0, %s108
    %s123 = sphi 0, %s109
    %s127 = sphi 0, %s127
    %s129 = sphi 0, %s127
    %s130 = sphi 0, %s129
    %s144 = sphi 0, %s130
    %s150 = sphi 0, %s152
    %s153 = sphi 0, %s150
    %s154 = sphi 0, %s153
    %s170 = sphi 0, %s154
  $region4: #{tpu_custom_call.1} parent=0 // loop_header_branch
    %14 = sbr.rel (%p12) target = $region8
  $region5: #{tpu_custom_call.1} parent=0 // loop_body
    %s16 = ssub.s32 %s11, 1
    %s17 = ssub.s32 %s11, 2
    %s24 = sadd.s32 1, %s19
    %p25 = scmp.ge.s32.totalorder %s24, 1
    %s26 = scalar_select %p25, 0, %s24
    %s27 = sadd.s32 1, %s18
    %s28 = scalar_select %p25, %s27, %s18
    %p29 = scmp.ge.s32.totalorder %s28, 13
    %s30 = scalar_select %p29, 0, %s28
    %s31 = ssub.s32 %s18, %s30
    %s32 = ssub.s32 %s19, %s26
    %s33 = sor.u32 %s31, %s32
    %p34 = scmp.eq.s32.totalorder %s33, 0
    %s36 = sadd.s32 %s35, 1
    %s37 = scalar_select %p34, %s35, %s36
    %p40 = pneg %p34
    %p41 = scmp.eq.s32.totalorder %s11, 12
    %p42 = por %p40, %p41
    %p43 = scmp.ne.s32.totalorder %s35, %s38
    %p44 = scmp.eq.s32.totalorder %s11, 0
    %p45 = por %p43, %p44
    %p46 = scmp.ne.s32.totalorder %s35, %s38
    %p47 = scmp.eq.s32.totalorder %s16, 12
    %p48 = por %p46, %p47
    %p49 = scmp.ne.s32.totalorder %s38, %s39
    %p50 = scmp.eq.s32.totalorder %s16, 0
    %p51 = por %p49, %p50
    %p52 = scmp.ne.s32.totalorder %s38, %s39
    %p53 = scmp.eq.s32.totalorder %s17, 12
    %p54 = por %p52, %p53
    %p56 = scmp.ne.s32.totalorder %s39, %s55
    %p57 = scmp.eq.s32.totalorder %s17, 0
    %p58 = por %p56, %p57
    %s59 = ssub.s32 %s19, %s26
    %p60 = scmp.eq.s32.totalorder %s59, 0
    %s62 = sadd.s32 %s61, 1
    %s63 = scalar_select %p60, %s61, %s62
    %p66 = pneg %p60
    %p67 = scmp.eq.s32.totalorder %s11, 12
    %p68 = por %p66, %p67
    %p69 = scmp.ne.s32.totalorder %s61, %s64
    %p70 = scmp.eq.s32.totalorder %s11, 0
    %p71 = por %p69, %p70
    %p72 = scmp.ne.s32.totalorder %s61, %s64
    %p73 = scmp.eq.s32.totalorder %s16, 12
    %p74 = por %p72, %p73
    %p75 = scmp.ne.s32.totalorder %s64, %s65
    %p76 = scmp.eq.s32.totalorder %s16, 0
    %p77 = por %p75, %p76
    %p78 = scmp.ne.s32.totalorder %s64, %s65
    %p79 = scmp.eq.s32.totalorder %s17, 12
    %p80 = por %p78, %p79
    %p82 = scmp.ne.s32.totalorder %s65, %s81
    %p83 = scmp.eq.s32.totalorder %s17, 0
    %p84 = por %p82, %p83
    %s86 = sadd.s32 %s85, 1
    %p89 = scmp.eq.s32.totalorder %s11, 12
    %p90 = scmp.ne.s32.totalorder %s85, %s87
    %p91 = scmp.eq.s32.totalorder %s11, 0
    %p92 = por %p90, %p91
    %p93 = scmp.ne.s32.totalorder %s85, %s87
    %p94 = scmp.eq.s32.totalorder %s16, 12
    %p95 = por %p93, %p94
    %p96 = scmp.ne.s32.totalorder %s87, %s88
    %p97 = scmp.eq.s32.totalorder %s16, 0
    %p98 = por %p96, %p97
    %p99 = scmp.ne.s32.totalorder %s87, %s88
    %p100 = scmp.eq.s32.totalorder %s17, 12
    %p101 = por %p99, %p100
    %p103 = scmp.ne.s32.totalorder %s88, %s102
    %p104 = scmp.eq.s32.totalorder %s17, 0
    %p105 = por %p103, %p104
    %s107 = sadd.s32 %s106, 1
    %p110 = scmp.eq.s32.totalorder %s11, 12
    %p111 = scmp.ne.s32.totalorder %s106, %s108
    %p112 = scmp.eq.s32.totalorder %s11, 0
    %p113 = por %p111, %p112
    %p114 = scmp.ne.s32.totalorder %s106, %s108
    %p115 = scmp.eq.s32.totalorder %s16, 12
    %p116 = por %p114, %p115
    %p117 = scmp.ne.s32.totalorder %s108, %s109
    %p118 = scmp.eq.s32.totalorder %s16, 0
    %p119 = por %p117, %p118
    %p120 = scmp.ne.s32.totalorder %s108, %s109
    %p121 = scmp.eq.s32.totalorder %s17, 12
    %p122 = por %p120, %p121
    %p124 = scmp.ne.s32.totalorder %s109, %s123
    %p125 = scmp.eq.s32.totalorder %s17, 0
    %p126 = por %p124, %p125
    %s128 = sadd.s32 %s127, 1
    %p131 = scmp.eq.s32.totalorder %s11, 12
    %p132 = scmp.ne.s32.totalorder %s127, %s129
    %p133 = scmp.eq.s32.totalorder %s11, 0
    %p134 = por %p132, %p133
    %p135 = scmp.ne.s32.totalorder %s127, %s129
    %p136 = scmp.eq.s32.totalorder %s16, 12
    %p137 = por %p135, %p136
    %p138 = scmp.ne.s32.totalorder %s129, %s130
    %p139 = scmp.eq.s32.totalorder %s16, 0
    %p140 = por %p138, %p139
    %p141 = scmp.ne.s32.totalorder %s129, %s130
    %p142 = scmp.eq.s32.totalorder %s17, 12
    %p143 = por %p141, %p142
    %p145 = scmp.ne.s32.totalorder %s130, %s144
    %p146 = scmp.eq.s32.totalorder %s17, 0
    %p147 = por %p145, %p146
    %s148 = ssub.s32 %s18, %s30
    %p149 = scmp.eq.s32.totalorder %s148, 0
    %s151 = sadd.s32 %s150, 1
    %s152 = scalar_select %p149, %s150, %s151
    %p155 = pneg %p149
    %p156 = scmp.eq.s32.totalorder %s11, 12
    %p157 = por %p155, %p156
    %p158 = scmp.ne.s32.totalorder %s150, %s153
    %p159 = scmp.eq.s32.totalorder %s11, 0
    %p160 = por %p158, %p159
    %p161 = scmp.ne.s32.totalorder %s150, %s153
    %p162 = scmp.eq.s32.totalorder %s16, 12
    %p163 = por %p161, %p162
    %p164 = scmp.ne.s32.totalorder %s153, %s154
    %p165 = scmp.eq.s32.totalorder %s16, 0
    %p166 = por %p164, %p165
    %p167 = scmp.ne.s32.totalorder %s153, %s154
    %p168 = scmp.eq.s32.totalorder %s17, 12
    %p169 = por %p167, %p168
    %p171 = scmp.ne.s32.totalorder %s154, %s170
    %p172 = scmp.eq.s32.totalorder %s17, 0
    %p173 = por %p171, %p172
    %p174 = scmp.le.s32.totalorder 1, %s11
    %p175 = scmp.lt.s32.totalorder %s11, 14
    %p176 = pnand %p174, %p175
    %p177 = pneg %p176
    // Predicated region
    $region9: #{tpu_custom_call.1} parent=5 // pred_check
      _
    $region10: #{tpu_custom_call.1} parent=5 // pred_check_branch
      %179 = sbr.rel (%p176) target = $region12
    $region11: #{tpu_custom_call.1} parent=5 // pred_region
      %s180 = ssub.s32 %s11, 1
      // Predicated region
      $region13: #{tpu_custom_call.1} parent=11 // pred_check
        %p181 = pneg %p77
      $region14: #{tpu_custom_call.1} parent=11 // pred_check_branch
        %183 = sbr.rel (%p181) target = $region16
      $region15: #{tpu_custom_call.1} parent=11 // pred_region
        %s184 = smul.u32 4, %s21
        %p185 = scmp.lt.s32.totalorder %s184, 3
        %s186 = scalar_select %p185, %s184, 3
        %s187 = smul.addr %s186, 4
        %s188 = scalar_lea.vmem %s1, %s187
        %s189 = smul.u32 4, %s21
      $region16: #{tpu_custom_call.1} parent=11 // pred_fallthru
        _
      // Predicated region
      $region17: #{tpu_custom_call.1} parent=11 // pred_check
        %p190 = pneg %p98
      $region18: #{tpu_custom_call.1} parent=11 // pred_check_branch
        %192 = sbr.rel (%p190) target = $region20
      $region19: #{tpu_custom_call.1} parent=11 // pred_region
        _
      $region20: #{tpu_custom_call.1} parent=11 // pred_fallthru
        _
      // Predicated region
      $region21: #{tpu_custom_call.1} parent=11 // pred_check
        %p193 = pneg %p119
      $region22: #{tpu_custom_call.1} parent=11 // pred_check_branch
        %195 = sbr.rel (%p193) target = $region24
      $region23: #{tpu_custom_call.1} parent=11 // pred_region
        _
      $region24: #{tpu_custom_call.1} parent=11 // pred_fallthru
        _
      // Predicated region
      $region25: #{tpu_custom_call.1} parent=11 // pred_check
        %p196 = pneg %p140
      $region26: #{tpu_custom_call.1} parent=11 // pred_check_branch
        %198 = sbr.rel (%p196) target = $region28
      $region27: #{tpu_custom_call.1} parent=11 // pred_region
        _
      $region28: #{tpu_custom_call.1} parent=11 // pred_fallthru
        _
    $region12: #{tpu_custom_call.1} parent=5 // pred_fallthru
      _
    %p199 = scmp.lt.s32.totalorder %s11, 13
    // Predicated region
    $region29: #{tpu_custom_call.1} parent=5 // pred_check
      %p200 = pneg %p199
    $region30: #{tpu_custom_call.1} parent=5 // pred_check_branch
      %202 = sbr.rel (%p200) target = $region32
    $region31: #{tpu_custom_call.1} parent=5 // pred_region
      // Predicated region
      $region33: #{tpu_custom_call.1} parent=31 // pred_check
        %p203 = pneg %p45
      $region34: #{tpu_custom_call.1} parent=31 // pred_check_branch
        %205 = sbr.rel (%p203) target = $region36
      $region35: #{tpu_custom_call.1} parent=31 // pred_region
        %s206 = smul.u32 242, %s18
        %p207 = scmp.lt.s32.totalorder %s206, 3145
        %s208 = scalar_select %p207, %s206, 3145
        %p209 = scmp.lt.s32.totalorder %s19, 0
        %s210 = scalar_select %p209, %s19, 0
        %s211 = sadd.s32 %s210, %s208
        %s212 = smul.addr %s211, 4
        %s213 = scalar_lea.vmem %s0, %s212
        %s214 = smul.u32 242, %s18
      $region36: #{tpu_custom_call.1} parent=31 // pred_fallthru
        _
    $region32: #{tpu_custom_call.1} parent=5 // pred_fallthru
      _
    %p215 = scmp.le.s32.totalorder 1, %s11
    %p216 = scmp.lt.s32.totalorder %s11, 14
    %p217 = pnand %p215, %p216
    %p218 = pneg %p217
    // Predicated region
    $region37: #{tpu_custom_call.1} parent=5 // pred_check
      _
    $region38: #{tpu_custom_call.1} parent=5 // pred_check_branch
      %220 = sbr.rel (%p217) target = $region40
    $region39: #{tpu_custom_call.1} parent=5 // pred_region
      %s221 = ssub.s32 %s11, 1
      %s222 = smul.u32 242, %s20
      %p223 = scmp.lt.s32.totalorder %s222, 3145
      %s224 = scalar_select %p223, %s222, 3145
      %p225 = scmp.lt.s32.totalorder %s21, 0
      %s226 = scalar_select %p225, %s21, 0
      %s227 = sadd.s32 %s226, %s224
      %s228 = smul.addr %s227, 4
      %s229 = scalar_lea.vmem %s0, %s228
      %p230 = pneg %p51
      %p231 = pneg %p48
      %s232 = smul.u32 4, %s21
      %p233 = scmp.lt.s32.totalorder %s232, 3
      %s234 = scalar_select %p233, %s232, 3
      %s235 = smul.addr %s234, 4
      %s236 = scalar_lea.vmem %s1, %s235
      %p237 = pneg %p77
      %p238 = pneg %p74
      %p239 = pneg %p98
      %p240 = pneg %p95
      %p241 = pneg %p119
      %p242 = pneg %p116
      %p243 = pneg %p140
      %p244 = pneg %p137
      %p245 = pneg %p166
      %p246 = pneg %p163
      %s247 = smul.u32 242, %s20
      %p248 = scmp.lt.s32.totalorder %s247, 3145
      %s249 = scalar_select %p248, %s247, 3145
      %s250 = smul.addr %s249, 4
      %s251 = scalar_lea.vmem %s5, %s250
      %s252 = smul.u32 242, %s20
      %p253 = scmp.lt.s32.totalorder %s252, 3145
      %s254 = scalar_select %p253, %s252, 3145
      %p255 = scmp.lt.s32.totalorder %s21, 0
      %s256 = scalar_select %p255, %s21, 0
      %s257 = sadd.s32 %s256, %s254
      %s258 = smul.addr %s257, 4
      %s259 = scalar_lea.vmem %s0, %s258
      %s260 = smul.u32 242, %s20
      %s261 = smul.u32 4, %s21
      %p262 = scmp.lt.s32.totalorder %s261, 3
      %s263 = scalar_select %p262, %s261, 3
      %s264 = smul.addr %s263, 4
      %s265 = scalar_lea.vmem %s1, %s264
      %s266 = smul.u32 4, %s21
      %s267 = smul.u32 242, %s20
      %p268 = scmp.lt.s32.totalorder %s267, 3145
      %s269 = scalar_select %p268, %s267, 3145
      %s270 = smul.addr %s269, 4
      %s271 = scalar_lea.vmem %s5, %s270
      %s272 = smul.u32 242, %s20
      %p274 = scmp.eq.s32.totalorder %s21, 0
      // Predicated region
      $region41: #{tpu_custom_call.1} parent=39 // pred_check
        %p275 = pneg %p274
      $region42: #{tpu_custom_call.1} parent=39 // pred_check_branch
        %277 = sbr.rel (%p275) target = $region44
      $region43: #{tpu_custom_call.1} parent=39 // pred_region
        %vm278 = vcmask 523264
        %279 = vst.msk [vmem:[#allocation2] sm:$0xff] %vm278, 0.0
        %280 = vst.msk [vmem:[#allocation2 + $0x8] sm:$0xff] %vm278, 0.0
        %281 = vst.msk [vmem:[#allocation2 + $0x10] sm:$0xff] %vm278, 0.0
        %282 = vst.msk [vmem:[#allocation2 + $0x18] sm:$0xff] %vm278, 0.0
        %283 = vst.msk [vmem:[#allocation2 + $0x20] sm:$0xff] %vm278, 0.0
        %284 = vst.msk [vmem:[#allocation2 + $0x28] sm:$0xff] %vm278, 0.0
        %285 = vst.msk [vmem:[#allocation2 + $0x30] sm:$0xff] %vm278, 0.0
        %286 = vst.msk [vmem:[#allocation2 + $0x38] sm:$0xff] %vm278, 0.0
        %287 = vst.msk [vmem:[#allocation2 + $0x40] sm:$0xff] %vm278, 0.0
        %288 = vst.msk [vmem:[#allocation2 + $0x48] sm:$0xff] %vm278, 0.0
        %289 = vst.msk [vmem:[#allocation2 + $0x50] sm:$0xff] %vm278, 0.0
        %290 = vst.msk [vmem:[#allocation2 + $0x58] sm:$0xff] %vm278, 0.0
        %291 = vst.msk [vmem:[#allocation2 + $0x60] sm:$0xff] %vm278, 0.0
        %292 = vst.msk [vmem:[#allocation2 + $0x68] sm:$0xff] %vm278, 0.0
        %293 = vst.msk [vmem:[#allocation2 + $0x70] sm:$0xff] %vm278, 0.0
        %294 = vst.msk [vmem:[#allocation2 + $0x78] sm:$0xff] %vm278, 0.0
        %295 = vst.msk [vmem:[#allocation2 + $0x80] sm:$0xff] %vm278, 0.0
        %296 = vst.msk [vmem:[#allocation2 + $0x88] sm:$0xff] %vm278, 0.0
        %297 = vst.msk [vmem:[#allocation2 + $0x90] sm:$0xff] %vm278, 0.0
        %298 = vst.msk [vmem:[#allocation2 + $0x98] sm:$0xff] %vm278, 0.0
        %299 = vst.msk [vmem:[#allocation2 + $0xa0] sm:$0xff] %vm278, 0.0
        %300 = vst.msk [vmem:[#allocation2 + $0xa8] sm:$0xff] %vm278, 0.0
        %301 = vst.msk [vmem:[#allocation2 + $0xb0] sm:$0xff] %vm278, 0.0
        %302 = vst.msk [vmem:[#allocation2 + $0xb8] sm:$0xff] %vm278, 0.0
        %303 = vst.msk [vmem:[#allocation2 + $0xc0] sm:$0xff] %vm278, 0.0
        %304 = vst.msk [vmem:[#allocation2 + $0xc8] sm:$0xff] %vm278, 0.0
        %305 = vst.msk [vmem:[#allocation2 + $0xd0] sm:$0xff] %vm278, 0.0
        %306 = vst.msk [vmem:[#allocation2 + $0xd8] sm:$0xff] %vm278, 0.0
        %307 = vst.msk [vmem:[#allocation2 + $0xe0] sm:$0xff] %vm278, 0.0
        %308 = vst.msk [vmem:[#allocation2 + $0xe8] sm:$0xff] %vm278, 0.0
        %309 = vst.msk [vmem:[#allocation2 + $0xf0] sm:$0xff] %vm278, 0.0
        %310 = vst.msk [vmem:[#allocation2 + $0xf8] sm:$0xff] %vm278, 0.0
        %311 = vst.msk [vmem:[#allocation2 + $0x100] sm:$0xff] %vm278, 0.0
        %312 = vst.msk [vmem:[#allocation2 + $0x108] sm:$0xff] %vm278, 0.0
        %313 = vst.msk [vmem:[#allocation2 + $0x110] sm:$0xff] %vm278, 0.0
        %314 = vst.msk [vmem:[#allocation2 + $0x118] sm:$0xff] %vm278, 0.0
        %315 = vst.msk [vmem:[#allocation2 + $0x120] sm:$0xff] %vm278, 0.0
        %316 = vst.msk [vmem:[#allocation2 + $0x128] sm:$0xff] %vm278, 0.0
        %317 = vst.msk [vmem:[#allocation2 + $0x130] sm:$0xff] %vm278, 0.0
        %318 = vst.msk [vmem:[#allocation2 + $0x138] sm:$0xff] %vm278, 0.0
        %319 = vst.msk [vmem:[#allocation2 + $0x140] sm:$0xff] %vm278, 0.0
        %320 = vst.msk [vmem:[#allocation2 + $0x148] sm:$0xff] %vm278, 0.0
        %321 = vst.msk [vmem:[#allocation2 + $0x150] sm:$0xff] %vm278, 0.0
        %322 = vst.msk [vmem:[#allocation2 + $0x158] sm:$0xff] %vm278, 0.0
        %323 = vst.msk [vmem:[#allocation2 + $0x160] sm:$0xff] %vm278, 0.0
        %324 = vst.msk [vmem:[#allocation2 + $0x168] sm:$0xff] %vm278, 0.0
        %325 = vst.msk [vmem:[#allocation2 + $0x170] sm:$0xff] %vm278, 0.0
        %326 = vst.msk [vmem:[#allocation2 + $0x178] sm:$0xff] %vm278, 0.0
        %327 = vst.msk [vmem:[#allocation2 + $0x180] sm:$0xff] %vm278, 0.0
        %328 = vst.msk [vmem:[#allocation2 + $0x188] sm:$0xff] %vm278, 0.0
        %329 = vst.msk [vmem:[#allocation2 + $0x190] sm:$0xff] %vm278, 0.0
        %330 = vst.msk [vmem:[#allocation2 + $0x198] sm:$0xff] %vm278, 0.0
        %331 = vst.msk [vmem:[#allocation2 + $0x1a0] sm:$0xff] %vm278, 0.0
        %332 = vst.msk [vmem:[#allocation2 + $0x1a8] sm:$0xff] %vm278, 0.0
        %333 = vst.msk [vmem:[#allocation2 + $0x1b0] sm:$0xff] %vm278, 0.0
        %334 = vst.msk [vmem:[#allocation2 + $0x1b8] sm:$0xff] %vm278, 0.0
        %335 = vst.msk [vmem:[#allocation2 + $0x1c0] sm:$0xff] %vm278, 0.0
        %336 = vst.msk [vmem:[#allocation2 + $0x1c8] sm:$0xff] %vm278, 0.0
        %337 = vst.msk [vmem:[#allocation2 + $0x1d0] sm:$0xff] %vm278, 0.0
        %338 = vst.msk [vmem:[#allocation2 + $0x1d8] sm:$0xff] %vm278, 0.0
        %339 = vst.msk [vmem:[#allocation2 + $0x1e0] sm:$0xff] %vm278, 0.0
        %340 = vst.msk [vmem:[#allocation2 + $0x1e8] sm:$0xff] %vm278, 0.0
        %341 = vst.msk [vmem:[#allocation2 + $0x1f0] sm:$0xff] %vm278, 0.0
        %342 = vst.msk [vmem:[#allocation2 + $0x1f8] sm:$0xff] %vm278, 0.0
        %343 = vst.msk [vmem:[#allocation2 + $0x200] sm:$0xff] %vm278, 0.0
        %344 = vst.msk [vmem:[#allocation2 + $0x208] sm:$0xff] %vm278, 0.0
        %345 = vst.msk [vmem:[#allocation2 + $0x210] sm:$0xff] %vm278, 0.0
        %346 = vst.msk [vmem:[#allocation2 + $0x218] sm:$0xff] %vm278, 0.0
        %347 = vst.msk [vmem:[#allocation2 + $0x220] sm:$0xff] %vm278, 0.0
        %348 = vst.msk [vmem:[#allocation2 + $0x228] sm:$0xff] %vm278, 0.0
        %349 = vst.msk [vmem:[#allocation2 + $0x230] sm:$0xff] %vm278, 0.0
        %350 = vst.msk [vmem:[#allocation2 + $0x238] sm:$0xff] %vm278, 0.0
        %351 = vst.msk [vmem:[#allocation2 + $0x240] sm:$0xff] %vm278, 0.0
        %352 = vst.msk [vmem:[#allocation2 + $0x248] sm:$0xff] %vm278, 0.0
        %353 = vst.msk [vmem:[#allocation2 + $0x250] sm:$0xff] %vm278, 0.0
        %354 = vst.msk [vmem:[#allocation2 + $0x258] sm:$0xff] %vm278, 0.0
        %355 = vst.msk [vmem:[#allocation2 + $0x260] sm:$0xff] %vm278, 0.0
        %356 = vst.msk [vmem:[#allocation2 + $0x268] sm:$0xff] %vm278, 0.0
        %357 = vst.msk [vmem:[#allocation2 + $0x270] sm:$0xff] %vm278, 0.0
        %358 = vst.msk [vmem:[#allocation2 + $0x278] sm:$0xff] %vm278, 0.0
        %359 = vst.msk [vmem:[#allocation2 + $0x280] sm:$0xff] %vm278, 0.0
        %360 = vst.msk [vmem:[#allocation2 + $0x288] sm:$0xff] %vm278, 0.0
        %361 = vst.msk [vmem:[#allocation2 + $0x290] sm:$0xff] %vm278, 0.0
        %362 = vst.msk [vmem:[#allocation2 + $0x298] sm:$0xff] %vm278, 0.0
        %363 = vst.msk [vmem:[#allocation2 + $0x2a0] sm:$0xff] %vm278, 0.0
        %364 = vst.msk [vmem:[#allocation2 + $0x2a8] sm:$0xff] %vm278, 0.0
        %365 = vst.msk [vmem:[#allocation2 + $0x2b0] sm:$0xff] %vm278, 0.0
        %366 = vst.msk [vmem:[#allocation2 + $0x2b8] sm:$0xff] %vm278, 0.0
        %367 = vst.msk [vmem:[#allocation2 + $0x2c0] sm:$0xff] %vm278, 0.0
        %368 = vst.msk [vmem:[#allocation2 + $0x2c8] sm:$0xff] %vm278, 0.0
        %369 = vst.msk [vmem:[#allocation2 + $0x2d0] sm:$0xff] %vm278, 0.0
        %370 = vst.msk [vmem:[#allocation2 + $0x2d8] sm:$0xff] %vm278, 0.0
        %371 = vst.msk [vmem:[#allocation2 + $0x2e0] sm:$0xff] %vm278, 0.0
        %372 = vst.msk [vmem:[#allocation2 + $0x2e8] sm:$0xff] %vm278, 0.0
        %373 = vst.msk [vmem:[#allocation2 + $0x2f0] sm:$0xff] %vm278, 0.0
        %374 = vst.msk [vmem:[#allocation2 + $0x2f8] sm:$0xff] %vm278, 0.0
        %375 = vst.msk [vmem:[#allocation2 + $0x300] sm:$0xff] %vm278, 0.0
        %376 = vst.msk [vmem:[#allocation2 + $0x308] sm:$0xff] %vm278, 0.0
        %377 = vst.msk [vmem:[#allocation2 + $0x310] sm:$0xff] %vm278, 0.0
        %378 = vst.msk [vmem:[#allocation2 + $0x318] sm:$0xff] %vm278, 0.0
        %379 = vst.msk [vmem:[#allocation2 + $0x320] sm:$0xff] %vm278, 0.0
        %380 = vst.msk [vmem:[#allocation2 + $0x328] sm:$0xff] %vm278, 0.0
        %381 = vst.msk [vmem:[#allocation2 + $0x330] sm:$0xff] %vm278, 0.0
        %382 = vst.msk [vmem:[#allocation2 + $0x338] sm:$0xff] %vm278, 0.0
        %383 = vst.msk [vmem:[#allocation2 + $0x340] sm:$0xff] %vm278, 0.0
        %384 = vst.msk [vmem:[#allocation2 + $0x348] sm:$0xff] %vm278, 0.0
        %385 = vst.msk [vmem:[#allocation2 + $0x350] sm:$0xff] %vm278, 0.0
        %386 = vst.msk [vmem:[#allocation2 + $0x358] sm:$0xff] %vm278, 0.0
        %387 = vst.msk [vmem:[#allocation2 + $0x360] sm:$0xff] %vm278, 0.0
        %388 = vst.msk [vmem:[#allocation2 + $0x368] sm:$0xff] %vm278, 0.0
        %389 = vst.msk [vmem:[#allocation2 + $0x370] sm:$0xff] %vm278, 0.0
        %390 = vst.msk [vmem:[#allocation2 + $0x378] sm:$0xff] %vm278, 0.0
        %391 = vst.msk [vmem:[#allocation2 + $0x380] sm:$0xff] %vm278, 0.0
        %392 = vst.msk [vmem:[#allocation2 + $0x388] sm:$0xff] %vm278, 0.0
        %393 = vst.msk [vmem:[#allocation2 + $0x390] sm:$0xff] %vm278, 0.0
        %394 = vst.msk [vmem:[#allocation2 + $0x398] sm:$0xff] %vm278, 0.0
        %395 = vst.msk [vmem:[#allocation2 + $0x3a0] sm:$0xff] %vm278, 0.0
        %396 = vst.msk [vmem:[#allocation2 + $0x3a8] sm:$0xff] %vm278, 0.0
        %397 = vst.msk [vmem:[#allocation2 + $0x3b0] sm:$0xff] %vm278, 0.0
        %398 = vst.msk [vmem:[#allocation2 + $0x3b8] sm:$0xff] %vm278, 0.0
        %399 = vst.msk [vmem:[#allocation2 + $0x3c0] sm:$0xff] %vm278, 0.0
        %400 = vst.msk [vmem:[#allocation2 + $0x3c8] sm:$0xff] %vm278, 0.0
        %401 = vst.msk [vmem:[#allocation2 + $0x3d0] sm:$0xff] %vm278, 0.0
        %402 = vst.msk [vmem:[#allocation2 + $0x3d8] sm:$0xff] %vm278, 0.0
        %403 = vst.msk [vmem:[#allocation2 + $0x3e0] sm:$0xff] %vm278, 0.0
        %404 = vst.msk [vmem:[#allocation2 + $0x3e8] sm:$0xff] %vm278, 0.0
        %405 = vst.msk [vmem:[#allocation2 + $0x3f0] sm:$0xff] %vm278, 0.0
        %406 = vst.msk [vmem:[#allocation2 + $0x3f8] sm:$0xff] %vm278, 0.0
        %407 = vst.msk [vmem:[#allocation2 + $0x400] sm:$0xff] %vm278, 0.0
        %408 = vst.msk [vmem:[#allocation2 + $0x408] sm:$0xff] %vm278, 0.0
        %409 = vst.msk [vmem:[#allocation2 + $0x410] sm:$0xff] %vm278, 0.0
        %410 = vst.msk [vmem:[#allocation2 + $0x418] sm:$0xff] %vm278, 0.0
        %411 = vst.msk [vmem:[#allocation2 + $0x420] sm:$0xff] %vm278, 0.0
        %412 = vst.msk [vmem:[#allocation2 + $0x428] sm:$0xff] %vm278, 0.0
        %413 = vst.msk [vmem:[#allocation2 + $0x430] sm:$0xff] %vm278, 0.0
        %414 = vst.msk [vmem:[#allocation2 + $0x438] sm:$0xff] %vm278, 0.0
        %415 = vst.msk [vmem:[#allocation2 + $0x440] sm:$0xff] %vm278, 0.0
        %416 = vst.msk [vmem:[#allocation2 + $0x448] sm:$0xff] %vm278, 0.0
        %417 = vst.msk [vmem:[#allocation2 + $0x450] sm:$0xff] %vm278, 0.0
        %418 = vst.msk [vmem:[#allocation2 + $0x458] sm:$0xff] %vm278, 0.0
        %419 = vst.msk [vmem:[#allocation2 + $0x460] sm:$0xff] %vm278, 0.0
        %420 = vst.msk [vmem:[#allocation2 + $0x468] sm:$0xff] %vm278, 0.0
        %421 = vst.msk [vmem:[#allocation2 + $0x470] sm:$0xff] %vm278, 0.0
        %422 = vst.msk [vmem:[#allocation2 + $0x478] sm:$0xff] %vm278, 0.0
        %423 = vst.msk [vmem:[#allocation2 + $0x480] sm:$0xff] %vm278, 0.0
        %424 = vst.msk [vmem:[#allocation2 + $0x488] sm:$0xff] %vm278, 0.0
        %425 = vst.msk [vmem:[#allocation2 + $0x490] sm:$0xff] %vm278, 0.0
        %426 = vst.msk [vmem:[#allocation2 + $0x498] sm:$0xff] %vm278, 0.0
        %427 = vst.msk [vmem:[#allocation2 + $0x4a0] sm:$0xff] %vm278, 0.0
        %428 = vst.msk [vmem:[#allocation2 + $0x4a8] sm:$0xff] %vm278, 0.0
        %429 = vst.msk [vmem:[#allocation2 + $0x4b0] sm:$0xff] %vm278, 0.0
        %430 = vst.msk [vmem:[#allocation2 + $0x4b8] sm:$0xff] %vm278, 0.0
        %431 = vst.msk [vmem:[#allocation2 + $0x4c0] sm:$0xff] %vm278, 0.0
        %432 = vst.msk [vmem:[#allocation2 + $0x4c8] sm:$0xff] %vm278, 0.0
        %433 = vst.msk [vmem:[#allocation2 + $0x4d0] sm:$0xff] %vm278, 0.0
        %434 = vst.msk [vmem:[#allocation2 + $0x4d8] sm:$0xff] %vm278, 0.0
        %435 = vst.msk [vmem:[#allocation2 + $0x4e0] sm:$0xff] %vm278, 0.0
        %436 = vst.msk [vmem:[#allocation2 + $0x4e8] sm:$0xff] %vm278, 0.0
        %437 = vst.msk [vmem:[#allocation2 + $0x4f0] sm:$0xff] %vm278, 0.0
        %438 = vst.msk [vmem:[#allocation2 + $0x4f8] sm:$0xff] %vm278, 0.0
        %439 = vst.msk [vmem:[#allocation2 + $0x500] sm:$0xff] %vm278, 0.0
        %440 = vst.msk [vmem:[#allocation2 + $0x508] sm:$0xff] %vm278, 0.0
        %441 = vst.msk [vmem:[#allocation2 + $0x510] sm:$0xff] %vm278, 0.0
        %442 = vst.msk [vmem:[#allocation2 + $0x518] sm:$0xff] %vm278, 0.0
        %443 = vst.msk [vmem:[#allocation2 + $0x520] sm:$0xff] %vm278, 0.0
        %444 = vst.msk [vmem:[#allocation2 + $0x528] sm:$0xff] %vm278, 0.0
        %445 = vst.msk [vmem:[#allocation2 + $0x530] sm:$0xff] %vm278, 0.0
        %446 = vst.msk [vmem:[#allocation2 + $0x538] sm:$0xff] %vm278, 0.0
        %447 = vst.msk [vmem:[#allocation2 + $0x540] sm:$0xff] %vm278, 0.0
        %448 = vst.msk [vmem:[#allocation2 + $0x548] sm:$0xff] %vm278, 0.0
        %449 = vst.msk [vmem:[#allocation2 + $0x550] sm:$0xff] %vm278, 0.0
        %450 = vst.msk [vmem:[#allocation2 + $0x558] sm:$0xff] %vm278, 0.0
        %451 = vst.msk [vmem:[#allocation2 + $0x560] sm:$0xff] %vm278, 0.0
        %452 = vst.msk [vmem:[#allocation2 + $0x568] sm:$0xff] %vm278, 0.0
        %453 = vst.msk [vmem:[#allocation2 + $0x570] sm:$0xff] %vm278, 0.0
        %454 = vst.msk [vmem:[#allocation2 + $0x578] sm:$0xff] %vm278, 0.0
        %455 = vst.msk [vmem:[#allocation2 + $0x580] sm:$0xff] %vm278, 0.0
        %456 = vst.msk [vmem:[#allocation2 + $0x588] sm:$0xff] %vm278, 0.0
        %457 = vst.msk [vmem:[#allocation2 + $0x590] sm:$0xff] %vm278, 0.0
        %458 = vst.msk [vmem:[#allocation2 + $0x598] sm:$0xff] %vm278, 0.0
        %459 = vst.msk [vmem:[#allocation2 + $0x5a0] sm:$0xff] %vm278, 0.0
        %460 = vst.msk [vmem:[#allocation2 + $0x5a8] sm:$0xff] %vm278, 0.0
        %461 = vst.msk [vmem:[#allocation2 + $0x5b0] sm:$0xff] %vm278, 0.0
        %462 = vst.msk [vmem:[#allocation2 + $0x5b8] sm:$0xff] %vm278, 0.0
        %463 = vst.msk [vmem:[#allocation2 + $0x5c0] sm:$0xff] %vm278, 0.0
        %464 = vst.msk [vmem:[#allocation2 + $0x5c8] sm:$0xff] %vm278, 0.0
        %465 = vst.msk [vmem:[#allocation2 + $0x5d0] sm:$0xff] %vm278, 0.0
        %466 = vst.msk [vmem:[#allocation2 + $0x5d8] sm:$0xff] %vm278, 0.0
        %467 = vst.msk [vmem:[#allocation2 + $0x5e0] sm:$0xff] %vm278, 0.0
        %468 = vst.msk [vmem:[#allocation2 + $0x5e8] sm:$0xff] %vm278, 0.0
        %469 = vst.msk [vmem:[#allocation2 + $0x5f0] sm:$0xff] %vm278, 0.0
        %470 = vst.msk [vmem:[#allocation2 + $0x5f8] sm:$0xff] %vm278, 0.0
        %471 = vst.msk [vmem:[#allocation2 + $0x600] sm:$0xff] %vm278, 0.0
        %472 = vst.msk [vmem:[#allocation2 + $0x608] sm:$0xff] %vm278, 0.0
        %473 = vst.msk [vmem:[#allocation2 + $0x610] sm:$0xff] %vm278, 0.0
        %474 = vst.msk [vmem:[#allocation2 + $0x618] sm:$0xff] %vm278, 0.0
        %475 = vst.msk [vmem:[#allocation2 + $0x620] sm:$0xff] %vm278, 0.0
        %476 = vst.msk [vmem:[#allocation2 + $0x628] sm:$0xff] %vm278, 0.0
        %477 = vst.msk [vmem:[#allocation2 + $0x630] sm:$0xff] %vm278, 0.0
        %478 = vst.msk [vmem:[#allocation2 + $0x638] sm:$0xff] %vm278, 0.0
        %479 = vst.msk [vmem:[#allocation2 + $0x640] sm:$0xff] %vm278, 0.0
        %480 = vst.msk [vmem:[#allocation2 + $0x648] sm:$0xff] %vm278, 0.0
        %481 = vst.msk [vmem:[#allocation2 + $0x650] sm:$0xff] %vm278, 0.0
        %482 = vst.msk [vmem:[#allocation2 + $0x658] sm:$0xff] %vm278, 0.0
        %483 = vst.msk [vmem:[#allocation2 + $0x660] sm:$0xff] %vm278, 0.0
        %484 = vst.msk [vmem:[#allocation2 + $0x668] sm:$0xff] %vm278, 0.0
        %485 = vst.msk [vmem:[#allocation2 + $0x670] sm:$0xff] %vm278, 0.0
        %486 = vst.msk [vmem:[#allocation2 + $0x678] sm:$0xff] %vm278, 0.0
        %487 = vst.msk [vmem:[#allocation2 + $0x680] sm:$0xff] %vm278, 0.0
        %488 = vst.msk [vmem:[#allocation2 + $0x688] sm:$0xff] %vm278, 0.0
        %489 = vst.msk [vmem:[#allocation2 + $0x690] sm:$0xff] %vm278, 0.0
        %490 = vst.msk [vmem:[#allocation2 + $0x698] sm:$0xff] %vm278, 0.0
        %491 = vst.msk [vmem:[#allocation2 + $0x6a0] sm:$0xff] %vm278, 0.0
        %492 = vst.msk [vmem:[#allocation2 + $0x6a8] sm:$0xff] %vm278, 0.0
        %493 = vst.msk [vmem:[#allocation2 + $0x6b0] sm:$0xff] %vm278, 0.0
        %494 = vst.msk [vmem:[#allocation2 + $0x6b8] sm:$0xff] %vm278, 0.0
        %495 = vst.msk [vmem:[#allocation2 + $0x6c0] sm:$0xff] %vm278, 0.0
        %496 = vst.msk [vmem:[#allocation2 + $0x6c8] sm:$0xff] %vm278, 0.0
        %497 = vst.msk [vmem:[#allocation2 + $0x6d0] sm:$0xff] %vm278, 0.0
        %498 = vst.msk [vmem:[#allocation2 + $0x6d8] sm:$0xff] %vm278, 0.0
        %499 = vst.msk [vmem:[#allocation2 + $0x6e0] sm:$0xff] %vm278, 0.0
        %500 = vst.msk [vmem:[#allocation2 + $0x6e8] sm:$0xff] %vm278, 0.0
        %501 = vst.msk [vmem:[#allocation2 + $0x6f0] sm:$0xff] %vm278, 0.0
        %502 = vst.msk [vmem:[#allocation2 + $0x6f8] sm:$0xff] %vm278, 0.0
        %503 = vst.msk [vmem:[#allocation2 + $0x700] sm:$0xff] %vm278, 0.0
        %504 = vst.msk [vmem:[#allocation2 + $0x708] sm:$0xff] %vm278, 0.0
        %505 = vst.msk [vmem:[#allocation2 + $0x710] sm:$0xff] %vm278, 0.0
        %506 = vst.msk [vmem:[#allocation2 + $0x718] sm:$0xff] %vm278, 0.0
        %507 = vst.msk [vmem:[#allocation2 + $0x720] sm:$0xff] %vm278, 0.0
        %508 = vst.msk [vmem:[#allocation2 + $0x728] sm:$0xff] %vm278, 0.0
        %509 = vst.msk [vmem:[#allocation2 + $0x730] sm:$0xff] %vm278, 0.0
        %510 = vst.msk [vmem:[#allocation2 + $0x738] sm:$0xff] %vm278, 0.0
        %511 = vst.msk [vmem:[#allocation2 + $0x740] sm:$0xff] %vm278, 0.0
        %512 = vst.msk [vmem:[#allocation2 + $0x748] sm:$0xff] %vm278, 0.0
        %513 = vst.msk [vmem:[#allocation2 + $0x750] sm:$0xff] %vm278, 0.0
        %514 = vst.msk [vmem:[#allocation2 + $0x758] sm:$0xff] %vm278, 0.0
        %515 = vst.msk [vmem:[#allocation2 + $0x760] sm:$0xff] %vm278, 0.0
        %516 = vst.msk [vmem:[#allocation2 + $0x768] sm:$0xff] %vm278, 0.0
        %517 = vst.msk [vmem:[#allocation2 + $0x770] sm:$0xff] %vm278, 0.0
        %518 = vst.msk [vmem:[#allocation2 + $0x778] sm:$0xff] %vm278, 0.0
        %519 = vst.msk [vmem:[#allocation2 + $0x780] sm:$0xff] %vm278, 0.0
        %520 = vst.msk [vmem:[#allocation2 + $0x788] sm:$0xff] %vm278, 0.0
      $region44: #{tpu_custom_call.1} parent=39 // pred_fallthru
        _
      %v521 = vld [vmem:[%s259] sm:$0xf]
      %v522 = vld [vmem:[%s259 + $0x4] sm:$0xf]
      %v523 = vld [vmem:[%s259 + $0x8] sm:$0xf]
      %v524 = vld [vmem:[%s259 + $0xc] sm:$0xf]
      %v525 = vld [vmem:[%s259 + $0x10] sm:$0xf]
      %v526 = vld [vmem:[%s259 + $0x14] sm:$0xf]
      %v527 = vld [vmem:[%s259 + $0x18] sm:$0xf]
      %v528 = vld [vmem:[%s259 + $0x1c] sm:$0xf]
      %v529 = vld [vmem:[%s259 + $0x20] sm:$0xf]
      %v530 = vld [vmem:[%s259 + $0x24] sm:$0xf]
      %v531 = vld [vmem:[%s259 + $0x28] sm:$0xf]
      %v532 = vld [vmem:[%s259 + $0x2c] sm:$0xf]
      %v533 = vld [vmem:[%s259 + $0x30] sm:$0xf]
      %v534 = vld [vmem:[%s259 + $0x34] sm:$0xf]
      %v535 = vld [vmem:[%s259 + $0x38] sm:$0xf]
      %v536 = vld [vmem:[%s259 + $0x3c] sm:$0xf]
      %v537 = vld [vmem:[%s259 + $0x40] sm:$0xf]
      %v538 = vld [vmem:[%s259 + $0x44] sm:$0xf]
      %v539 = vld [vmem:[%s259 + $0x48] sm:$0xf]
      %v540 = vld [vmem:[%s259 + $0x4c] sm:$0xf]
      %v541 = vld [vmem:[%s259 + $0x50] sm:$0xf]
      %v542 = vld [vmem:[%s259 + $0x54] sm:$0xf]
      %v543 = vld [vmem:[%s259 + $0x58] sm:$0xf]
      %v544 = vld [vmem:[%s259 + $0x5c] sm:$0xf]
      %v545 = vld [vmem:[%s259 + $0x60] sm:$0xf]
      %v546 = vld [vmem:[%s259 + $0x64] sm:$0xf]
      %v547 = vld [vmem:[%s259 + $0x68] sm:$0xf]
      %v548 = vld [vmem:[%s259 + $0x6c] sm:$0xf]
      %v549 = vld [vmem:[%s259 + $0x70] sm:$0xf]
      %v550 = vld [vmem:[%s259 + $0x74] sm:$0xf]
      %v551 = vld [vmem:[%s259 + $0x78] sm:$0xf]
      %v552 = vld [vmem:[%s259 + $0x7c] sm:$0xf]
      %v553 = vld [vmem:[%s259 + $0x80] sm:$0xf]
      %v554 = vld [vmem:[%s259 + $0x84] sm:$0xf]
      %v555 = vld [vmem:[%s259 + $0x88] sm:$0xf]
      %v556 = vld [vmem:[%s259 + $0x8c] sm:$0xf]
      %v557 = vld [vmem:[%s259 + $0x90] sm:$0xf]
      %v558 = vld [vmem:[%s259 + $0x94] sm:$0xf]
      %v559 = vld [vmem:[%s259 + $0x98] sm:$0xf]
      %v560 = vld [vmem:[%s259 + $0x9c] sm:$0xf]
      %v561 = vld [vmem:[%s259 + $0xa0] sm:$0xf]
      %v562 = vld [vmem:[%s259 + $0xa4] sm:$0xf]
      %v563 = vld [vmem:[%s259 + $0xa8] sm:$0xf]
      %v564 = vld [vmem:[%s259 + $0xac] sm:$0xf]
      %v565 = vld [vmem:[%s259 + $0xb0] sm:$0xf]
      %v566 = vld [vmem:[%s259 + $0xb4] sm:$0xf]
      %v567 = vld [vmem:[%s259 + $0xb8] sm:$0xf]
      %v568 = vld [vmem:[%s259 + $0xbc] sm:$0xf]
      %v569 = vld [vmem:[%s259 + $0xc0] sm:$0xf]
      %v570 = vld [vmem:[%s259 + $0xc4] sm:$0xf]
      %v571 = vld [vmem:[%s259 + $0xc8] sm:$0xf]
      %v572 = vld [vmem:[%s259 + $0xcc] sm:$0xf]
      %v573 = vld [vmem:[%s259 + $0xd0] sm:$0xf]
      %v574 = vld [vmem:[%s259 + $0xd4] sm:$0xf]
      %v575 = vld [vmem:[%s259 + $0xd8] sm:$0xf]
      %v576 = vld [vmem:[%s259 + $0xdc] sm:$0xf]
      %v577 = vld [vmem:[%s259 + $0xe0] sm:$0xf]
      %v578 = vld [vmem:[%s259 + $0xe4] sm:$0xf]
      %v579 = vld [vmem:[%s259 + $0xe8] sm:$0xf]
      %v580 = vld [vmem:[%s259 + $0xec] sm:$0xf]
      %v581 = vld [vmem:[%s259 + $0xf0] sm:$0xf]
      %v582 = vld [vmem:[%s259 + $0xf4] sm:$0xf]
      %v583 = vld [vmem:[%s259 + $0xf8] sm:$0xf]
      %v584 = vld [vmem:[%s259 + $0xfc] sm:$0xf]
      %v585 = vld [vmem:[%s259 + $0x100] sm:$0xf]
      %v586 = vld [vmem:[%s259 + $0x104] sm:$0xf]
      %v587 = vld [vmem:[%s259 + $0x108] sm:$0xf]
      %v588 = vld [vmem:[%s259 + $0x10c] sm:$0xf]
      %v589 = vld [vmem:[%s259 + $0x110] sm:$0xf]
      %v590 = vld [vmem:[%s259 + $0x114] sm:$0xf]
      %v591 = vld [vmem:[%s259 + $0x118] sm:$0xf]
      %v592 = vld [vmem:[%s259 + $0x11c] sm:$0xf]
      %v593 = vld [vmem:[%s259 + $0x120] sm:$0xf]
      %v594 = vld [vmem:[%s259 + $0x124] sm:$0xf]
      %v595 = vld [vmem:[%s259 + $0x128] sm:$0xf]
      %v596 = vld [vmem:[%s259 + $0x12c] sm:$0xf]
      %v597 = vld [vmem:[%s259 + $0x130] sm:$0xf]
      %v598 = vld [vmem:[%s259 + $0x134] sm:$0xf]
      %v599 = vld [vmem:[%s259 + $0x138] sm:$0xf]
      %v600 = vld [vmem:[%s259 + $0x13c] sm:$0xf]
      %v601 = vld [vmem:[%s259 + $0x140] sm:$0xf]
      %v602 = vld [vmem:[%s259 + $0x144] sm:$0xf]
      %v603 = vld [vmem:[%s259 + $0x148] sm:$0xf]
      %v604 = vld [vmem:[%s259 + $0x14c] sm:$0xf]
      %v605 = vld [vmem:[%s259 + $0x150] sm:$0xf]
      %v606 = vld [vmem:[%s259 + $0x154] sm:$0xf]
      %v607 = vld [vmem:[%s259 + $0x158] sm:$0xf]
      %v608 = vld [vmem:[%s259 + $0x15c] sm:$0xf]
      %v609 = vld [vmem:[%s259 + $0x160] sm:$0xf]
      %v610 = vld [vmem:[%s259 + $0x164] sm:$0xf]
      %v611 = vld [vmem:[%s259 + $0x168] sm:$0xf]
      %v612 = vld [vmem:[%s259 + $0x16c] sm:$0xf]
      %v613 = vld [vmem:[%s259 + $0x170] sm:$0xf]
      %v614 = vld [vmem:[%s259 + $0x174] sm:$0xf]
      %v615 = vld [vmem:[%s259 + $0x178] sm:$0xf]
      %v616 = vld [vmem:[%s259 + $0x17c] sm:$0xf]
      %v617 = vld [vmem:[%s259 + $0x180] sm:$0xf]
      %v618 = vld [vmem:[%s259 + $0x184] sm:$0xf]
      %v619 = vld [vmem:[%s259 + $0x188] sm:$0xf]
      %v620 = vld [vmem:[%s259 + $0x18c] sm:$0xf]
      %v621 = vld [vmem:[%s259 + $0x190] sm:$0xf]
      %v622 = vld [vmem:[%s259 + $0x194] sm:$0xf]
      %v623 = vld [vmem:[%s259 + $0x198] sm:$0xf]
      %v624 = vld [vmem:[%s259 + $0x19c] sm:$0xf]
      %v625 = vld [vmem:[%s259 + $0x1a0] sm:$0xf]
      %v626 = vld [vmem:[%s259 + $0x1a4] sm:$0xf]
      %v627 = vld [vmem:[%s259 + $0x1a8] sm:$0xf]
      %v628 = vld [vmem:[%s259 + $0x1ac] sm:$0xf]
      %v629 = vld [vmem:[%s259 + $0x1b0] sm:$0xf]
      %v630 = vld [vmem:[%s259 + $0x1b4] sm:$0xf]
      %v631 = vld [vmem:[%s259 + $0x1b8] sm:$0xf]
      %v632 = vld [vmem:[%s259 + $0x1bc] sm:$0xf]
      %v633 = vld [vmem:[%s259 + $0x1c0] sm:$0xf]
      %v634 = vld [vmem:[%s259 + $0x1c4] sm:$0xf]
      %v635 = vld [vmem:[%s259 + $0x1c8] sm:$0xf]
      %v636 = vld [vmem:[%s259 + $0x1cc] sm:$0xf]
      %v637 = vld [vmem:[%s259 + $0x1d0] sm:$0xf]
      %v638 = vld [vmem:[%s259 + $0x1d4] sm:$0xf]
      %v639 = vld [vmem:[%s259 + $0x1d8] sm:$0xf]
      %v640 = vld [vmem:[%s259 + $0x1dc] sm:$0xf]
      %v641 = vld [vmem:[%s259 + $0x1e0] sm:$0xf]
      %v642 = vld [vmem:[%s259 + $0x1e4] sm:$0xf]
      %v643 = vld [vmem:[%s259 + $0x1e8] sm:$0xf]
      %v644 = vld [vmem:[%s259 + $0x1ec] sm:$0xf]
      %v645 = vld [vmem:[%s259 + $0x1f0] sm:$0xf]
      %v646 = vld [vmem:[%s259 + $0x1f4] sm:$0xf]
      %v647 = vld [vmem:[%s259 + $0x1f8] sm:$0xf]
      %v648 = vld [vmem:[%s259 + $0x1fc] sm:$0xf]
      %v649 = vld [vmem:[%s259 + $0x200] sm:$0xf]
      %v650 = vld [vmem:[%s259 + $0x204] sm:$0xf]
      %v651 = vld [vmem:[%s259 + $0x208] sm:$0xf]
      %v652 = vld [vmem:[%s259 + $0x20c] sm:$0xf]
      %v653 = vld [vmem:[%s259 + $0x210] sm:$0xf]
      %v654 = vld [vmem:[%s259 + $0x214] sm:$0xf]
      %v655 = vld [vmem:[%s259 + $0x218] sm:$0xf]
      %v656 = vld [vmem:[%s259 + $0x21c] sm:$0xf]
      %v657 = vld [vmem:[%s259 + $0x220] sm:$0xf]
      %v658 = vld [vmem:[%s259 + $0x224] sm:$0xf]
      %v659 = vld [vmem:[%s259 + $0x228] sm:$0xf]
      %v660 = vld [vmem:[%s259 + $0x22c] sm:$0xf]
      %v661 = vld [vmem:[%s259 + $0x230] sm:$0xf]
      %v662 = vld [vmem:[%s259 + $0x234] sm:$0xf]
      %v663 = vld [vmem:[%s259 + $0x238] sm:$0xf]
      %v664 = vld [vmem:[%s259 + $0x23c] sm:$0xf]
      %v665 = vld [vmem:[%s259 + $0x240] sm:$0xf]
      %v666 = vld [vmem:[%s259 + $0x244] sm:$0xf]
      %v667 = vld [vmem:[%s259 + $0x248] sm:$0xf]
      %v668 = vld [vmem:[%s259 + $0x24c] sm:$0xf]
      %v669 = vld [vmem:[%s259 + $0x250] sm:$0xf]
      %v670 = vld [vmem:[%s259 + $0x254] sm:$0xf]
      %v671 = vld [vmem:[%s259 + $0x258] sm:$0xf]
      %v672 = vld [vmem:[%s259 + $0x25c] sm:$0xf]
      %v673 = vld [vmem:[%s259 + $0x260] sm:$0xf]
      %v674 = vld [vmem:[%s259 + $0x264] sm:$0xf]
      %v675 = vld [vmem:[%s259 + $0x268] sm:$0xf]
      %v676 = vld [vmem:[%s259 + $0x26c] sm:$0xf]
      %v677 = vld [vmem:[%s259 + $0x270] sm:$0xf]
      %v678 = vld [vmem:[%s259 + $0x274] sm:$0xf]
      %v679 = vld [vmem:[%s259 + $0x278] sm:$0xf]
      %v680 = vld [vmem:[%s259 + $0x27c] sm:$0xf]
      %v681 = vld [vmem:[%s259 + $0x280] sm:$0xf]
      %v682 = vld [vmem:[%s259 + $0x284] sm:$0xf]
      %v683 = vld [vmem:[%s259 + $0x288] sm:$0xf]
      %v684 = vld [vmem:[%s259 + $0x28c] sm:$0xf]
      %v685 = vld [vmem:[%s259 + $0x290] sm:$0xf]
      %v686 = vld [vmem:[%s259 + $0x294] sm:$0xf]
      %v687 = vld [vmem:[%s259 + $0x298] sm:$0xf]
      %v688 = vld [vmem:[%s259 + $0x29c] sm:$0xf]
      %v689 = vld [vmem:[%s259 + $0x2a0] sm:$0xf]
      %v690 = vld [vmem:[%s259 + $0x2a4] sm:$0xf]
      %v691 = vld [vmem:[%s259 + $0x2a8] sm:$0xf]
      %v692 = vld [vmem:[%s259 + $0x2ac] sm:$0xf]
      %v693 = vld [vmem:[%s259 + $0x2b0] sm:$0xf]
      %v694 = vld [vmem:[%s259 + $0x2b4] sm:$0xf]
      %v695 = vld [vmem:[%s259 + $0x2b8] sm:$0xf]
      %v696 = vld [vmem:[%s259 + $0x2bc] sm:$0xf]
      %v697 = vld [vmem:[%s259 + $0x2c0] sm:$0xf]
      %v698 = vld [vmem:[%s259 + $0x2c4] sm:$0xf]
      %v699 = vld [vmem:[%s259 + $0x2c8] sm:$0xf]
      %v700 = vld [vmem:[%s259 + $0x2cc] sm:$0xf]
      %v701 = vld [vmem:[%s259 + $0x2d0] sm:$0xf]
      %v702 = vld [vmem:[%s259 + $0x2d4] sm:$0xf]
      %v703 = vld [vmem:[%s259 + $0x2d8] sm:$0xf]
      %v704 = vld [vmem:[%s259 + $0x2dc] sm:$0xf]
      %v705 = vld [vmem:[%s259 + $0x2e0] sm:$0xf]
      %v706 = vld [vmem:[%s259 + $0x2e4] sm:$0xf]
      %v707 = vld [vmem:[%s259 + $0x2e8] sm:$0xf]
      %v708 = vld [vmem:[%s259 + $0x2ec] sm:$0xf]
      %v709 = vld [vmem:[%s259 + $0x2f0] sm:$0xf]
      %v710 = vld [vmem:[%s259 + $0x2f4] sm:$0xf]
      %v711 = vld [vmem:[%s259 + $0x2f8] sm:$0xf]
      %v712 = vld [vmem:[%s259 + $0x2fc] sm:$0xf]
      %v713 = vld [vmem:[%s259 + $0x300] sm:$0xf]
      %v714 = vld [vmem:[%s259 + $0x304] sm:$0xf]
      %v715 = vld [vmem:[%s259 + $0x308] sm:$0xf]
      %v716 = vld [vmem:[%s259 + $0x30c] sm:$0xf]
      %v717 = vld [vmem:[%s259 + $0x310] sm:$0xf]
      %v718 = vld [vmem:[%s259 + $0x314] sm:$0xf]
      %v719 = vld [vmem:[%s259 + $0x318] sm:$0xf]
      %v720 = vld [vmem:[%s259 + $0x31c] sm:$0xf]
      %v721 = vld [vmem:[%s259 + $0x320] sm:$0xf]
      %v722 = vld [vmem:[%s259 + $0x324] sm:$0xf]
      %v723 = vld [vmem:[%s259 + $0x328] sm:$0xf]
      %v724 = vld [vmem:[%s259 + $0x32c] sm:$0xf]
      %v725 = vld [vmem:[%s259 + $0x330] sm:$0xf]
      %v726 = vld [vmem:[%s259 + $0x334] sm:$0xf]
      %v727 = vld [vmem:[%s259 + $0x338] sm:$0xf]
      %v728 = vld [vmem:[%s259 + $0x33c] sm:$0xf]
      %v729 = vld [vmem:[%s259 + $0x340] sm:$0xf]
      %v730 = vld [vmem:[%s259 + $0x344] sm:$0xf]
      %v731 = vld [vmem:[%s259 + $0x348] sm:$0xf]
      %v732 = vld [vmem:[%s259 + $0x34c] sm:$0xf]
      %v733 = vld [vmem:[%s259 + $0x350] sm:$0xf]
      %v734 = vld [vmem:[%s259 + $0x354] sm:$0xf]
      %v735 = vld [vmem:[%s259 + $0x358] sm:$0xf]
      %v736 = vld [vmem:[%s259 + $0x35c] sm:$0xf]
      %v737 = vld [vmem:[%s259 + $0x360] sm:$0xf]
      %v738 = vld [vmem:[%s259 + $0x364] sm:$0xf]
      %v739 = vld [vmem:[%s259 + $0x368] sm:$0xf]
      %v740 = vld [vmem:[%s259 + $0x36c] sm:$0xf]
      %v741 = vld [vmem:[%s259 + $0x370] sm:$0xf]
      %v742 = vld [vmem:[%s259 + $0x374] sm:$0xf]
      %v743 = vld [vmem:[%s259 + $0x378] sm:$0xf]
      %v744 = vld [vmem:[%s259 + $0x37c] sm:$0xf]
      %v745 = vld [vmem:[%s259 + $0x380] sm:$0xf]
      %v746 = vld [vmem:[%s259 + $0x384] sm:$0xf]
      %v747 = vld [vmem:[%s259 + $0x388] sm:$0xf]
      %v748 = vld [vmem:[%s259 + $0x38c] sm:$0xf]
      %v749 = vld [vmem:[%s259 + $0x390] sm:$0xf]
      %v750 = vld [vmem:[%s259 + $0x394] sm:$0xf]
      %v751 = vld [vmem:[%s259 + $0x398] sm:$0xf]
      %v752 = vld [vmem:[%s259 + $0x39c] sm:$0xf]
      %v753 = vld [vmem:[%s259 + $0x3a0] sm:$0xf]
      %v754 = vld [vmem:[%s259 + $0x3a4] sm:$0xf]
      %v755 = vld [vmem:[%s259 + $0x3a8] sm:$0xf]
      %v756 = vld [vmem:[%s259 + $0x3ac] sm:$0xf]
      %v757 = vld [vmem:[%s259 + $0x3b0] sm:$0xf]
      %v758 = vld [vmem:[%s259 + $0x3b4] sm:$0xf]
      %v759 = vld [vmem:[%s259 + $0x3b8] sm:$0xf]
      %v760 = vld [vmem:[%s259 + $0x3bc] sm:$0xf]
      %v761 = vld [vmem:[%s259 + $0x3c0] sm:$0xf]
      %v762 = vld [vmem:[%s259 + $0x3c4] sm:$0xf]
      %v763 = vld [vmem:[#allocation2] sm:$0xff]
      %v764 = vld [vmem:[#allocation2 + $0x8] sm:$0xff]
      %v765 = vld [vmem:[#allocation2 + $0x10] sm:$0xff]
      %v766 = vld [vmem:[#allocation2 + $0x18] sm:$0xff]
      %v767 = vld [vmem:[#allocation2 + $0x20] sm:$0xff]
      %v768 = vld [vmem:[#allocation2 + $0x28] sm:$0xff]
      %v769 = vld [vmem:[#allocation2 + $0x30] sm:$0xff]
      %v770 = vld [vmem:[#allocation2 + $0x38] sm:$0xff]
      %v771 = vld [vmem:[#allocation2 + $0x40] sm:$0xff]
      %v772 = vld [vmem:[#allocation2 + $0x48] sm:$0xff]
      %v773 = vld [vmem:[#allocation2 + $0x50] sm:$0xff]
      %v774 = vld [vmem:[#allocation2 + $0x58] sm:$0xff]
      %v775 = vld [vmem:[#allocation2 + $0x60] sm:$0xff]
      %v776 = vld [vmem:[#allocation2 + $0x68] sm:$0xff]
      %v777 = vld [vmem:[#allocation2 + $0x70] sm:$0xff]
      %v778 = vld [vmem:[#allocation2 + $0x78] sm:$0xff]
      %v779 = vld [vmem:[#allocation2 + $0x80] sm:$0xff]
      %v780 = vld [vmem:[#allocation2 + $0x88] sm:$0xff]
      %v781 = vld [vmem:[#allocation2 + $0x90] sm:$0xff]
      %v782 = vld [vmem:[#allocation2 + $0x98] sm:$0xff]
      %v783 = vld [vmem:[#allocation2 + $0xa0] sm:$0xff]
      %v784 = vld [vmem:[#allocation2 + $0xa8] sm:$0xff]
      %v785 = vld [vmem:[#allocation2 + $0xb0] sm:$0xff]
      %v786 = vld [vmem:[#allocation2 + $0xb8] sm:$0xff]
      %v787 = vld [vmem:[#allocation2 + $0xc0] sm:$0xff]
      %v788 = vld [vmem:[#allocation2 + $0xc8] sm:$0xff]
      %v789 = vld [vmem:[#allocation2 + $0xd0] sm:$0xff]
      %v790 = vld [vmem:[#allocation2 + $0xd8] sm:$0xff]
      %v791 = vld [vmem:[#allocation2 + $0xe0] sm:$0xff]
      %v792 = vld [vmem:[#allocation2 + $0xe8] sm:$0xff]
      %v793 = vld [vmem:[#allocation2 + $0xf0] sm:$0xff]
      %v794 = vld [vmem:[#allocation2 + $0xf8] sm:$0xff]
      %v795 = vld [vmem:[#allocation2 + $0x100] sm:$0xff]
      %v796 = vld [vmem:[#allocation2 + $0x108] sm:$0xff]
      %v797 = vld [vmem:[#allocation2 + $0x110] sm:$0xff]
      %v798 = vld [vmem:[#allocation2 + $0x118] sm:$0xff]
      %v799 = vld [vmem:[#allocation2 + $0x120] sm:$0xff]
      %v800 = vld [vmem:[#allocation2 + $0x128] sm:$0xff]
      %v801 = vld [vmem:[#allocation2 + $0x130] sm:$0xff]
      %v802 = vld [vmem:[#allocation2 + $0x138] sm:$0xff]
      %v803 = vld [vmem:[#allocation2 + $0x140] sm:$0xff]
      %v804 = vld [vmem:[#allocation2 + $0x148] sm:$0xff]
      %v805 = vld [vmem:[#allocation2 + $0x150] sm:$0xff]
      %v806 = vld [vmem:[#allocation2 + $0x158] sm:$0xff]
      %v807 = vld [vmem:[#allocation2 + $0x160] sm:$0xff]
      %v808 = vld [vmem:[#allocation2 + $0x168] sm:$0xff]
      %v809 = vld [vmem:[#allocation2 + $0x170] sm:$0xff]
      %v810 = vld [vmem:[#allocation2 + $0x178] sm:$0xff]
      %v811 = vld [vmem:[#allocation2 + $0x180] sm:$0xff]
      %v812 = vld [vmem:[#allocation2 + $0x188] sm:$0xff]
      %v813 = vld [vmem:[#allocation2 + $0x190] sm:$0xff]
      %v814 = vld [vmem:[#allocation2 + $0x198] sm:$0xff]
      %v815 = vld [vmem:[#allocation2 + $0x1a0] sm:$0xff]
      %v816 = vld [vmem:[#allocation2 + $0x1a8] sm:$0xff]
      %v817 = vld [vmem:[#allocation2 + $0x1b0] sm:$0xff]
      %v818 = vld [vmem:[#allocation2 + $0x1b8] sm:$0xff]
      %v819 = vld [vmem:[#allocation2 + $0x1c0] sm:$0xff]
      %v820 = vld [vmem:[#allocation2 + $0x1c8] sm:$0xff]
      %v821 = vld [vmem:[#allocation2 + $0x1d0] sm:$0xff]
      %v822 = vld [vmem:[#allocation2 + $0x1d8] sm:$0xff]
      %v823 = vld [vmem:[#allocation2 + $0x1e0] sm:$0xff]
      %v824 = vld [vmem:[#allocation2 + $0x1e8] sm:$0xff]
      %v825 = vld [vmem:[#allocation2 + $0x1f0] sm:$0xff]
      %v826 = vld [vmem:[#allocation2 + $0x1f8] sm:$0xff]
      %v827 = vld [vmem:[#allocation2 + $0x200] sm:$0xff]
      %v828 = vld [vmem:[#allocation2 + $0x208] sm:$0xff]
      %v829 = vld [vmem:[#allocation2 + $0x210] sm:$0xff]
      %v830 = vld [vmem:[#allocation2 + $0x218] sm:$0xff]
      %v831 = vld [vmem:[#allocation2 + $0x220] sm:$0xff]
      %v832 = vld [vmem:[#allocation2 + $0x228] sm:$0xff]
      %v833 = vld [vmem:[#allocation2 + $0x230] sm:$0xff]
      %v834 = vld [vmem:[#allocation2 + $0x238] sm:$0xff]
      %v835 = vld [vmem:[#allocation2 + $0x240] sm:$0xff]
      %v836 = vld [vmem:[#allocation2 + $0x248] sm:$0xff]
      %v837 = vld [vmem:[#allocation2 + $0x250] sm:$0xff]
      %v838 = vld [vmem:[#allocation2 + $0x258] sm:$0xff]
      %v839 = vld [vmem:[#allocation2 + $0x260] sm:$0xff]
      %v840 = vld [vmem:[#allocation2 + $0x268] sm:$0xff]
      %v841 = vld [vmem:[#allocation2 + $0x270] sm:$0xff]
      %v842 = vld [vmem:[#allocation2 + $0x278] sm:$0xff]
      %v843 = vld [vmem:[#allocation2 + $0x280] sm:$0xff]
      %v844 = vld [vmem:[#allocation2 + $0x288] sm:$0xff]
      %v845 = vld [vmem:[#allocation2 + $0x290] sm:$0xff]
      %v846 = vld [vmem:[#allocation2 + $0x298] sm:$0xff]
      %v847 = vld [vmem:[#allocation2 + $0x2a0] sm:$0xff]
      %v848 = vld [vmem:[#allocation2 + $0x2a8] sm:$0xff]
      %v849 = vld [vmem:[#allocation2 + $0x2b0] sm:$0xff]
      %v850 = vld [vmem:[#allocation2 + $0x2b8] sm:$0xff]
      %v851 = vld [vmem:[#allocation2 + $0x2c0] sm:$0xff]
      %v852 = vld [vmem:[#allocation2 + $0x2c8] sm:$0xff]
      %v853 = vld [vmem:[#allocation2 + $0x2d0] sm:$0xff]
      %v854 = vld [vmem:[#allocation2 + $0x2d8] sm:$0xff]
      %v855 = vld [vmem:[#allocation2 + $0x2e0] sm:$0xff]
      %v856 = vld [vmem:[#allocation2 + $0x2e8] sm:$0xff]
      %v857 = vld [vmem:[#allocation2 + $0x2f0] sm:$0xff]
      %v858 = vld [vmem:[#allocation2 + $0x2f8] sm:$0xff]
      %v859 = vld [vmem:[#allocation2 + $0x300] sm:$0xff]
      %v860 = vld [vmem:[#allocation2 + $0x308] sm:$0xff]
      %v861 = vld [vmem:[#allocation2 + $0x310] sm:$0xff]
      %v862 = vld [vmem:[#allocation2 + $0x318] sm:$0xff]
      %v863 = vld [vmem:[#allocation2 + $0x320] sm:$0xff]
      %v864 = vld [vmem:[#allocation2 + $0x328] sm:$0xff]
      %v865 = vld [vmem:[#allocation2 + $0x330] sm:$0xff]
      %v866 = vld [vmem:[#allocation2 + $0x338] sm:$0xff]
      %v867 = vld [vmem:[#allocation2 + $0x340] sm:$0xff]
      %v868 = vld [vmem:[#allocation2 + $0x348] sm:$0xff]
      %v869 = vld [vmem:[#allocation2 + $0x350] sm:$0xff]
      %v870 = vld [vmem:[#allocation2 + $0x358] sm:$0xff]
      %v871 = vld [vmem:[#allocation2 + $0x360] sm:$0xff]
      %v872 = vld [vmem:[#allocation2 + $0x368] sm:$0xff]
      %v873 = vld [vmem:[#allocation2 + $0x370] sm:$0xff]
      %v874 = vld [vmem:[#allocation2 + $0x378] sm:$0xff]
      %v875 = vld [vmem:[#allocation2 + $0x380] sm:$0xff]
      %v876 = vld [vmem:[#allocation2 + $0x388] sm:$0xff]
      %v877 = vld [vmem:[#allocation2 + $0x390] sm:$0xff]
      %v878 = vld [vmem:[#allocation2 + $0x398] sm:$0xff]
      %v879 = vld [vmem:[#allocation2 + $0x3a0] sm:$0xff]
      %v880 = vld [vmem:[#allocation2 + $0x3a8] sm:$0xff]
      %v881 = vld [vmem:[#allocation2 + $0x3b0] sm:$0xff]
      %v882 = vld [vmem:[#allocation2 + $0x3b8] sm:$0xff]
      %v883 = vld [vmem:[#allocation2 + $0x3c0] sm:$0xff]
      %v884 = vld [vmem:[#allocation2 + $0x3c8] sm:$0xff]
      %v885 = vld [vmem:[#allocation2 + $0x3d0] sm:$0xff]
      %v886 = vld [vmem:[#allocation2 + $0x3d8] sm:$0xff]
      %v887 = vld [vmem:[#allocation2 + $0x3e0] sm:$0xff]
      %v888 = vld [vmem:[#allocation2 + $0x3e8] sm:$0xff]
      %v889 = vld [vmem:[#allocation2 + $0x3f0] sm:$0xff]
      %v890 = vld [vmem:[#allocation2 + $0x3f8] sm:$0xff]
      %v891 = vld [vmem:[#allocation2 + $0x400] sm:$0xff]
      %v892 = vld [vmem:[#allocation2 + $0x408] sm:$0xff]
      %v893 = vld [vmem:[#allocation2 + $0x410] sm:$0xff]
      %v894 = vld [vmem:[#allocation2 + $0x418] sm:$0xff]
      %v895 = vld [vmem:[#allocation2 + $0x420] sm:$0xff]
      %v896 = vld [vmem:[#allocation2 + $0x428] sm:$0xff]
      %v897 = vld [vmem:[#allocation2 + $0x430] sm:$0xff]
      %v898 = vld [vmem:[#allocation2 + $0x438] sm:$0xff]
      %v899 = vld [vmem:[#allocation2 + $0x440] sm:$0xff]
      %v900 = vld [vmem:[#allocation2 + $0x448] sm:$0xff]
      %v901 = vld [vmem:[#allocation2 + $0x450] sm:$0xff]
      %v902 = vld [vmem:[#allocation2 + $0x458] sm:$0xff]
      %v903 = vld [vmem:[#allocation2 + $0x460] sm:$0xff]
      %v904 = vld [vmem:[#allocation2 + $0x468] sm:$0xff]
      %v905 = vld [vmem:[#allocation2 + $0x470] sm:$0xff]
      %v906 = vld [vmem:[#allocation2 + $0x478] sm:$0xff]
      %v907 = vld [vmem:[#allocation2 + $0x480] sm:$0xff]
      %v908 = vld [vmem:[#allocation2 + $0x488] sm:$0xff]
      %v909 = vld [vmem:[#allocation2 + $0x490] sm:$0xff]
      %v910 = vld [vmem:[#allocation2 + $0x498] sm:$0xff]
      %v911 = vld [vmem:[#allocation2 + $0x4a0] sm:$0xff]
      %v912 = vld [vmem:[#allocation2 + $0x4a8] sm:$0xff]
      %v913 = vld [vmem:[#allocation2 + $0x4b0] sm:$0xff]
      %v914 = vld [vmem:[#allocation2 + $0x4b8] sm:$0xff]
      %v915 = vld [vmem:[#allocation2 + $0x4c0] sm:$0xff]
      %v916 = vld [vmem:[#allocation2 + $0x4c8] sm:$0xff]
      %v917 = vld [vmem:[#allocation2 + $0x4d0] sm:$0xff]
      %v918 = vld [vmem:[#allocation2 + $0x4d8] sm:$0xff]
      %v919 = vld [vmem:[#allocation2 + $0x4e0] sm:$0xff]
      %v920 = vld [vmem:[#allocation2 + $0x4e8] sm:$0xff]
      %v921 = vld [vmem:[#allocation2 + $0x4f0] sm:$0xff]
      %v922 = vld [vmem:[#allocation2 + $0x4f8] sm:$0xff]
      %v923 = vld [vmem:[#allocation2 + $0x500] sm:$0xff]
      %v924 = vld [vmem:[#allocation2 + $0x508] sm:$0xff]
      %v925 = vld [vmem:[#allocation2 + $0x510] sm:$0xff]
      %v926 = vld [vmem:[#allocation2 + $0x518] sm:$0xff]
      %v927 = vld [vmem:[#allocation2 + $0x520] sm:$0xff]
      %v928 = vld [vmem:[#allocation2 + $0x528] sm:$0xff]
      %v929 = vld [vmem:[#allocation2 + $0x530] sm:$0xff]
      %v930 = vld [vmem:[#allocation2 + $0x538] sm:$0xff]
      %v931 = vld [vmem:[#allocation2 + $0x540] sm:$0xff]
      %v932 = vld [vmem:[#allocation2 + $0x548] sm:$0xff]
      %v933 = vld [vmem:[#allocation2 + $0x550] sm:$0xff]
      %v934 = vld [vmem:[#allocation2 + $0x558] sm:$0xff]
      %v935 = vld [vmem:[#allocation2 + $0x560] sm:$0xff]
      %v936 = vld [vmem:[#allocation2 + $0x568] sm:$0xff]
      %v937 = vld [vmem:[#allocation2 + $0x570] sm:$0xff]
      %v938 = vld [vmem:[#allocation2 + $0x578] sm:$0xff]
      %v939 = vld [vmem:[#allocation2 + $0x580] sm:$0xff]
      %v940 = vld [vmem:[#allocation2 + $0x588] sm:$0xff]
      %v941 = vld [vmem:[#allocation2 + $0x590] sm:$0xff]
      %v942 = vld [vmem:[#allocation2 + $0x598] sm:$0xff]
      %v943 = vld [vmem:[#allocation2 + $0x5a0] sm:$0xff]
      %v944 = vld [vmem:[#allocation2 + $0x5a8] sm:$0xff]
      %v945 = vld [vmem:[#allocation2 + $0x5b0] sm:$0xff]
      %v946 = vld [vmem:[#allocation2 + $0x5b8] sm:$0xff]
      %v947 = vld [vmem:[#allocation2 + $0x5c0] sm:$0xff]
      %v948 = vld [vmem:[#allocation2 + $0x5c8] sm:$0xff]
      %v949 = vld [vmem:[#allocation2 + $0x5d0] sm:$0xff]
      %v950 = vld [vmem:[#allocation2 + $0x5d8] sm:$0xff]
      %v951 = vld [vmem:[#allocation2 + $0x5e0] sm:$0xff]
      %v952 = vld [vmem:[#allocation2 + $0x5e8] sm:$0xff]
      %v953 = vld [vmem:[#allocation2 + $0x5f0] sm:$0xff]
      %v954 = vld [vmem:[#allocation2 + $0x5f8] sm:$0xff]
      %v955 = vld [vmem:[#allocation2 + $0x600] sm:$0xff]
      %v956 = vld [vmem:[#allocation2 + $0x608] sm:$0xff]
      %v957 = vld [vmem:[#allocation2 + $0x610] sm:$0xff]
      %v958 = vld [vmem:[#allocation2 + $0x618] sm:$0xff]
      %v959 = vld [vmem:[#allocation2 + $0x620] sm:$0xff]
      %v960 = vld [vmem:[#allocation2 + $0x628] sm:$0xff]
      %v961 = vld [vmem:[#allocation2 + $0x630] sm:$0xff]
      %v962 = vld [vmem:[#allocation2 + $0x638] sm:$0xff]
      %v963 = vld [vmem:[#allocation2 + $0x640] sm:$0xff]
      %v964 = vld [vmem:[#allocation2 + $0x648] sm:$0xff]
      %v965 = vld [vmem:[#allocation2 + $0x650] sm:$0xff]
      %v966 = vld [vmem:[#allocation2 + $0x658] sm:$0xff]
      %v967 = vld [vmem:[#allocation2 + $0x660] sm:$0xff]
      %v968 = vld [vmem:[#allocation2 + $0x668] sm:$0xff]
      %v969 = vld [vmem:[#allocation2 + $0x670] sm:$0xff]
      %v970 = vld [vmem:[#allocation2 + $0x678] sm:$0xff]
      %v971 = vld [vmem:[#allocation2 + $0x680] sm:$0xff]
      %v972 = vld [vmem:[#allocation2 + $0x688] sm:$0xff]
      %v973 = vld [vmem:[#allocation2 + $0x690] sm:$0xff]
      %v974 = vld [vmem:[#allocation2 + $0x698] sm:$0xff]
      %v975 = vld [vmem:[#allocation2 + $0x6a0] sm:$0xff]
      %v976 = vld [vmem:[#allocation2 + $0x6a8] sm:$0xff]
      %v977 = vld [vmem:[#allocation2 + $0x6b0] sm:$0xff]
      %v978 = vld [vmem:[#allocation2 + $0x6b8] sm:$0xff]
      %v979 = vld [vmem:[#allocation2 + $0x6c0] sm:$0xff]
      %v980 = vld [vmem:[#allocation2 + $0x6c8] sm:$0xff]
      %v981 = vld [vmem:[#allocation2 + $0x6d0] sm:$0xff]
      %v982 = vld [vmem:[#allocation2 + $0x6d8] sm:$0xff]
      %v983 = vld [vmem:[#allocation2 + $0x6e0] sm:$0xff]
      %v984 = vld [vmem:[#allocation2 + $0x6e8] sm:$0xff]
      %v985 = vld [vmem:[#allocation2 + $0x6f0] sm:$0xff]
      %v986 = vld [vmem:[#allocation2 + $0x6f8] sm:$0xff]
      %v987 = vld [vmem:[#allocation2 + $0x700] sm:$0xff]
      %v988 = vld [vmem:[#allocation2 + $0x708] sm:$0xff]
      %v989 = vld [vmem:[#allocation2 + $0x710] sm:$0xff]
      %v990 = vld [vmem:[#allocation2 + $0x718] sm:$0xff]
      %v991 = vld [vmem:[#allocation2 + $0x720] sm:$0xff]
      %v992 = vld [vmem:[#allocation2 + $0x728] sm:$0xff]
      %v993 = vld [vmem:[#allocation2 + $0x730] sm:$0xff]
      %v994 = vld [vmem:[#allocation2 + $0x738] sm:$0xff]
      %v995 = vld [vmem:[#allocation2 + $0x740] sm:$0xff]
      %v996 = vld [vmem:[#allocation2 + $0x748] sm:$0xff]
      %v997 = vld [vmem:[#allocation2 + $0x750] sm:$0xff]
      %v998 = vld [vmem:[#allocation2 + $0x758] sm:$0xff]
      %v999 = vld [vmem:[#allocation2 + $0x760] sm:$0xff]
      %v1000 = vld [vmem:[#allocation2 + $0x768] sm:$0xff]
      %v1001 = vld [vmem:[#allocation2 + $0x770] sm:$0xff]
      %v1002 = vld [vmem:[#allocation2 + $0x778] sm:$0xff]
      %v1003 = vld [vmem:[#allocation2 + $0x780] sm:$0xff]
      %v1004 = vld [vmem:[#allocation2 + $0x788] sm:$0xff]
      %v1005 = vld [vmem:[%s265] sm:$0xf]
      %v1006 = vld [vmem:[%s265 + $0x4] sm:$0xf]
      %v1007 = vld [vmem:[%s265 + $0x8] sm:$0xf]
      %v1008 = vld [vmem:[%s265 + $0xc] sm:$0x3]
      %v1251 = vunpack.c.l.b16 %v521
      %v1252 = vunpack.c.l.b16 %v522
      %v1253 = vunpack.c.l.b16 %v523
      %v1254 = vunpack.c.l.b16 %v524
      %v1255 = vunpack.c.l.b16 %v525
      %v1256 = vunpack.c.l.b16 %v526
      %v1257 = vunpack.c.l.b16 %v527
      %v1258 = vunpack.c.l.b16 %v528
      %v1259 = vunpack.c.l.b16 %v529
      %v1260 = vunpack.c.l.b16 %v530
      %v1261 = vunpack.c.l.b16 %v531
      %v1262 = vunpack.c.l.b16 %v532
      %v1263 = vunpack.c.l.b16 %v533
      %v1264 = vunpack.c.l.b16 %v534
      %v1265 = vunpack.c.l.b16 %v535
      %v1266 = vunpack.c.l.b16 %v536
      %v1267 = vunpack.c.l.b16 %v537
      %v1268 = vunpack.c.l.b16 %v538
      %v1269 = vunpack.c.l.b16 %v539
      %v1270 = vunpack.c.l.b16 %v540
      %v1271 = vunpack.c.l.b16 %v541
      %v1272 = vunpack.c.l.b16 %v542
      %v1273 = vunpack.c.l.b16 %v543
      %v1274 = vunpack.c.l.b16 %v544
      %v1275 = vunpack.c.l.b16 %v545
      %v1276 = vunpack.c.l.b16 %v546
      %v1277 = vunpack.c.l.b16 %v547
      %v1278 = vunpack.c.l.b16 %v548
      %v1279 = vunpack.c.l.b16 %v549
      %v1280 = vunpack.c.l.b16 %v550
      %v1281 = vunpack.c.l.b16 %v551
      %v1282 = vunpack.c.l.b16 %v552
      %v1283 = vunpack.c.l.b16 %v553
      %v1284 = vunpack.c.l.b16 %v554
      %v1285 = vunpack.c.l.b16 %v555
      %v1286 = vunpack.c.l.b16 %v556
      %v1287 = vunpack.c.l.b16 %v557
      %v1288 = vunpack.c.l.b16 %v558
      %v1289 = vunpack.c.l.b16 %v559
      %v1290 = vunpack.c.l.b16 %v560
      %v1291 = vunpack.c.l.b16 %v561
      %v1292 = vunpack.c.l.b16 %v562
      %v1293 = vunpack.c.l.b16 %v563
      %v1294 = vunpack.c.l.b16 %v564
      %v1295 = vunpack.c.l.b16 %v565
      %v1296 = vunpack.c.l.b16 %v566
      %v1297 = vunpack.c.l.b16 %v567
      %v1298 = vunpack.c.l.b16 %v568
      %v1299 = vunpack.c.l.b16 %v569
      %v1300 = vunpack.c.l.b16 %v570
      %v1301 = vunpack.c.l.b16 %v571
      %v1302 = vunpack.c.l.b16 %v572
      %v1303 = vunpack.c.l.b16 %v573
      %v1304 = vunpack.c.l.b16 %v574
      %v1305 = vunpack.c.l.b16 %v575
      %v1306 = vunpack.c.l.b16 %v576
      %v1307 = vunpack.c.l.b16 %v577
      %v1308 = vunpack.c.l.b16 %v578
      %v1309 = vunpack.c.l.b16 %v579
      %v1310 = vunpack.c.l.b16 %v580
      %v1311 = vunpack.c.l.b16 %v581
      %v1312 = vunpack.c.l.b16 %v582
      %v1313 = vunpack.c.l.b16 %v583
      %v1314 = vunpack.c.l.b16 %v584
      %v1315 = vunpack.c.l.b16 %v585
      %v1316 = vunpack.c.l.b16 %v586
      %v1317 = vunpack.c.l.b16 %v587
      %v1318 = vunpack.c.l.b16 %v588
      %v1319 = vunpack.c.l.b16 %v589
      %v1320 = vunpack.c.l.b16 %v590
      %v1321 = vunpack.c.l.b16 %v591
      %v1322 = vunpack.c.l.b16 %v592
      %v1323 = vunpack.c.l.b16 %v593
      %v1324 = vunpack.c.l.b16 %v594
      %v1325 = vunpack.c.l.b16 %v595
      %v1326 = vunpack.c.l.b16 %v596
      %v1327 = vunpack.c.l.b16 %v597
      %v1328 = vunpack.c.l.b16 %v598
      %v1329 = vunpack.c.l.b16 %v599
      %v1330 = vunpack.c.l.b16 %v600
      %v1331 = vunpack.c.l.b16 %v601
      %v1332 = vunpack.c.l.b16 %v602
      %v1333 = vunpack.c.l.b16 %v603
      %v1334 = vunpack.c.l.b16 %v604
      %v1335 = vunpack.c.l.b16 %v605
      %v1336 = vunpack.c.l.b16 %v606
      %v1337 = vunpack.c.l.b16 %v607
      %v1338 = vunpack.c.l.b16 %v608
      %v1339 = vunpack.c.l.b16 %v609
      %v1340 = vunpack.c.l.b16 %v610
      %v1341 = vunpack.c.l.b16 %v611
      %v1342 = vunpack.c.l.b16 %v612
      %v1343 = vunpack.c.l.b16 %v613
      %v1344 = vunpack.c.l.b16 %v614
      %v1345 = vunpack.c.l.b16 %v615
      %v1346 = vunpack.c.l.b16 %v616
      %v1347 = vunpack.c.l.b16 %v617
      %v1348 = vunpack.c.l.b16 %v618
      %v1349 = vunpack.c.l.b16 %v619
      %v1350 = vunpack.c.l.b16 %v620
      %v1351 = vunpack.c.l.b16 %v621
      %v1352 = vunpack.c.l.b16 %v622
      %v1353 = vunpack.c.l.b16 %v623
      %v1354 = vunpack.c.l.b16 %v624
      %v1355 = vunpack.c.l.b16 %v625
      %v1356 = vunpack.c.l.b16 %v626
      %v1357 = vunpack.c.l.b16 %v627
      %v1358 = vunpack.c.l.b16 %v628
      %v1359 = vunpack.c.l.b16 %v629
      %v1360 = vunpack.c.l.b16 %v630
      %v1361 = vunpack.c.l.b16 %v631
      %v1362 = vunpack.c.l.b16 %v632
      %v1363 = vunpack.c.l.b16 %v633
      %v1364 = vunpack.c.l.b16 %v634
      %v1365 = vunpack.c.l.b16 %v635
      %v1366 = vunpack.c.l.b16 %v636
      %v1367 = vunpack.c.l.b16 %v637
      %v1368 = vunpack.c.l.b16 %v638
      %v1369 = vunpack.c.l.b16 %v639
      %v1370 = vunpack.c.l.b16 %v640
      %v1371 = vunpack.c.l.b16 %v641
      %v1372 = vunpack.c.l.b16 %v642
      %v1373 = vunpack.c.l.b16 %v643
      %v1374 = vunpack.c.l.b16 %v644
      %v1375 = vunpack.c.l.b16 %v645
      %v1376 = vunpack.c.l.b16 %v646
      %v1377 = vunpack.c.l.b16 %v647
      %v1378 = vunpack.c.l.b16 %v648
      %v1379 = vunpack.c.l.b16 %v649
      %v1380 = vunpack.c.l.b16 %v650
      %v1381 = vunpack.c.l.b16 %v651
      %v1382 = vunpack.c.l.b16 %v652
      %v1383 = vunpack.c.l.b16 %v653
      %v1384 = vunpack.c.l.b16 %v654
      %v1385 = vunpack.c.l.b16 %v655
      %v1386 = vunpack.c.l.b16 %v656
      %v1387 = vunpack.c.l.b16 %v657
      %v1388 = vunpack.c.l.b16 %v658
      %v1389 = vunpack.c.l.b16 %v659
      %v1390 = vunpack.c.l.b16 %v660
      %v1391 = vunpack.c.l.b16 %v661
      %v1392 = vunpack.c.l.b16 %v662
      %v1393 = vunpack.c.l.b16 %v663
      %v1394 = vunpack.c.l.b16 %v664
      %v1395 = vunpack.c.l.b16 %v665
      %v1396 = vunpack.c.l.b16 %v666
      %v1397 = vunpack.c.l.b16 %v667
      %v1398 = vunpack.c.l.b16 %v668
      %v1399 = vunpack.c.l.b16 %v669
      %v1400 = vunpack.c.l.b16 %v670
      %v1401 = vunpack.c.l.b16 %v671
      %v1402 = vunpack.c.l.b16 %v672
      %v1403 = vunpack.c.l.b16 %v673
      %v1404 = vunpack.c.l.b16 %v674
      %v1405 = vunpack.c.l.b16 %v675
      %v1406 = vunpack.c.l.b16 %v676
      %v1407 = vunpack.c.l.b16 %v677
      %v1408 = vunpack.c.l.b16 %v678
      %v1409 = vunpack.c.l.b16 %v679
      %v1410 = vunpack.c.l.b16 %v680
      %v1411 = vunpack.c.l.b16 %v681
      %v1412 = vunpack.c.l.b16 %v682
      %v1413 = vunpack.c.l.b16 %v683
      %v1414 = vunpack.c.l.b16 %v684
      %v1415 = vunpack.c.l.b16 %v685
      %v1416 = vunpack.c.l.b16 %v686
      %v1417 = vunpack.c.l.b16 %v687
      %v1418 = vunpack.c.l.b16 %v688
      %v1419 = vunpack.c.l.b16 %v689
      %v1420 = vunpack.c.l.b16 %v690
      %v1421 = vunpack.c.l.b16 %v691
      %v1422 = vunpack.c.l.b16 %v692
      %v1423 = vunpack.c.l.b16 %v693
      %v1424 = vunpack.c.l.b16 %v694
      %v1425 = vunpack.c.l.b16 %v695
      %v1426 = vunpack.c.l.b16 %v696
      %v1427 = vunpack.c.l.b16 %v697
      %v1428 = vunpack.c.l.b16 %v698
      %v1429 = vunpack.c.l.b16 %v699
      %v1430 = vunpack.c.l.b16 %v700
      %v1431 = vunpack.c.l.b16 %v701
      %v1432 = vunpack.c.l.b16 %v702
      %v1433 = vunpack.c.l.b16 %v703
      %v1434 = vunpack.c.l.b16 %v704
      %v1435 = vunpack.c.l.b16 %v705
      %v1436 = vunpack.c.l.b16 %v706
      %v1437 = vunpack.c.l.b16 %v707
      %v1438 = vunpack.c.l.b16 %v708
      %v1439 = vunpack.c.l.b16 %v709
      %v1440 = vunpack.c.l.b16 %v710
      %v1441 = vunpack.c.l.b16 %v711
      %v1442 = vunpack.c.l.b16 %v712
      %v1443 = vunpack.c.l.b16 %v713
      %v1444 = vunpack.c.l.b16 %v714
      %v1445 = vunpack.c.l.b16 %v715
      %v1446 = vunpack.c.l.b16 %v716
      %v1447 = vunpack.c.l.b16 %v717
      %v1448 = vunpack.c.l.b16 %v718
      %v1449 = vunpack.c.l.b16 %v719
      %v1450 = vunpack.c.l.b16 %v720
      %v1451 = vunpack.c.l.b16 %v721
      %v1452 = vunpack.c.l.b16 %v722
      %v1453 = vunpack.c.l.b16 %v723
      %v1454 = vunpack.c.l.b16 %v724
      %v1455 = vunpack.c.l.b16 %v725
      %v1456 = vunpack.c.l.b16 %v726
      %v1457 = vunpack.c.l.b16 %v727
      %v1458 = vunpack.c.l.b16 %v728
      %v1459 = vunpack.c.l.b16 %v729
      %v1460 = vunpack.c.l.b16 %v730
      %v1461 = vunpack.c.l.b16 %v731
      %v1462 = vunpack.c.l.b16 %v732
      %v1463 = vunpack.c.l.b16 %v733
      %v1464 = vunpack.c.l.b16 %v734
      %v1465 = vunpack.c.l.b16 %v735
      %v1466 = vunpack.c.l.b16 %v736
      %v1467 = vunpack.c.l.b16 %v737
      %v1468 = vunpack.c.l.b16 %v738
      %v1469 = vunpack.c.l.b16 %v739
      %v1470 = vunpack.c.l.b16 %v740
      %v1471 = vunpack.c.l.b16 %v741
      %v1472 = vunpack.c.l.b16 %v742
      %v1473 = vunpack.c.l.b16 %v743
      %v1474 = vunpack.c.l.b16 %v744
      %v1475 = vunpack.c.l.b16 %v745
      %v1476 = vunpack.c.l.b16 %v746
      %v1477 = vunpack.c.l.b16 %v747
      %v1478 = vunpack.c.l.b16 %v748
      %v1479 = vunpack.c.l.b16 %v749
      %v1480 = vunpack.c.l.b16 %v750
      %v1481 = vunpack.c.l.b16 %v751
      %v1482 = vunpack.c.l.b16 %v752
      %v1483 = vunpack.c.l.b16 %v753
      %v1484 = vunpack.c.l.b16 %v754
      %v1485 = vunpack.c.l.b16 %v755
      %v1486 = vunpack.c.l.b16 %v756
      %v1487 = vunpack.c.l.b16 %v757
      %v1488 = vunpack.c.l.b16 %v758
      %v1489 = vunpack.c.l.b16 %v759
      %v1490 = vunpack.c.l.b16 %v760
      %v1491 = vunpack.c.l.b16 %v761
      %v1492 = vunpack.c.l.b16 %v762
      %v1493 = vpack.c.b16 %v1252, %v1251
      %v1494 = vpack.c.b16 %v1254, %v1253
      %v1495 = vpack.c.b16 %v1256, %v1255
      %v1496 = vpack.c.b16 %v1258, %v1257
      %v1497 = vpack.c.b16 %v1260, %v1259
      %v1498 = vpack.c.b16 %v1262, %v1261
      %v1499 = vpack.c.b16 %v1264, %v1263
      %v1500 = vpack.c.b16 %v1266, %v1265
      %v1501 = vpack.c.b16 %v1268, %v1267
      %v1502 = vpack.c.b16 %v1270, %v1269
      %v1503 = vpack.c.b16 %v1272, %v1271
      %v1504 = vpack.c.b16 %v1274, %v1273
      %v1505 = vpack.c.b16 %v1276, %v1275
      %v1506 = vpack.c.b16 %v1278, %v1277
      %v1507 = vpack.c.b16 %v1280, %v1279
      %v1508 = vpack.c.b16 %v1282, %v1281
      %v1509 = vpack.c.b16 %v1284, %v1283
      %v1510 = vpack.c.b16 %v1286, %v1285
      %v1511 = vpack.c.b16 %v1288, %v1287
      %v1512 = vpack.c.b16 %v1290, %v1289
      %v1513 = vpack.c.b16 %v1292, %v1291
      %v1514 = vpack.c.b16 %v1294, %v1293
      %v1515 = vpack.c.b16 %v1296, %v1295
      %v1516 = vpack.c.b16 %v1298, %v1297
      %v1517 = vpack.c.b16 %v1300, %v1299
      %v1518 = vpack.c.b16 %v1302, %v1301
      %v1519 = vpack.c.b16 %v1304, %v1303
      %v1520 = vpack.c.b16 %v1306, %v1305
      %v1521 = vpack.c.b16 %v1308, %v1307
      %v1522 = vpack.c.b16 %v1310, %v1309
      %v1523 = vpack.c.b16 %v1312, %v1311
      %v1524 = vpack.c.b16 %v1314, %v1313
      %v1525 = vpack.c.b16 %v1316, %v1315
      %v1526 = vpack.c.b16 %v1318, %v1317
      %v1527 = vpack.c.b16 %v1320, %v1319
      %v1528 = vpack.c.b16 %v1322, %v1321
      %v1529 = vpack.c.b16 %v1324, %v1323
      %v1530 = vpack.c.b16 %v1326, %v1325
      %v1531 = vpack.c.b16 %v1328, %v1327
      %v1532 = vpack.c.b16 %v1330, %v1329
      %v1533 = vpack.c.b16 %v1332, %v1331
      %v1534 = vpack.c.b16 %v1334, %v1333
      %v1535 = vpack.c.b16 %v1336, %v1335
      %v1536 = vpack.c.b16 %v1338, %v1337
      %v1537 = vpack.c.b16 %v1340, %v1339
      %v1538 = vpack.c.b16 %v1342, %v1341
      %v1539 = vpack.c.b16 %v1344, %v1343
      %v1540 = vpack.c.b16 %v1346, %v1345
      %v1541 = vpack.c.b16 %v1348, %v1347
      %v1542 = vpack.c.b16 %v1350, %v1349
      %v1543 = vpack.c.b16 %v1352, %v1351
      %v1544 = vpack.c.b16 %v1354, %v1353
      %v1545 = vpack.c.b16 %v1356, %v1355
      %v1546 = vpack.c.b16 %v1358, %v1357
      %v1547 = vpack.c.b16 %v1360, %v1359
      %v1548 = vpack.c.b16 %v1362, %v1361
      %v1549 = vpack.c.b16 %v1364, %v1363
      %v1550 = vpack.c.b16 %v1366, %v1365
      %v1551 = vpack.c.b16 %v1368, %v1367
      %v1552 = vpack.c.b16 %v1370, %v1369
      %v1553 = vpack.c.b16 %v1372, %v1371
      %v1554 = vpack.c.b16 %v1374, %v1373
      %v1555 = vpack.c.b16 %v1376, %v1375
      %v1556 = vpack.c.b16 %v1378, %v1377
      %v1557 = vpack.c.b16 %v1380, %v1379
      %v1558 = vpack.c.b16 %v1382, %v1381
      %v1559 = vpack.c.b16 %v1384, %v1383
      %v1560 = vpack.c.b16 %v1386, %v1385
      %v1561 = vpack.c.b16 %v1388, %v1387
      %v1562 = vpack.c.b16 %v1390, %v1389
      %v1563 = vpack.c.b16 %v1392, %v1391
      %v1564 = vpack.c.b16 %v1394, %v1393
      %v1565 = vpack.c.b16 %v1396, %v1395
      %v1566 = vpack.c.b16 %v1398, %v1397
      %v1567 = vpack.c.b16 %v1400, %v1399
      %v1568 = vpack.c.b16 %v1402, %v1401
      %v1569 = vpack.c.b16 %v1404, %v1403
      %v1570 = vpack.c.b16 %v1406, %v1405
      %v1571 = vpack.c.b16 %v1408, %v1407
      %v1572 = vpack.c.b16 %v1410, %v1409
      %v1573 = vpack.c.b16 %v1412, %v1411
      %v1574 = vpack.c.b16 %v1414, %v1413
      %v1575 = vpack.c.b16 %v1416, %v1415
      %v1576 = vpack.c.b16 %v1418, %v1417
      %v1577 = vpack.c.b16 %v1420, %v1419
      %v1578 = vpack.c.b16 %v1422, %v1421
      %v1579 = vpack.c.b16 %v1424, %v1423
      %v1580 = vpack.c.b16 %v1426, %v1425
      %v1581 = vpack.c.b16 %v1428, %v1427
      %v1582 = vpack.c.b16 %v1430, %v1429
      %v1583 = vpack.c.b16 %v1432, %v1431
      %v1584 = vpack.c.b16 %v1434, %v1433
      %v1585 = vpack.c.b16 %v1436, %v1435
      %v1586 = vpack.c.b16 %v1438, %v1437
      %v1587 = vpack.c.b16 %v1440, %v1439
      %v1588 = vpack.c.b16 %v1442, %v1441
      %v1589 = vpack.c.b16 %v1444, %v1443
      %v1590 = vpack.c.b16 %v1446, %v1445
      %v1591 = vpack.c.b16 %v1448, %v1447
      %v1592 = vpack.c.b16 %v1450, %v1449
      %v1593 = vpack.c.b16 %v1452, %v1451
      %v1594 = vpack.c.b16 %v1454, %v1453
      %v1595 = vpack.c.b16 %v1456, %v1455
      %v1596 = vpack.c.b16 %v1458, %v1457
      %v1597 = vpack.c.b16 %v1460, %v1459
      %v1598 = vpack.c.b16 %v1462, %v1461
      %v1599 = vpack.c.b16 %v1464, %v1463
      %v1600 = vpack.c.b16 %v1466, %v1465
      %v1601 = vpack.c.b16 %v1468, %v1467
      %v1602 = vpack.c.b16 %v1470, %v1469
      %v1603 = vpack.c.b16 %v1472, %v1471
      %v1604 = vpack.c.b16 %v1474, %v1473
      %v1605 = vpack.c.b16 %v1476, %v1475
      %v1606 = vpack.c.b16 %v1478, %v1477
      %v1607 = vpack.c.b16 %v1480, %v1479
      %v1608 = vpack.c.b16 %v1482, %v1481
      %v1609 = vpack.c.b16 %v1484, %v1483
      %v1610 = vpack.c.b16 %v1486, %v1485
      %v1611 = vpack.c.b16 %v1488, %v1487
      %v1612 = vpack.c.b16 %v1490, %v1489
      %v1613 = vpack.c.b16 %v1492, %v1491
      %v1618 = vunpack.c.l.b16 %v1005
      %v1619 = vunpack.c.l.b16 %v1006
      %v1620 = vunpack.c.l.b16 %v1007
      %v1621 = vunpack.c.l.b16 %v1008
      %v1622 = vpack.c.b16 %v1619, %v1618
      %v1623 = vpack.c.b16 %v1621, %v1620
      %vm1625 = vcmask 220160
      %v1627 = vsel %vm1625, %v1493, 0
      %v1630 = vsel %vm1625, %v1494, 0
      %v1633 = vsel %vm1625, %v1495, 0
      %v1636 = vsel %vm1625, %v1496, 0
      %v1639 = vsel %vm1625, %v1497, 0
      %v1642 = vsel %vm1625, %v1498, 0
      %v1645 = vsel %vm1625, %v1499, 0
      %v1648 = vsel %vm1625, %v1500, 0
      %v1651 = vsel %vm1625, %v1501, 0
      %v1654 = vsel %vm1625, %v1502, 0
      %v1657 = vsel %vm1625, %v1503, 0
      %v1660 = vsel %vm1625, %v1504, 0
      %v1663 = vsel %vm1625, %v1505, 0
      %v1666 = vsel %vm1625, %v1506, 0
      %v1669 = vsel %vm1625, %v1507, 0
      %v1672 = vsel %vm1625, %v1508, 0
      %v1675 = vsel %vm1625, %v1509, 0
      %v1678 = vsel %vm1625, %v1510, 0
      %v1681 = vsel %vm1625, %v1511, 0
      %v1684 = vsel %vm1625, %v1512, 0
      %v1687 = vsel %vm1625, %v1513, 0
      %v1690 = vsel %vm1625, %v1514, 0
      %v1693 = vsel %vm1625, %v1515, 0
      %v1696 = vsel %vm1625, %v1516, 0
      %v1699 = vsel %vm1625, %v1517, 0
      %v1702 = vsel %vm1625, %v1518, 0
      %v1705 = vsel %vm1625, %v1519, 0
      %v1708 = vsel %vm1625, %v1520, 0
      %v1711 = vsel %vm1625, %v1521, 0
      %v1714 = vsel %vm1625, %v1522, 0
      %v1717 = vsel %vm1625, %v1523, 0
      %v1720 = vsel %vm1625, %v1524, 0
      %v1723 = vsel %vm1625, %v1525, 0
      %v1726 = vsel %vm1625, %v1526, 0
      %v1729 = vsel %vm1625, %v1527, 0
      %v1732 = vsel %vm1625, %v1528, 0
      %v1735 = vsel %vm1625, %v1529, 0
      %v1738 = vsel %vm1625, %v1530, 0
      %v1741 = vsel %vm1625, %v1531, 0
      %v1744 = vsel %vm1625, %v1532, 0
      %v1747 = vsel %vm1625, %v1533, 0
      %v1750 = vsel %vm1625, %v1534, 0
      %v1753 = vsel %vm1625, %v1535, 0
      %v1756 = vsel %vm1625, %v1536, 0
      %v1759 = vsel %vm1625, %v1537, 0
      %v1762 = vsel %vm1625, %v1538, 0
      %v1765 = vsel %vm1625, %v1539, 0
      %v1768 = vsel %vm1625, %v1540, 0
      %v1771 = vsel %vm1625, %v1541, 0
      %v1774 = vsel %vm1625, %v1542, 0
      %v1777 = vsel %vm1625, %v1543, 0
      %v1780 = vsel %vm1625, %v1544, 0
      %v1783 = vsel %vm1625, %v1545, 0
      %v1786 = vsel %vm1625, %v1546, 0
      %v1789 = vsel %vm1625, %v1547, 0
      %v1792 = vsel %vm1625, %v1548, 0
      %v1795 = vsel %vm1625, %v1549, 0
      %v1798 = vsel %vm1625, %v1550, 0
      %v1801 = vsel %vm1625, %v1551, 0
      %v1804 = vsel %vm1625, %v1552, 0
      %v1807 = vsel %vm1625, %v1553, 0
      %v1810 = vsel %vm1625, %v1554, 0
      %v1813 = vsel %vm1625, %v1555, 0
      %v1816 = vsel %vm1625, %v1556, 0
      %v1819 = vsel %vm1625, %v1557, 0
      %v1822 = vsel %vm1625, %v1558, 0
      %v1825 = vsel %vm1625, %v1559, 0
      %v1828 = vsel %vm1625, %v1560, 0
      %v1831 = vsel %vm1625, %v1561, 0
      %v1834 = vsel %vm1625, %v1562, 0
      %v1837 = vsel %vm1625, %v1563, 0
      %v1840 = vsel %vm1625, %v1564, 0
      %v1843 = vsel %vm1625, %v1565, 0
      %v1846 = vsel %vm1625, %v1566, 0
      %v1849 = vsel %vm1625, %v1567, 0
      %v1852 = vsel %vm1625, %v1568, 0
      %v1855 = vsel %vm1625, %v1569, 0
      %v1858 = vsel %vm1625, %v1570, 0
      %v1861 = vsel %vm1625, %v1571, 0
      %v1864 = vsel %vm1625, %v1572, 0
      %v1867 = vsel %vm1625, %v1573, 0
      %v1870 = vsel %vm1625, %v1574, 0
      %v1873 = vsel %vm1625, %v1575, 0
      %v1876 = vsel %vm1625, %v1576, 0
      %v1879 = vsel %vm1625, %v1577, 0
      %v1882 = vsel %vm1625, %v1578, 0
      %v1885 = vsel %vm1625, %v1579, 0
      %v1888 = vsel %vm1625, %v1580, 0
      %v1891 = vsel %vm1625, %v1581, 0
      %v1894 = vsel %vm1625, %v1582, 0
      %v1897 = vsel %vm1625, %v1583, 0
      %v1900 = vsel %vm1625, %v1584, 0
      %v1903 = vsel %vm1625, %v1585, 0
      %v1906 = vsel %vm1625, %v1586, 0
      %v1909 = vsel %vm1625, %v1587, 0
      %v1912 = vsel %vm1625, %v1588, 0
      %v1915 = vsel %vm1625, %v1589, 0
      %v1918 = vsel %vm1625, %v1590, 0
      %v1921 = vsel %vm1625, %v1591, 0
      %v1924 = vsel %vm1625, %v1592, 0
      %v1927 = vsel %vm1625, %v1593, 0
      %v1930 = vsel %vm1625, %v1594, 0
      %v1933 = vsel %vm1625, %v1595, 0
      %v1936 = vsel %vm1625, %v1596, 0
      %v1939 = vsel %vm1625, %v1597, 0
      %v1942 = vsel %vm1625, %v1598, 0
      %v1945 = vsel %vm1625, %v1599, 0
      %v1948 = vsel %vm1625, %v1600, 0
      %v1951 = vsel %vm1625, %v1601, 0
      %v1954 = vsel %vm1625, %v1602, 0
      %v1957 = vsel %vm1625, %v1603, 0
      %v1960 = vsel %vm1625, %v1604, 0
      %v1963 = vsel %vm1625, %v1605, 0
      %v1966 = vsel %vm1625, %v1606, 0
      %v1969 = vsel %vm1625, %v1607, 0
      %v1972 = vsel %vm1625, %v1608, 0
      %v1975 = vsel %vm1625, %v1609, 0
      %v1978 = vsel %vm1625, %v1610, 0
      %v1981 = vsel %vm1625, %v1611, 0
      %v1984 = vsel %vm1625, %v1612, 0
      %v1987 = vsel %vm1625, %v1613, 0
      %vm1989 = vcmask 1044480
      %vm1990 = vcmask 1045504
      %v1991 = vsel %vm1989, 4294967295, 65535
      %v1992 = vsel %vm1990, %v1991, 0
      %v1994 = vand.u32 %v1623, %v1992
      %1996 = vmatpush.bf16.msra.mxu0 0
      %1997 = vmatpush.bf16.msra.mxu0 0
      %1998 = vmatpush.bf16.msra.mxu0 0
      %1999 = vmatpush.bf16.msra.mxu0 0
      %2000 = vmatpush.bf16.msra.mxu0 0
      %2001 = vmatpush.bf16.msra.mxu0 0
      %2002 = vmatpush.bf16.msra.mxu0 %v1994
      %2003 = vmatpush.bf16.msra.mxu0 %v1622
      %2004 = vmatmul.bf16.gmra.mxu0 %v1627
      %v2005 = vpop.f32.mrf.mxu0
      %v2006 = vadd.f32 0.0, %v2005
      %v2007 = vpop.f32.mrf.mxu0
      %v2008 = vadd.f32 0.0, %v2007
      %2009 = vmatmul.bf16.gmra.mxu0 %v1630
      %v2010 = vpop.f32.mrf.mxu0
      %v2011 = vadd.f32 0.0, %v2010
      %v2012 = vpop.f32.mrf.mxu0
      %v2013 = vadd.f32 0.0, %v2012
      %2014 = vmatmul.bf16.gmra.mxu0 %v1633
      %v2015 = vpop.f32.mrf.mxu0
      %v2016 = vadd.f32 0.0, %v2015
      %v2017 = vpop.f32.mrf.mxu0
      %v2018 = vadd.f32 0.0, %v2017
      %2019 = vmatmul.bf16.gmra.mxu0 %v1636
      %v2020 = vpop.f32.mrf.mxu0
      %v2021 = vadd.f32 0.0, %v2020
      %v2022 = vpop.f32.mrf.mxu0
      %v2023 = vadd.f32 0.0, %v2022
      %2024 = vmatmul.bf16.gmra.mxu0 %v1639
      %v2025 = vpop.f32.mrf.mxu0
      %v2026 = vadd.f32 0.0, %v2025
      %v2027 = vpop.f32.mrf.mxu0
      %v2028 = vadd.f32 0.0, %v2027
      %2029 = vmatmul.bf16.gmra.mxu0 %v1642
      %v2030 = vpop.f32.mrf.mxu0
      %v2031 = vadd.f32 0.0, %v2030
      %v2032 = vpop.f32.mrf.mxu0
      %v2033 = vadd.f32 0.0, %v2032
      %2034 = vmatmul.bf16.gmra.mxu0 %v1645
      %v2035 = vpop.f32.mrf.mxu0
      %v2036 = vadd.f32 0.0, %v2035
      %v2037 = vpop.f32.mrf.mxu0
      %v2038 = vadd.f32 0.0, %v2037
      %2039 = vmatmul.bf16.gmra.mxu0 %v1648
      %v2040 = vpop.f32.mrf.mxu0
      %v2041 = vadd.f32 0.0, %v2040
      %v2042 = vpop.f32.mrf.mxu0
      %v2043 = vadd.f32 0.0, %v2042
      %2044 = vmatmul.bf16.gmra.mxu0 %v1651
      %v2045 = vpop.f32.mrf.mxu0
      %v2046 = vadd.f32 0.0, %v2045
      %v2047 = vpop.f32.mrf.mxu0
      %v2048 = vadd.f32 0.0, %v2047
      %2049 = vmatmul.bf16.gmra.mxu0 %v1654
      %v2050 = vpop.f32.mrf.mxu0
      %v2051 = vadd.f32 0.0, %v2050
      %v2052 = vpop.f32.mrf.mxu0
      %v2053 = vadd.f32 0.0, %v2052
      %2054 = vmatmul.bf16.gmra.mxu0 %v1657
      %v2055 = vpop.f32.mrf.mxu0
      %v2056 = vadd.f32 0.0, %v2055
      %v2057 = vpop.f32.mrf.mxu0
      %v2058 = vadd.f32 0.0, %v2057
      %2059 = vmatmul.bf16.gmra.mxu0 %v1660
      %v2060 = vpop.f32.mrf.mxu0
      %v2061 = vadd.f32 0.0, %v2060
      %v2062 = vpop.f32.mrf.mxu0
      %v2063 = vadd.f32 0.0, %v2062
      %2064 = vmatmul.bf16.gmra.mxu0 %v1663
      %v2065 = vpop.f32.mrf.mxu0
      %v2066 = vadd.f32 0.0, %v2065
      %v2067 = vpop.f32.mrf.mxu0
      %v2068 = vadd.f32 0.0, %v2067
      %2069 = vmatmul.bf16.gmra.mxu0 %v1666
      %v2070 = vpop.f32.mrf.mxu0
      %v2071 = vadd.f32 0.0, %v2070
      %v2072 = vpop.f32.mrf.mxu0
      %v2073 = vadd.f32 0.0, %v2072
      %2074 = vmatmul.bf16.gmra.mxu0 %v1669
      %v2075 = vpop.f32.mrf.mxu0
      %v2076 = vadd.f32 0.0, %v2075
      %v2077 = vpop.f32.mrf.mxu0
      %v2078 = vadd.f32 0.0, %v2077
      %2079 = vmatmul.bf16.gmra.mxu0 %v1672
      %v2080 = vpop.f32.mrf.mxu0
      %v2081 = vadd.f32 0.0, %v2080
      %v2082 = vpop.f32.mrf.mxu0
      %v2083 = vadd.f32 0.0, %v2082
      %2084 = vmatmul.bf16.gmra.mxu0 %v1675
      %v2085 = vpop.f32.mrf.mxu0
      %v2086 = vadd.f32 0.0, %v2085
      %v2087 = vpop.f32.mrf.mxu0
      %v2088 = vadd.f32 0.0, %v2087
      %2089 = vmatmul.bf16.gmra.mxu0 %v1678
      %v2090 = vpop.f32.mrf.mxu0
      %v2091 = vadd.f32 0.0, %v2090
      %v2092 = vpop.f32.mrf.mxu0
      %v2093 = vadd.f32 0.0, %v2092
      %2094 = vmatmul.bf16.gmra.mxu0 %v1681
      %v2095 = vpop.f32.mrf.mxu0
      %v2096 = vadd.f32 0.0, %v2095
      %v2097 = vpop.f32.mrf.mxu0
      %v2098 = vadd.f32 0.0, %v2097
      %2099 = vmatmul.bf16.gmra.mxu0 %v1684
      %v2100 = vpop.f32.mrf.mxu0
      %v2101 = vadd.f32 0.0, %v2100
      %v2102 = vpop.f32.mrf.mxu0
      %v2103 = vadd.f32 0.0, %v2102
      %2104 = vmatmul.bf16.gmra.mxu0 %v1687
      %v2105 = vpop.f32.mrf.mxu0
      %v2106 = vadd.f32 0.0, %v2105
      %v2107 = vpop.f32.mrf.mxu0
      %v2108 = vadd.f32 0.0, %v2107
      %2109 = vmatmul.bf16.gmra.mxu0 %v1690
      %v2110 = vpop.f32.mrf.mxu0
      %v2111 = vadd.f32 0.0, %v2110
      %v2112 = vpop.f32.mrf.mxu0
      %v2113 = vadd.f32 0.0, %v2112
      %2114 = vmatmul.bf16.gmra.mxu0 %v1693
      %v2115 = vpop.f32.mrf.mxu0
      %v2116 = vadd.f32 0.0, %v2115
      %v2117 = vpop.f32.mrf.mxu0
      %v2118 = vadd.f32 0.0, %v2117
      %2119 = vmatmul.bf16.gmra.mxu0 %v1696
      %v2120 = vpop.f32.mrf.mxu0
      %v2121 = vadd.f32 0.0, %v2120
      %v2122 = vpop.f32.mrf.mxu0
      %v2123 = vadd.f32 0.0, %v2122
      %2124 = vmatmul.bf16.gmra.mxu0 %v1699
      %v2125 = vpop.f32.mrf.mxu0
      %v2126 = vadd.f32 0.0, %v2125
      %v2127 = vpop.f32.mrf.mxu0
      %v2128 = vadd.f32 0.0, %v2127
      %2129 = vmatmul.bf16.gmra.mxu0 %v1702
      %v2130 = vpop.f32.mrf.mxu0
      %v2131 = vadd.f32 0.0, %v2130
      %v2132 = vpop.f32.mrf.mxu0
      %v2133 = vadd.f32 0.0, %v2132
      %2134 = vmatmul.bf16.gmra.mxu0 %v1705
      %v2135 = vpop.f32.mrf.mxu0
      %v2136 = vadd.f32 0.0, %v2135
      %v2137 = vpop.f32.mrf.mxu0
      %v2138 = vadd.f32 0.0, %v2137
      %2139 = vmatmul.bf16.gmra.mxu0 %v1708
      %v2140 = vpop.f32.mrf.mxu0
      %v2141 = vadd.f32 0.0, %v2140
      %v2142 = vpop.f32.mrf.mxu0
      %v2143 = vadd.f32 0.0, %v2142
      %2144 = vmatmul.bf16.gmra.mxu0 %v1711
      %v2145 = vpop.f32.mrf.mxu0
      %v2146 = vadd.f32 0.0, %v2145
      %v2147 = vpop.f32.mrf.mxu0
      %v2148 = vadd.f32 0.0, %v2147
      %2149 = vmatmul.bf16.gmra.mxu0 %v1714
      %v2150 = vpop.f32.mrf.mxu0
      %v2151 = vadd.f32 0.0, %v2150
      %v2152 = vpop.f32.mrf.mxu0
      %v2153 = vadd.f32 0.0, %v2152
      %2154 = vmatmul.bf16.gmra.mxu0 %v1717
      %v2155 = vpop.f32.mrf.mxu0
      %v2156 = vadd.f32 0.0, %v2155
      %v2157 = vpop.f32.mrf.mxu0
      %v2158 = vadd.f32 0.0, %v2157
      %2159 = vmatmul.bf16.gmra.mxu0 %v1720
      %v2160 = vpop.f32.mrf.mxu0
      %v2161 = vadd.f32 0.0, %v2160
      %v2162 = vpop.f32.mrf.mxu0
      %v2163 = vadd.f32 0.0, %v2162
      %2164 = vmatmul.bf16.gmra.mxu0 %v1723
      %v2165 = vpop.f32.mrf.mxu0
      %v2166 = vadd.f32 0.0, %v2165
      %v2167 = vpop.f32.mrf.mxu0
      %v2168 = vadd.f32 0.0, %v2167
      %2169 = vmatmul.bf16.gmra.mxu0 %v1726
      %v2170 = vpop.f32.mrf.mxu0
      %v2171 = vadd.f32 0.0, %v2170
      %v2172 = vpop.f32.mrf.mxu0
      %v2173 = vadd.f32 0.0, %v2172
      %2174 = vmatmul.bf16.gmra.mxu0 %v1729
      %v2175 = vpop.f32.mrf.mxu0
      %v2176 = vadd.f32 0.0, %v2175
      %v2177 = vpop.f32.mrf.mxu0
      %v2178 = vadd.f32 0.0, %v2177
      %2179 = vmatmul.bf16.gmra.mxu0 %v1732
      %v2180 = vpop.f32.mrf.mxu0
      %v2181 = vadd.f32 0.0, %v2180
      %v2182 = vpop.f32.mrf.mxu0
      %v2183 = vadd.f32 0.0, %v2182
      %2184 = vmatmul.bf16.gmra.mxu0 %v1735
      %v2185 = vpop.f32.mrf.mxu0
      %v2186 = vadd.f32 0.0, %v2185
      %v2187 = vpop.f32.mrf.mxu0
      %v2188 = vadd.f32 0.0, %v2187
      %2189 = vmatmul.bf16.gmra.mxu0 %v1738
      %v2190 = vpop.f32.mrf.mxu0
      %v2191 = vadd.f32 0.0, %v2190
      %v2192 = vpop.f32.mrf.mxu0
      %v2193 = vadd.f32 0.0, %v2192
      %2194 = vmatmul.bf16.gmra.mxu0 %v1741
      %v2195 = vpop.f32.mrf.mxu0
      %v2196 = vadd.f32 0.0, %v2195
      %v2197 = vpop.f32.mrf.mxu0
      %v2198 = vadd.f32 0.0, %v2197
      %2199 = vmatmul.bf16.gmra.mxu0 %v1744
      %v2200 = vpop.f32.mrf.mxu0
      %v2201 = vadd.f32 0.0, %v2200
      %v2202 = vpop.f32.mrf.mxu0
      %v2203 = vadd.f32 0.0, %v2202
      %2204 = vmatmul.bf16.gmra.mxu0 %v1747
      %v2205 = vpop.f32.mrf.mxu0
      %v2206 = vadd.f32 0.0, %v2205
      %v2207 = vpop.f32.mrf.mxu0
      %v2208 = vadd.f32 0.0, %v2207
      %2209 = vmatmul.bf16.gmra.mxu0 %v1750
      %v2210 = vpop.f32.mrf.mxu0
      %v2211 = vadd.f32 0.0, %v2210
      %v2212 = vpop.f32.mrf.mxu0
      %v2213 = vadd.f32 0.0, %v2212
      %2214 = vmatmul.bf16.gmra.mxu0 %v1753
      %v2215 = vpop.f32.mrf.mxu0
      %v2216 = vadd.f32 0.0, %v2215
      %v2217 = vpop.f32.mrf.mxu0
      %v2218 = vadd.f32 0.0, %v2217
      %2219 = vmatmul.bf16.gmra.mxu0 %v1756
      %v2220 = vpop.f32.mrf.mxu0
      %v2221 = vadd.f32 0.0, %v2220
      %v2222 = vpop.f32.mrf.mxu0
      %v2223 = vadd.f32 0.0, %v2222
      %2224 = vmatmul.bf16.gmra.mxu0 %v1759
      %v2225 = vpop.f32.mrf.mxu0
      %v2226 = vadd.f32 0.0, %v2225
      %v2227 = vpop.f32.mrf.mxu0
      %v2228 = vadd.f32 0.0, %v2227
      %2229 = vmatmul.bf16.gmra.mxu0 %v1762
      %v2230 = vpop.f32.mrf.mxu0
      %v2231 = vadd.f32 0.0, %v2230
      %v2232 = vpop.f32.mrf.mxu0
      %v2233 = vadd.f32 0.0, %v2232
      %2234 = vmatmul.bf16.gmra.mxu0 %v1765
      %v2235 = vpop.f32.mrf.mxu0
      %v2236 = vadd.f32 0.0, %v2235
      %v2237 = vpop.f32.mrf.mxu0
      %v2238 = vadd.f32 0.0, %v2237
      %2239 = vmatmul.bf16.gmra.mxu0 %v1768
      %v2240 = vpop.f32.mrf.mxu0
      %v2241 = vadd.f32 0.0, %v2240
      %v2242 = vpop.f32.mrf.mxu0
      %v2243 = vadd.f32 0.0, %v2242
      %2244 = vmatmul.bf16.gmra.mxu0 %v1771
      %v2245 = vpop.f32.mrf.mxu0
      %v2246 = vadd.f32 0.0, %v2245
      %v2247 = vpop.f32.mrf.mxu0
      %v2248 = vadd.f32 0.0, %v2247
      %2249 = vmatmul.bf16.gmra.mxu0 %v1774
      %v2250 = vpop.f32.mrf.mxu0
      %v2251 = vadd.f32 0.0, %v2250
      %v2252 = vpop.f32.mrf.mxu0
      %v2253 = vadd.f32 0.0, %v2252
      %2254 = vmatmul.bf16.gmra.mxu0 %v1777
      %v2255 = vpop.f32.mrf.mxu0
      %v2256 = vadd.f32 0.0, %v2255
      %v2257 = vpop.f32.mrf.mxu0
      %v2258 = vadd.f32 0.0, %v2257
      %2259 = vmatmul.bf16.gmra.mxu0 %v1780
      %v2260 = vpop.f32.mrf.mxu0
      %v2261 = vadd.f32 0.0, %v2260
      %v2262 = vpop.f32.mrf.mxu0
      %v2263 = vadd.f32 0.0, %v2262
      %2264 = vmatmul.bf16.gmra.mxu0 %v1783
      %v2265 = vpop.f32.mrf.mxu0
      %v2266 = vadd.f32 0.0, %v2265
      %v2267 = vpop.f32.mrf.mxu0
      %v2268 = vadd.f32 0.0, %v2267
      %2269 = vmatmul.bf16.gmra.mxu0 %v1786
      %v2270 = vpop.f32.mrf.mxu0
      %v2271 = vadd.f32 0.0, %v2270
      %v2272 = vpop.f32.mrf.mxu0
      %v2273 = vadd.f32 0.0, %v2272
      %2274 = vmatmul.bf16.gmra.mxu0 %v1789
      %v2275 = vpop.f32.mrf.mxu0
      %v2276 = vadd.f32 0.0, %v2275
      %v2277 = vpop.f32.mrf.mxu0
      %v2278 = vadd.f32 0.0, %v2277
      %2279 = vmatmul.bf16.gmra.mxu0 %v1792
      %v2280 = vpop.f32.mrf.mxu0
      %v2281 = vadd.f32 0.0, %v2280
      %v2282 = vpop.f32.mrf.mxu0
      %v2283 = vadd.f32 0.0, %v2282
      %2284 = vmatmul.bf16.gmra.mxu0 %v1795
      %v2285 = vpop.f32.mrf.mxu0
      %v2286 = vadd.f32 0.0, %v2285
      %v2287 = vpop.f32.mrf.mxu0
      %v2288 = vadd.f32 0.0, %v2287
      %2289 = vmatmul.bf16.gmra.mxu0 %v1798
      %v2290 = vpop.f32.mrf.mxu0
      %v2291 = vadd.f32 0.0, %v2290
      %v2292 = vpop.f32.mrf.mxu0
      %v2293 = vadd.f32 0.0, %v2292
      %2294 = vmatmul.bf16.gmra.mxu0 %v1801
      %v2295 = vpop.f32.mrf.mxu0
      %v2296 = vadd.f32 0.0, %v2295
      %v2297 = vpop.f32.mrf.mxu0
      %v2298 = vadd.f32 0.0, %v2297
      %2299 = vmatmul.bf16.gmra.mxu0 %v1804
      %v2300 = vpop.f32.mrf.mxu0
      %v2301 = vadd.f32 0.0, %v2300
      %v2302 = vpop.f32.mrf.mxu0
      %v2303 = vadd.f32 0.0, %v2302
      %2304 = vmatmul.bf16.gmra.mxu0 %v1807
      %v2305 = vpop.f32.mrf.mxu0
      %v2306 = vadd.f32 0.0, %v2305
      %v2307 = vpop.f32.mrf.mxu0
      %v2308 = vadd.f32 0.0, %v2307
      %2309 = vmatmul.bf16.gmra.mxu0 %v1810
      %v2310 = vpop.f32.mrf.mxu0
      %v2311 = vadd.f32 0.0, %v2310
      %v2312 = vpop.f32.mrf.mxu0
      %v2313 = vadd.f32 0.0, %v2312
      %2314 = vmatmul.bf16.gmra.mxu0 %v1813
      %v2315 = vpop.f32.mrf.mxu0
      %v2316 = vadd.f32 0.0, %v2315
      %v2317 = vpop.f32.mrf.mxu0
      %v2318 = vadd.f32 0.0, %v2317
      %2319 = vmatmul.bf16.gmra.mxu0 %v1816
      %v2320 = vpop.f32.mrf.mxu0
      %v2321 = vadd.f32 0.0, %v2320
      %v2322 = vpop.f32.mrf.mxu0
      %v2323 = vadd.f32 0.0, %v2322
      %2324 = vmatmul.bf16.gmra.mxu0 %v1819
      %v2325 = vpop.f32.mrf.mxu0
      %v2326 = vadd.f32 0.0, %v2325
      %v2327 = vpop.f32.mrf.mxu0
      %v2328 = vadd.f32 0.0, %v2327
      %2329 = vmatmul.bf16.gmra.mxu0 %v1822
      %v2330 = vpop.f32.mrf.mxu0
      %v2331 = vadd.f32 0.0, %v2330
      %v2332 = vpop.f32.mrf.mxu0
      %v2333 = vadd.f32 0.0, %v2332
      %2334 = vmatmul.bf16.gmra.mxu0 %v1825
      %v2335 = vpop.f32.mrf.mxu0
      %v2336 = vadd.f32 0.0, %v2335
      %v2337 = vpop.f32.mrf.mxu0
      %v2338 = vadd.f32 0.0, %v2337
      %2339 = vmatmul.bf16.gmra.mxu0 %v1828
      %v2340 = vpop.f32.mrf.mxu0
      %v2341 = vadd.f32 0.0, %v2340
      %v2342 = vpop.f32.mrf.mxu0
      %v2343 = vadd.f32 0.0, %v2342
      %2344 = vmatmul.bf16.gmra.mxu0 %v1831
      %v2345 = vpop.f32.mrf.mxu0
      %v2346 = vadd.f32 0.0, %v2345
      %v2347 = vpop.f32.mrf.mxu0
      %v2348 = vadd.f32 0.0, %v2347
      %2349 = vmatmul.bf16.gmra.mxu0 %v1834
      %v2350 = vpop.f32.mrf.mxu0
      %v2351 = vadd.f32 0.0, %v2350
      %v2352 = vpop.f32.mrf.mxu0
      %v2353 = vadd.f32 0.0, %v2352
      %2354 = vmatmul.bf16.gmra.mxu0 %v1837
      %v2355 = vpop.f32.mrf.mxu0
      %v2356 = vadd.f32 0.0, %v2355
      %v2357 = vpop.f32.mrf.mxu0
      %v2358 = vadd.f32 0.0, %v2357
      %2359 = vmatmul.bf16.gmra.mxu0 %v1840
      %v2360 = vpop.f32.mrf.mxu0
      %v2361 = vadd.f32 0.0, %v2360
      %v2362 = vpop.f32.mrf.mxu0
      %v2363 = vadd.f32 0.0, %v2362
      %2364 = vmatmul.bf16.gmra.mxu0 %v1843
      %v2365 = vpop.f32.mrf.mxu0
      %v2366 = vadd.f32 0.0, %v2365
      %v2367 = vpop.f32.mrf.mxu0
      %v2368 = vadd.f32 0.0, %v2367
      %2369 = vmatmul.bf16.gmra.mxu0 %v1846
      %v2370 = vpop.f32.mrf.mxu0
      %v2371 = vadd.f32 0.0, %v2370
      %v2372 = vpop.f32.mrf.mxu0
      %v2373 = vadd.f32 0.0, %v2372
      %2374 = vmatmul.bf16.gmra.mxu0 %v1849
      %v2375 = vpop.f32.mrf.mxu0
      %v2376 = vadd.f32 0.0, %v2375
      %v2377 = vpop.f32.mrf.mxu0
      %v2378 = vadd.f32 0.0, %v2377
      %2379 = vmatmul.bf16.gmra.mxu0 %v1852
      %v2380 = vpop.f32.mrf.mxu0
      %v2381 = vadd.f32 0.0, %v2380
      %v2382 = vpop.f32.mrf.mxu0
      %v2383 = vadd.f32 0.0, %v2382
      %2384 = vmatmul.bf16.gmra.mxu0 %v1855
      %v2385 = vpop.f32.mrf.mxu0
      %v2386 = vadd.f32 0.0, %v2385
      %v2387 = vpop.f32.mrf.mxu0
      %v2388 = vadd.f32 0.0, %v2387
      %2389 = vmatmul.bf16.gmra.mxu0 %v1858
      %v2390 = vpop.f32.mrf.mxu0
      %v2391 = vadd.f32 0.0, %v2390
      %v2392 = vpop.f32.mrf.mxu0
      %v2393 = vadd.f32 0.0, %v2392
      %2394 = vmatmul.bf16.gmra.mxu0 %v1861
      %v2395 = vpop.f32.mrf.mxu0
      %v2396 = vadd.f32 0.0, %v2395
      %v2397 = vpop.f32.mrf.mxu0
      %v2398 = vadd.f32 0.0, %v2397
      %2399 = vmatmul.bf16.gmra.mxu0 %v1864
      %v2400 = vpop.f32.mrf.mxu0
      %v2401 = vadd.f32 0.0, %v2400
      %v2402 = vpop.f32.mrf.mxu0
      %v2403 = vadd.f32 0.0, %v2402
      %2404 = vmatmul.bf16.gmra.mxu0 %v1867
      %v2405 = vpop.f32.mrf.mxu0
      %v2406 = vadd.f32 0.0, %v2405
      %v2407 = vpop.f32.mrf.mxu0
      %v2408 = vadd.f32 0.0, %v2407
      %2409 = vmatmul.bf16.gmra.mxu0 %v1870
      %v2410 = vpop.f32.mrf.mxu0
      %v2411 = vadd.f32 0.0, %v2410
      %v2412 = vpop.f32.mrf.mxu0
      %v2413 = vadd.f32 0.0, %v2412
      %2414 = vmatmul.bf16.gmra.mxu0 %v1873
      %v2415 = vpop.f32.mrf.mxu0
      %v2416 = vadd.f32 0.0, %v2415
      %v2417 = vpop.f32.mrf.mxu0
      %v2418 = vadd.f32 0.0, %v2417
      %2419 = vmatmul.bf16.gmra.mxu0 %v1876
      %v2420 = vpop.f32.mrf.mxu0
      %v2421 = vadd.f32 0.0, %v2420
      %v2422 = vpop.f32.mrf.mxu0
      %v2423 = vadd.f32 0.0, %v2422
      %2424 = vmatmul.bf16.gmra.mxu0 %v1879
      %v2425 = vpop.f32.mrf.mxu0
      %v2426 = vadd.f32 0.0, %v2425
      %v2427 = vpop.f32.mrf.mxu0
      %v2428 = vadd.f32 0.0, %v2427
      %2429 = vmatmul.bf16.gmra.mxu0 %v1882
      %v2430 = vpop.f32.mrf.mxu0
      %v2431 = vadd.f32 0.0, %v2430
      %v2432 = vpop.f32.mrf.mxu0
      %v2433 = vadd.f32 0.0, %v2432
      %2434 = vmatmul.bf16.gmra.mxu0 %v1885
      %v2435 = vpop.f32.mrf.mxu0
      %v2436 = vadd.f32 0.0, %v2435
      %v2437 = vpop.f32.mrf.mxu0
      %v2438 = vadd.f32 0.0, %v2437
      %2439 = vmatmul.bf16.gmra.mxu0 %v1888
      %v2440 = vpop.f32.mrf.mxu0
      %v2441 = vadd.f32 0.0, %v2440
      %v2442 = vpop.f32.mrf.mxu0
      %v2443 = vadd.f32 0.0, %v2442
      %2444 = vmatmul.bf16.gmra.mxu0 %v1891
      %v2445 = vpop.f32.mrf.mxu0
      %v2446 = vadd.f32 0.0, %v2445
      %v2447 = vpop.f32.mrf.mxu0
      %v2448 = vadd.f32 0.0, %v2447
      %2449 = vmatmul.bf16.gmra.mxu0 %v1894
      %v2450 = vpop.f32.mrf.mxu0
      %v2451 = vadd.f32 0.0, %v2450
      %v2452 = vpop.f32.mrf.mxu0
      %v2453 = vadd.f32 0.0, %v2452
      %2454 = vmatmul.bf16.gmra.mxu0 %v1897
      %v2455 = vpop.f32.mrf.mxu0
      %v2456 = vadd.f32 0.0, %v2455
      %v2457 = vpop.f32.mrf.mxu0
      %v2458 = vadd.f32 0.0, %v2457
      %2459 = vmatmul.bf16.gmra.mxu0 %v1900
      %v2460 = vpop.f32.mrf.mxu0
      %v2461 = vadd.f32 0.0, %v2460
      %v2462 = vpop.f32.mrf.mxu0
      %v2463 = vadd.f32 0.0, %v2462
      %2464 = vmatmul.bf16.gmra.mxu0 %v1903
      %v2465 = vpop.f32.mrf.mxu0
      %v2466 = vadd.f32 0.0, %v2465
      %v2467 = vpop.f32.mrf.mxu0
      %v2468 = vadd.f32 0.0, %v2467
      %2469 = vmatmul.bf16.gmra.mxu0 %v1906
      %v2470 = vpop.f32.mrf.mxu0
      %v2471 = vadd.f32 0.0, %v2470
      %v2472 = vpop.f32.mrf.mxu0
      %v2473 = vadd.f32 0.0, %v2472
      %2474 = vmatmul.bf16.gmra.mxu0 %v1909
      %v2475 = vpop.f32.mrf.mxu0
      %v2476 = vadd.f32 0.0, %v2475
      %v2477 = vpop.f32.mrf.mxu0
      %v2478 = vadd.f32 0.0, %v2477
      %2479 = vmatmul.bf16.gmra.mxu0 %v1912
      %v2480 = vpop.f32.mrf.mxu0
      %v2481 = vadd.f32 0.0, %v2480
      %v2482 = vpop.f32.mrf.mxu0
      %v2483 = vadd.f32 0.0, %v2482
      %2484 = vmatmul.bf16.gmra.mxu0 %v1915
      %v2485 = vpop.f32.mrf.mxu0
      %v2486 = vadd.f32 0.0, %v2485
      %v2487 = vpop.f32.mrf.mxu0
      %v2488 = vadd.f32 0.0, %v2487
      %2489 = vmatmul.bf16.gmra.mxu0 %v1918
      %v2490 = vpop.f32.mrf.mxu0
      %v2491 = vadd.f32 0.0, %v2490
      %v2492 = vpop.f32.mrf.mxu0
      %v2493 = vadd.f32 0.0, %v2492
      %2494 = vmatmul.bf16.gmra.mxu0 %v1921
      %v2495 = vpop.f32.mrf.mxu0
      %v2496 = vadd.f32 0.0, %v2495
      %v2497 = vpop.f32.mrf.mxu0
      %v2498 = vadd.f32 0.0, %v2497
      %2499 = vmatmul.bf16.gmra.mxu0 %v1924
      %v2500 = vpop.f32.mrf.mxu0
      %v2501 = vadd.f32 0.0, %v2500
      %v2502 = vpop.f32.mrf.mxu0
      %v2503 = vadd.f32 0.0, %v2502
      %2504 = vmatmul.bf16.gmra.mxu0 %v1927
      %v2505 = vpop.f32.mrf.mxu0
      %v2506 = vadd.f32 0.0, %v2505
      %v2507 = vpop.f32.mrf.mxu0
      %v2508 = vadd.f32 0.0, %v2507
      %2509 = vmatmul.bf16.gmra.mxu0 %v1930
      %v2510 = vpop.f32.mrf.mxu0
      %v2511 = vadd.f32 0.0, %v2510
      %v2512 = vpop.f32.mrf.mxu0
      %v2513 = vadd.f32 0.0, %v2512
      %2514 = vmatmul.bf16.gmra.mxu0 %v1933
      %v2515 = vpop.f32.mrf.mxu0
      %v2516 = vadd.f32 0.0, %v2515
      %v2517 = vpop.f32.mrf.mxu0
      %v2518 = vadd.f32 0.0, %v2517
      %2519 = vmatmul.bf16.gmra.mxu0 %v1936
      %v2520 = vpop.f32.mrf.mxu0
      %v2521 = vadd.f32 0.0, %v2520
      %v2522 = vpop.f32.mrf.mxu0
      %v2523 = vadd.f32 0.0, %v2522
      %2524 = vmatmul.bf16.gmra.mxu0 %v1939
      %v2525 = vpop.f32.mrf.mxu0
      %v2526 = vadd.f32 0.0, %v2525
      %v2527 = vpop.f32.mrf.mxu0
      %v2528 = vadd.f32 0.0, %v2527
      %2529 = vmatmul.bf16.gmra.mxu0 %v1942
      %v2530 = vpop.f32.mrf.mxu0
      %v2531 = vadd.f32 0.0, %v2530
      %v2532 = vpop.f32.mrf.mxu0
      %v2533 = vadd.f32 0.0, %v2532
      %2534 = vmatmul.bf16.gmra.mxu0 %v1945
      %v2535 = vpop.f32.mrf.mxu0
      %v2536 = vadd.f32 0.0, %v2535
      %v2537 = vpop.f32.mrf.mxu0
      %v2538 = vadd.f32 0.0, %v2537
      %2539 = vmatmul.bf16.gmra.mxu0 %v1948
      %v2540 = vpop.f32.mrf.mxu0
      %v2541 = vadd.f32 0.0, %v2540
      %v2542 = vpop.f32.mrf.mxu0
      %v2543 = vadd.f32 0.0, %v2542
      %2544 = vmatmul.bf16.gmra.mxu0 %v1951
      %v2545 = vpop.f32.mrf.mxu0
      %v2546 = vadd.f32 0.0, %v2545
      %v2547 = vpop.f32.mrf.mxu0
      %v2548 = vadd.f32 0.0, %v2547
      %2549 = vmatmul.bf16.gmra.mxu0 %v1954
      %v2550 = vpop.f32.mrf.mxu0
      %v2551 = vadd.f32 0.0, %v2550
      %v2552 = vpop.f32.mrf.mxu0
      %v2553 = vadd.f32 0.0, %v2552
      %2554 = vmatmul.bf16.gmra.mxu0 %v1957
      %v2555 = vpop.f32.mrf.mxu0
      %v2556 = vadd.f32 0.0, %v2555
      %v2557 = vpop.f32.mrf.mxu0
      %v2558 = vadd.f32 0.0, %v2557
      %2559 = vmatmul.bf16.gmra.mxu0 %v1960
      %v2560 = vpop.f32.mrf.mxu0
      %v2561 = vadd.f32 0.0, %v2560
      %v2562 = vpop.f32.mrf.mxu0
      %v2563 = vadd.f32 0.0, %v2562
      %2564 = vmatmul.bf16.gmra.mxu0 %v1963
      %v2565 = vpop.f32.mrf.mxu0
      %v2566 = vadd.f32 0.0, %v2565
      %v2567 = vpop.f32.mrf.mxu0
      %v2568 = vadd.f32 0.0, %v2567
      %2569 = vmatmul.bf16.gmra.mxu0 %v1966
      %v2570 = vpop.f32.mrf.mxu0
      %v2571 = vadd.f32 0.0, %v2570
      %v2572 = vpop.f32.mrf.mxu0
      %v2573 = vadd.f32 0.0, %v2572
      %2574 = vmatmul.bf16.gmra.mxu0 %v1969
      %v2575 = vpop.f32.mrf.mxu0
      %v2576 = vadd.f32 0.0, %v2575
      %v2577 = vpop.f32.mrf.mxu0
      %v2578 = vadd.f32 0.0, %v2577
      %2579 = vmatmul.bf16.gmra.mxu0 %v1972
      %v2580 = vpop.f32.mrf.mxu0
      %v2581 = vadd.f32 0.0, %v2580
      %v2582 = vpop.f32.mrf.mxu0
      %v2583 = vadd.f32 0.0, %v2582
      %2584 = vmatmul.bf16.gmra.mxu0 %v1975
      %v2585 = vpop.f32.mrf.mxu0
      %v2586 = vadd.f32 0.0, %v2585
      %v2587 = vpop.f32.mrf.mxu0
      %v2588 = vadd.f32 0.0, %v2587
      %2589 = vmatmul.bf16.gmra.mxu0 %v1978
      %v2590 = vpop.f32.mrf.mxu0
      %v2591 = vadd.f32 0.0, %v2590
      %v2592 = vpop.f32.mrf.mxu0
      %v2593 = vadd.f32 0.0, %v2592
      %2594 = vmatmul.bf16.gmra.mxu0 %v1981
      %v2595 = vpop.f32.mrf.mxu0
      %v2596 = vadd.f32 0.0, %v2595
      %v2597 = vpop.f32.mrf.mxu0
      %v2598 = vadd.f32 0.0, %v2597
      %2599 = vmatmul.bf16.gmra.mxu0 %v1984
      %v2600 = vpop.f32.mrf.mxu0
      %v2601 = vadd.f32 0.0, %v2600
      %v2602 = vpop.f32.mrf.mxu0
      %v2603 = vadd.f32 0.0, %v2602
      %2604 = vmatmul.bf16.gmra.mxu0 %v1987
      %v2605 = vpop.f32.mrf.mxu0
      %v2606 = vadd.f32 0.0, %v2605
      %v2607 = vpop.f32.mrf.mxu0
      %v2608 = vadd.f32 0.0, %v2607
      %2609 = vdwg.mxu0
      %v2610 = vadd.f32 %v763, %v2006
      %v2611 = vadd.f32 %v764, %v2008
      %v2612 = vadd.f32 %v765, %v2011
      %v2613 = vadd.f32 %v766, %v2013
      %v2614 = vadd.f32 %v767, %v2016
      %v2615 = vadd.f32 %v768, %v2018
      %v2616 = vadd.f32 %v769, %v2021
      %v2617 = vadd.f32 %v770, %v2023
      %v2618 = vadd.f32 %v771, %v2026
      %v2619 = vadd.f32 %v772, %v2028
      %v2620 = vadd.f32 %v773, %v2031
      %v2621 = vadd.f32 %v774, %v2033
      %v2622 = vadd.f32 %v775, %v2036
      %v2623 = vadd.f32 %v776, %v2038
      %v2624 = vadd.f32 %v777, %v2041
      %v2625 = vadd.f32 %v778, %v2043
      %v2626 = vadd.f32 %v779, %v2046
      %v2627 = vadd.f32 %v780, %v2048
      %v2628 = vadd.f32 %v781, %v2051
      %v2629 = vadd.f32 %v782, %v2053
      %v2630 = vadd.f32 %v783, %v2056
      %v2631 = vadd.f32 %v784, %v2058
      %v2632 = vadd.f32 %v785, %v2061
      %v2633 = vadd.f32 %v786, %v2063
      %v2634 = vadd.f32 %v787, %v2066
      %v2635 = vadd.f32 %v788, %v2068
      %v2636 = vadd.f32 %v789, %v2071
      %v2637 = vadd.f32 %v790, %v2073
      %v2638 = vadd.f32 %v791, %v2076
      %v2639 = vadd.f32 %v792, %v2078
      %v2640 = vadd.f32 %v793, %v2081
      %v2641 = vadd.f32 %v794, %v2083
      %v2642 = vadd.f32 %v795, %v2086
      %v2643 = vadd.f32 %v796, %v2088
      %v2644 = vadd.f32 %v797, %v2091
      %v2645 = vadd.f32 %v798, %v2093
      %v2646 = vadd.f32 %v799, %v2096
      %v2647 = vadd.f32 %v800, %v2098
      %v2648 = vadd.f32 %v801, %v2101
      %v2649 = vadd.f32 %v802, %v2103
      %v2650 = vadd.f32 %v803, %v2106
      %v2651 = vadd.f32 %v804, %v2108
      %v2652 = vadd.f32 %v805, %v2111
      %v2653 = vadd.f32 %v806, %v2113
      %v2654 = vadd.f32 %v807, %v2116
      %v2655 = vadd.f32 %v808, %v2118
      %v2656 = vadd.f32 %v809, %v2121
      %v2657 = vadd.f32 %v810, %v2123
      %v2658 = vadd.f32 %v811, %v2126
      %v2659 = vadd.f32 %v812, %v2128
      %v2660 = vadd.f32 %v813, %v2131
      %v2661 = vadd.f32 %v814, %v2133
      %v2662 = vadd.f32 %v815, %v2136
      %v2663 = vadd.f32 %v816, %v2138
      %v2664 = vadd.f32 %v817, %v2141
      %v2665 = vadd.f32 %v818, %v2143
      %v2666 = vadd.f32 %v819, %v2146
      %v2667 = vadd.f32 %v820, %v2148
      %v2668 = vadd.f32 %v821, %v2151
      %v2669 = vadd.f32 %v822, %v2153
      %v2670 = vadd.f32 %v823, %v2156
      %v2671 = vadd.f32 %v824, %v2158
      %v2672 = vadd.f32 %v825, %v2161
      %v2673 = vadd.f32 %v826, %v2163
      %v2674 = vadd.f32 %v827, %v2166
      %v2675 = vadd.f32 %v828, %v2168
      %v2676 = vadd.f32 %v829, %v2171
      %v2677 = vadd.f32 %v830, %v2173
      %v2678 = vadd.f32 %v831, %v2176
      %v2679 = vadd.f32 %v832, %v2178
      %v2680 = vadd.f32 %v833, %v2181
      %v2681 = vadd.f32 %v834, %v2183
      %v2682 = vadd.f32 %v835, %v2186
      %v2683 = vadd.f32 %v836, %v2188
      %v2684 = vadd.f32 %v837, %v2191
      %v2685 = vadd.f32 %v838, %v2193
      %v2686 = vadd.f32 %v839, %v2196
      %v2687 = vadd.f32 %v840, %v2198
      %v2688 = vadd.f32 %v841, %v2201
      %v2689 = vadd.f32 %v842, %v2203
      %v2690 = vadd.f32 %v843, %v2206
      %v2691 = vadd.f32 %v844, %v2208
      %v2692 = vadd.f32 %v845, %v2211
      %v2693 = vadd.f32 %v846, %v2213
      %v2694 = vadd.f32 %v847, %v2216
      %v2695 = vadd.f32 %v848, %v2218
      %v2696 = vadd.f32 %v849, %v2221
      %v2697 = vadd.f32 %v850, %v2223
      %v2698 = vadd.f32 %v851, %v2226
      %v2699 = vadd.f32 %v852, %v2228
      %v2700 = vadd.f32 %v853, %v2231
      %v2701 = vadd.f32 %v854, %v2233
      %v2702 = vadd.f32 %v855, %v2236
      %v2703 = vadd.f32 %v856, %v2238
      %v2704 = vadd.f32 %v857, %v2241
      %v2705 = vadd.f32 %v858, %v2243
      %v2706 = vadd.f32 %v859, %v2246
      %v2707 = vadd.f32 %v860, %v2248
      %v2708 = vadd.f32 %v861, %v2251
      %v2709 = vadd.f32 %v862, %v2253
      %v2710 = vadd.f32 %v863, %v2256
      %v2711 = vadd.f32 %v864, %v2258
      %v2712 = vadd.f32 %v865, %v2261
      %v2713 = vadd.f32 %v866, %v2263
      %v2714 = vadd.f32 %v867, %v2266
      %v2715 = vadd.f32 %v868, %v2268
      %v2716 = vadd.f32 %v869, %v2271
      %v2717 = vadd.f32 %v870, %v2273
      %v2718 = vadd.f32 %v871, %v2276
      %v2719 = vadd.f32 %v872, %v2278
      %v2720 = vadd.f32 %v873, %v2281
      %v2721 = vadd.f32 %v874, %v2283
      %v2722 = vadd.f32 %v875, %v2286
      %v2723 = vadd.f32 %v876, %v2288
      %v2724 = vadd.f32 %v877, %v2291
      %v2725 = vadd.f32 %v878, %v2293
      %v2726 = vadd.f32 %v879, %v2296
      %v2727 = vadd.f32 %v880, %v2298
      %v2728 = vadd.f32 %v881, %v2301
      %v2729 = vadd.f32 %v882, %v2303
      %v2730 = vadd.f32 %v883, %v2306
      %v2731 = vadd.f32 %v884, %v2308
      %v2732 = vadd.f32 %v885, %v2311
      %v2733 = vadd.f32 %v886, %v2313
      %v2734 = vadd.f32 %v887, %v2316
      %v2735 = vadd.f32 %v888, %v2318
      %v2736 = vadd.f32 %v889, %v2321
      %v2737 = vadd.f32 %v890, %v2323
      %v2738 = vadd.f32 %v891, %v2326
      %v2739 = vadd.f32 %v892, %v2328
      %v2740 = vadd.f32 %v893, %v2331
      %v2741 = vadd.f32 %v894, %v2333
      %v2742 = vadd.f32 %v895, %v2336
      %v2743 = vadd.f32 %v896, %v2338
      %v2744 = vadd.f32 %v897, %v2341
      %v2745 = vadd.f32 %v898, %v2343
      %v2746 = vadd.f32 %v899, %v2346
      %v2747 = vadd.f32 %v900, %v2348
      %v2748 = vadd.f32 %v901, %v2351
      %v2749 = vadd.f32 %v902, %v2353
      %v2750 = vadd.f32 %v903, %v2356
      %v2751 = vadd.f32 %v904, %v2358
      %v2752 = vadd.f32 %v905, %v2361
      %v2753 = vadd.f32 %v906, %v2363
      %v2754 = vadd.f32 %v907, %v2366
      %v2755 = vadd.f32 %v908, %v2368
      %v2756 = vadd.f32 %v909, %v2371
      %v2757 = vadd.f32 %v910, %v2373
      %v2758 = vadd.f32 %v911, %v2376
      %v2759 = vadd.f32 %v912, %v2378
      %v2760 = vadd.f32 %v913, %v2381
      %v2761 = vadd.f32 %v914, %v2383
      %v2762 = vadd.f32 %v915, %v2386
      %v2763 = vadd.f32 %v916, %v2388
      %v2764 = vadd.f32 %v917, %v2391
      %v2765 = vadd.f32 %v918, %v2393
      %v2766 = vadd.f32 %v919, %v2396
      %v2767 = vadd.f32 %v920, %v2398
      %v2768 = vadd.f32 %v921, %v2401
      %v2769 = vadd.f32 %v922, %v2403
      %v2770 = vadd.f32 %v923, %v2406
      %v2771 = vadd.f32 %v924, %v2408
      %v2772 = vadd.f32 %v925, %v2411
      %v2773 = vadd.f32 %v926, %v2413
      %v2774 = vadd.f32 %v927, %v2416
      %v2775 = vadd.f32 %v928, %v2418
      %v2776 = vadd.f32 %v929, %v2421
      %v2777 = vadd.f32 %v930, %v2423
      %v2778 = vadd.f32 %v931, %v2426
      %v2779 = vadd.f32 %v932, %v2428
      %v2780 = vadd.f32 %v933, %v2431
      %v2781 = vadd.f32 %v934, %v2433
      %v2782 = vadd.f32 %v935, %v2436
      %v2783 = vadd.f32 %v936, %v2438
      %v2784 = vadd.f32 %v937, %v2441
      %v2785 = vadd.f32 %v938, %v2443
      %v2786 = vadd.f32 %v939, %v2446
      %v2787 = vadd.f32 %v940, %v2448
      %v2788 = vadd.f32 %v941, %v2451
      %v2789 = vadd.f32 %v942, %v2453
      %v2790 = vadd.f32 %v943, %v2456
      %v2791 = vadd.f32 %v944, %v2458
      %v2792 = vadd.f32 %v945, %v2461
      %v2793 = vadd.f32 %v946, %v2463
      %v2794 = vadd.f32 %v947, %v2466
      %v2795 = vadd.f32 %v948, %v2468
      %v2796 = vadd.f32 %v949, %v2471
      %v2797 = vadd.f32 %v950, %v2473
      %v2798 = vadd.f32 %v951, %v2476
      %v2799 = vadd.f32 %v952, %v2478
      %v2800 = vadd.f32 %v953, %v2481
      %v2801 = vadd.f32 %v954, %v2483
      %v2802 = vadd.f32 %v955, %v2486
      %v2803 = vadd.f32 %v956, %v2488
      %v2804 = vadd.f32 %v957, %v2491
      %v2805 = vadd.f32 %v958, %v2493
      %v2806 = vadd.f32 %v959, %v2496
      %v2807 = vadd.f32 %v960, %v2498
      %v2808 = vadd.f32 %v961, %v2501
      %v2809 = vadd.f32 %v962, %v2503
      %v2810 = vadd.f32 %v963, %v2506
      %v2811 = vadd.f32 %v964, %v2508
      %v2812 = vadd.f32 %v965, %v2511
      %v2813 = vadd.f32 %v966, %v2513
      %v2814 = vadd.f32 %v967, %v2516
      %v2815 = vadd.f32 %v968, %v2518
      %v2816 = vadd.f32 %v969, %v2521
      %v2817 = vadd.f32 %v970, %v2523
      %v2818 = vadd.f32 %v971, %v2526
      %v2819 = vadd.f32 %v972, %v2528
      %v2820 = vadd.f32 %v973, %v2531
      %v2821 = vadd.f32 %v974, %v2533
      %v2822 = vadd.f32 %v975, %v2536
      %v2823 = vadd.f32 %v976, %v2538
      %v2824 = vadd.f32 %v977, %v2541
      %v2825 = vadd.f32 %v978, %v2543
      %v2826 = vadd.f32 %v979, %v2546
      %v2827 = vadd.f32 %v980, %v2548
      %v2828 = vadd.f32 %v981, %v2551
      %v2829 = vadd.f32 %v982, %v2553
      %v2830 = vadd.f32 %v983, %v2556
      %v2831 = vadd.f32 %v984, %v2558
      %v2832 = vadd.f32 %v985, %v2561
      %v2833 = vadd.f32 %v986, %v2563
      %v2834 = vadd.f32 %v987, %v2566
      %v2835 = vadd.f32 %v988, %v2568
      %v2836 = vadd.f32 %v989, %v2571
      %v2837 = vadd.f32 %v990, %v2573
      %v2838 = vadd.f32 %v991, %v2576
      %v2839 = vadd.f32 %v992, %v2578
      %v2840 = vadd.f32 %v993, %v2581
      %v2841 = vadd.f32 %v994, %v2583
      %v2842 = vadd.f32 %v995, %v2586
      %v2843 = vadd.f32 %v996, %v2588
      %v2844 = vadd.f32 %v997, %v2591
      %v2845 = vadd.f32 %v998, %v2593
      %v2846 = vadd.f32 %v999, %v2596
      %v2847 = vadd.f32 %v1000, %v2598
      %v2848 = vadd.f32 %v1001, %v2601
      %v2849 = vadd.f32 %v1002, %v2603
      %v2850 = vadd.f32 %v1003, %v2606
      %v2851 = vadd.f32 %v1004, %v2608
      %vm2852 = vcmask 523264
      %2853 = vst.msk [vmem:[#allocation2] sm:$0xff] %vm2852, %v2610
      %2854 = vst.msk [vmem:[#allocation2 + $0x8] sm:$0xff] %vm2852, %v2611
      %2855 = vst.msk [vmem:[#allocation2 + $0x10] sm:$0xff] %vm2852, %v2612
      %2856 = vst.msk [vmem:[#allocation2 + $0x18] sm:$0xff] %vm2852, %v2613
      %2857 = vst.msk [vmem:[#allocation2 + $0x20] sm:$0xff] %vm2852, %v2614
      %2858 = vst.msk [vmem:[#allocation2 + $0x28] sm:$0xff] %vm2852, %v2615
      %2859 = vst.msk [vmem:[#allocation2 + $0x30] sm:$0xff] %vm2852, %v2616
      %2860 = vst.msk [vmem:[#allocation2 + $0x38] sm:$0xff] %vm2852, %v2617
      %2861 = vst.msk [vmem:[#allocation2 + $0x40] sm:$0xff] %vm2852, %v2618
      %2862 = vst.msk [vmem:[#allocation2 + $0x48] sm:$0xff] %vm2852, %v2619
      %2863 = vst.msk [vmem:[#allocation2 + $0x50] sm:$0xff] %vm2852, %v2620
      %2864 = vst.msk [vmem:[#allocation2 + $0x58] sm:$0xff] %vm2852, %v2621
      %2865 = vst.msk [vmem:[#allocation2 + $0x60] sm:$0xff] %vm2852, %v2622
      %2866 = vst.msk [vmem:[#allocation2 + $0x68] sm:$0xff] %vm2852, %v2623
      %2867 = vst.msk [vmem:[#allocation2 + $0x70] sm:$0xff] %vm2852, %v2624
      %2868 = vst.msk [vmem:[#allocation2 + $0x78] sm:$0xff] %vm2852, %v2625
      %2869 = vst.msk [vmem:[#allocation2 + $0x80] sm:$0xff] %vm2852, %v2626
      %2870 = vst.msk [vmem:[#allocation2 + $0x88] sm:$0xff] %vm2852, %v2627
      %2871 = vst.msk [vmem:[#allocation2 + $0x90] sm:$0xff] %vm2852, %v2628
      %2872 = vst.msk [vmem:[#allocation2 + $0x98] sm:$0xff] %vm2852, %v2629
      %2873 = vst.msk [vmem:[#allocation2 + $0xa0] sm:$0xff] %vm2852, %v2630
      %2874 = vst.msk [vmem:[#allocation2 + $0xa8] sm:$0xff] %vm2852, %v2631
      %2875 = vst.msk [vmem:[#allocation2 + $0xb0] sm:$0xff] %vm2852, %v2632
      %2876 = vst.msk [vmem:[#allocation2 + $0xb8] sm:$0xff] %vm2852, %v2633
      %2877 = vst.msk [vmem:[#allocation2 + $0xc0] sm:$0xff] %vm2852, %v2634
      %2878 = vst.msk [vmem:[#allocation2 + $0xc8] sm:$0xff] %vm2852, %v2635
      %2879 = vst.msk [vmem:[#allocation2 + $0xd0] sm:$0xff] %vm2852, %v2636
      %2880 = vst.msk [vmem:[#allocation2 + $0xd8] sm:$0xff] %vm2852, %v2637
      %2881 = vst.msk [vmem:[#allocation2 + $0xe0] sm:$0xff] %vm2852, %v2638
      %2882 = vst.msk [vmem:[#allocation2 + $0xe8] sm:$0xff] %vm2852, %v2639
      %2883 = vst.msk [vmem:[#allocation2 + $0xf0] sm:$0xff] %vm2852, %v2640
      %2884 = vst.msk [vmem:[#allocation2 + $0xf8] sm:$0xff] %vm2852, %v2641
      %2885 = vst.msk [vmem:[#allocation2 + $0x100] sm:$0xff] %vm2852, %v2642
      %2886 = vst.msk [vmem:[#allocation2 + $0x108] sm:$0xff] %vm2852, %v2643
      %2887 = vst.msk [vmem:[#allocation2 + $0x110] sm:$0xff] %vm2852, %v2644
      %2888 = vst.msk [vmem:[#allocation2 + $0x118] sm:$0xff] %vm2852, %v2645
      %2889 = vst.msk [vmem:[#allocation2 + $0x120] sm:$0xff] %vm2852, %v2646
      %2890 = vst.msk [vmem:[#allocation2 + $0x128] sm:$0xff] %vm2852, %v2647
      %2891 = vst.msk [vmem:[#allocation2 + $0x130] sm:$0xff] %vm2852, %v2648
      %2892 = vst.msk [vmem:[#allocation2 + $0x138] sm:$0xff] %vm2852, %v2649
      %2893 = vst.msk [vmem:[#allocation2 + $0x140] sm:$0xff] %vm2852, %v2650
      %2894 = vst.msk [vmem:[#allocation2 + $0x148] sm:$0xff] %vm2852, %v2651
      %2895 = vst.msk [vmem:[#allocation2 + $0x150] sm:$0xff] %vm2852, %v2652
      %2896 = vst.msk [vmem:[#allocation2 + $0x158] sm:$0xff] %vm2852, %v2653
      %2897 = vst.msk [vmem:[#allocation2 + $0x160] sm:$0xff] %vm2852, %v2654
      %2898 = vst.msk [vmem:[#allocation2 + $0x168] sm:$0xff] %vm2852, %v2655
      %2899 = vst.msk [vmem:[#allocation2 + $0x170] sm:$0xff] %vm2852, %v2656
      %2900 = vst.msk [vmem:[#allocation2 + $0x178] sm:$0xff] %vm2852, %v2657
      %2901 = vst.msk [vmem:[#allocation2 + $0x180] sm:$0xff] %vm2852, %v2658
      %2902 = vst.msk [vmem:[#allocation2 + $0x188] sm:$0xff] %vm2852, %v2659
      %2903 = vst.msk [vmem:[#allocation2 + $0x190] sm:$0xff] %vm2852, %v2660
      %2904 = vst.msk [vmem:[#allocation2 + $0x198] sm:$0xff] %vm2852, %v2661
      %2905 = vst.msk [vmem:[#allocation2 + $0x1a0] sm:$0xff] %vm2852, %v2662
      %2906 = vst.msk [vmem:[#allocation2 + $0x1a8] sm:$0xff] %vm2852, %v2663
      %2907 = vst.msk [vmem:[#allocation2 + $0x1b0] sm:$0xff] %vm2852, %v2664
      %2908 = vst.msk [vmem:[#allocation2 + $0x1b8] sm:$0xff] %vm2852, %v2665
      %2909 = vst.msk [vmem:[#allocation2 + $0x1c0] sm:$0xff] %vm2852, %v2666
      %2910 = vst.msk [vmem:[#allocation2 + $0x1c8] sm:$0xff] %vm2852, %v2667
      %2911 = vst.msk [vmem:[#allocation2 + $0x1d0] sm:$0xff] %vm2852, %v2668
      %2912 = vst.msk [vmem:[#allocation2 + $0x1d8] sm:$0xff] %vm2852, %v2669
      %2913 = vst.msk [vmem:[#allocation2 + $0x1e0] sm:$0xff] %vm2852, %v2670
      %2914 = vst.msk [vmem:[#allocation2 + $0x1e8] sm:$0xff] %vm2852, %v2671
      %2915 = vst.msk [vmem:[#allocation2 + $0x1f0] sm:$0xff] %vm2852, %v2672
      %2916 = vst.msk [vmem:[#allocation2 + $0x1f8] sm:$0xff] %vm2852, %v2673
      %2917 = vst.msk [vmem:[#allocation2 + $0x200] sm:$0xff] %vm2852, %v2674
      %2918 = vst.msk [vmem:[#allocation2 + $0x208] sm:$0xff] %vm2852, %v2675
      %2919 = vst.msk [vmem:[#allocation2 + $0x210] sm:$0xff] %vm2852, %v2676
      %2920 = vst.msk [vmem:[#allocation2 + $0x218] sm:$0xff] %vm2852, %v2677
      %2921 = vst.msk [vmem:[#allocation2 + $0x220] sm:$0xff] %vm2852, %v2678
      %2922 = vst.msk [vmem:[#allocation2 + $0x228] sm:$0xff] %vm2852, %v2679
      %2923 = vst.msk [vmem:[#allocation2 + $0x230] sm:$0xff] %vm2852, %v2680
      %2924 = vst.msk [vmem:[#allocation2 + $0x238] sm:$0xff] %vm2852, %v2681
      %2925 = vst.msk [vmem:[#allocation2 + $0x240] sm:$0xff] %vm2852, %v2682
      %2926 = vst.msk [vmem:[#allocation2 + $0x248] sm:$0xff] %vm2852, %v2683
      %2927 = vst.msk [vmem:[#allocation2 + $0x250] sm:$0xff] %vm2852, %v2684
      %2928 = vst.msk [vmem:[#allocation2 + $0x258] sm:$0xff] %vm2852, %v2685
      %2929 = vst.msk [vmem:[#allocation2 + $0x260] sm:$0xff] %vm2852, %v2686
      %2930 = vst.msk [vmem:[#allocation2 + $0x268] sm:$0xff] %vm2852, %v2687
      %2931 = vst.msk [vmem:[#allocation2 + $0x270] sm:$0xff] %vm2852, %v2688
      %2932 = vst.msk [vmem:[#allocation2 + $0x278] sm:$0xff] %vm2852, %v2689
      %2933 = vst.msk [vmem:[#allocation2 + $0x280] sm:$0xff] %vm2852, %v2690
      %2934 = vst.msk [vmem:[#allocation2 + $0x288] sm:$0xff] %vm2852, %v2691
      %2935 = vst.msk [vmem:[#allocation2 + $0x290] sm:$0xff] %vm2852, %v2692
      %2936 = vst.msk [vmem:[#allocation2 + $0x298] sm:$0xff] %vm2852, %v2693
      %2937 = vst.msk [vmem:[#allocation2 + $0x2a0] sm:$0xff] %vm2852, %v2694
      %2938 = vst.msk [vmem:[#allocation2 + $0x2a8] sm:$0xff] %vm2852, %v2695
      %2939 = vst.msk [vmem:[#allocation2 + $0x2b0] sm:$0xff] %vm2852, %v2696
      %2940 = vst.msk [vmem:[#allocation2 + $0x2b8] sm:$0xff] %vm2852, %v2697
      %2941 = vst.msk [vmem:[#allocation2 + $0x2c0] sm:$0xff] %vm2852, %v2698
      %2942 = vst.msk [vmem:[#allocation2 + $0x2c8] sm:$0xff] %vm2852, %v2699
      %2943 = vst.msk [vmem:[#allocation2 + $0x2d0] sm:$0xff] %vm2852, %v2700
      %2944 = vst.msk [vmem:[#allocation2 + $0x2d8] sm:$0xff] %vm2852, %v2701
      %2945 = vst.msk [vmem:[#allocation2 + $0x2e0] sm:$0xff] %vm2852, %v2702
      %2946 = vst.msk [vmem:[#allocation2 + $0x2e8] sm:$0xff] %vm2852, %v2703
      %2947 = vst.msk [vmem:[#allocation2 + $0x2f0] sm:$0xff] %vm2852, %v2704
      %2948 = vst.msk [vmem:[#allocation2 + $0x2f8] sm:$0xff] %vm2852, %v2705
      %2949 = vst.msk [vmem:[#allocation2 + $0x300] sm:$0xff] %vm2852, %v2706
      %2950 = vst.msk [vmem:[#allocation2 + $0x308] sm:$0xff] %vm2852, %v2707
      %2951 = vst.msk [vmem:[#allocation2 + $0x310] sm:$0xff] %vm2852, %v2708
      %2952 = vst.msk [vmem:[#allocation2 + $0x318] sm:$0xff] %vm2852, %v2709
      %2953 = vst.msk [vmem:[#allocation2 + $0x320] sm:$0xff] %vm2852, %v2710
      %2954 = vst.msk [vmem:[#allocation2 + $0x328] sm:$0xff] %vm2852, %v2711
      %2955 = vst.msk [vmem:[#allocation2 + $0x330] sm:$0xff] %vm2852, %v2712
      %2956 = vst.msk [vmem:[#allocation2 + $0x338] sm:$0xff] %vm2852, %v2713
      %2957 = vst.msk [vmem:[#allocation2 + $0x340] sm:$0xff] %vm2852, %v2714
      %2958 = vst.msk [vmem:[#allocation2 + $0x348] sm:$0xff] %vm2852, %v2715
      %2959 = vst.msk [vmem:[#allocation2 + $0x350] sm:$0xff] %vm2852, %v2716
      %2960 = vst.msk [vmem:[#allocation2 + $0x358] sm:$0xff] %vm2852, %v2717
      %2961 = vst.msk [vmem:[#allocation2 + $0x360] sm:$0xff] %vm2852, %v2718
      %2962 = vst.msk [vmem:[#allocation2 + $0x368] sm:$0xff] %vm2852, %v2719
      %2963 = vst.msk [vmem:[#allocation2 + $0x370] sm:$0xff] %vm2852, %v2720
      %2964 = vst.msk [vmem:[#allocation2 + $0x378] sm:$0xff] %vm2852, %v2721
      %2965 = vst.msk [vmem:[#allocation2 + $0x380] sm:$0xff] %vm2852, %v2722
      %2966 = vst.msk [vmem:[#allocation2 + $0x388] sm:$0xff] %vm2852, %v2723
      %2967 = vst.msk [vmem:[#allocation2 + $0x390] sm:$0xff] %vm2852, %v2724
      %2968 = vst.msk [vmem:[#allocation2 + $0x398] sm:$0xff] %vm2852, %v2725
      %2969 = vst.msk [vmem:[#allocation2 + $0x3a0] sm:$0xff] %vm2852, %v2726
      %2970 = vst.msk [vmem:[#allocation2 + $0x3a8] sm:$0xff] %vm2852, %v2727
      %2971 = vst.msk [vmem:[#allocation2 + $0x3b0] sm:$0xff] %vm2852, %v2728
      %2972 = vst.msk [vmem:[#allocation2 + $0x3b8] sm:$0xff] %vm2852, %v2729
      %2973 = vst.msk [vmem:[#allocation2 + $0x3c0] sm:$0xff] %vm2852, %v2730
      %2974 = vst.msk [vmem:[#allocation2 + $0x3c8] sm:$0xff] %vm2852, %v2731
      %2975 = vst.msk [vmem:[#allocation2 + $0x3d0] sm:$0xff] %vm2852, %v2732
      %2976 = vst.msk [vmem:[#allocation2 + $0x3d8] sm:$0xff] %vm2852, %v2733
      %2977 = vst.msk [vmem:[#allocation2 + $0x3e0] sm:$0xff] %vm2852, %v2734
      %2978 = vst.msk [vmem:[#allocation2 + $0x3e8] sm:$0xff] %vm2852, %v2735
      %2979 = vst.msk [vmem:[#allocation2 + $0x3f0] sm:$0xff] %vm2852, %v2736
      %2980 = vst.msk [vmem:[#allocation2 + $0x3f8] sm:$0xff] %vm2852, %v2737
      %2981 = vst.msk [vmem:[#allocation2 + $0x400] sm:$0xff] %vm2852, %v2738
      %2982 = vst.msk [vmem:[#allocation2 + $0x408] sm:$0xff] %vm2852, %v2739
      %2983 = vst.msk [vmem:[#allocation2 + $0x410] sm:$0xff] %vm2852, %v2740
      %2984 = vst.msk [vmem:[#allocation2 + $0x418] sm:$0xff] %vm2852, %v2741
      %2985 = vst.msk [vmem:[#allocation2 + $0x420] sm:$0xff] %vm2852, %v2742
      %2986 = vst.msk [vmem:[#allocation2 + $0x428] sm:$0xff] %vm2852, %v2743
      %2987 = vst.msk [vmem:[#allocation2 + $0x430] sm:$0xff] %vm2852, %v2744
      %2988 = vst.msk [vmem:[#allocation2 + $0x438] sm:$0xff] %vm2852, %v2745
      %2989 = vst.msk [vmem:[#allocation2 + $0x440] sm:$0xff] %vm2852, %v2746
      %2990 = vst.msk [vmem:[#allocation2 + $0x448] sm:$0xff] %vm2852, %v2747
      %2991 = vst.msk [vmem:[#allocation2 + $0x450] sm:$0xff] %vm2852, %v2748
      %2992 = vst.msk [vmem:[#allocation2 + $0x458] sm:$0xff] %vm2852, %v2749
      %2993 = vst.msk [vmem:[#allocation2 + $0x460] sm:$0xff] %vm2852, %v2750
      %2994 = vst.msk [vmem:[#allocation2 + $0x468] sm:$0xff] %vm2852, %v2751
      %2995 = vst.msk [vmem:[#allocation2 + $0x470] sm:$0xff] %vm2852, %v2752
      %2996 = vst.msk [vmem:[#allocation2 + $0x478] sm:$0xff] %vm2852, %v2753
      %2997 = vst.msk [vmem:[#allocation2 + $0x480] sm:$0xff] %vm2852, %v2754
      %2998 = vst.msk [vmem:[#allocation2 + $0x488] sm:$0xff] %vm2852, %v2755
      %2999 = vst.msk [vmem:[#allocation2 + $0x490] sm:$0xff] %vm2852, %v2756
      %3000 = vst.msk [vmem:[#allocation2 + $0x498] sm:$0xff] %vm2852, %v2757
      %3001 = vst.msk [vmem:[#allocation2 + $0x4a0] sm:$0xff] %vm2852, %v2758
      %3002 = vst.msk [vmem:[#allocation2 + $0x4a8] sm:$0xff] %vm2852, %v2759
      %3003 = vst.msk [vmem:[#allocation2 + $0x4b0] sm:$0xff] %vm2852, %v2760
      %3004 = vst.msk [vmem:[#allocation2 + $0x4b8] sm:$0xff] %vm2852, %v2761
      %3005 = vst.msk [vmem:[#allocation2 + $0x4c0] sm:$0xff] %vm2852, %v2762
      %3006 = vst.msk [vmem:[#allocation2 + $0x4c8] sm:$0xff] %vm2852, %v2763
      %3007 = vst.msk [vmem:[#allocation2 + $0x4d0] sm:$0xff] %vm2852, %v2764
      %3008 = vst.msk [vmem:[#allocation2 + $0x4d8] sm:$0xff] %vm2852, %v2765
      %3009 = vst.msk [vmem:[#allocation2 + $0x4e0] sm:$0xff] %vm2852, %v2766
      %3010 = vst.msk [vmem:[#allocation2 + $0x4e8] sm:$0xff] %vm2852, %v2767
      %3011 = vst.msk [vmem:[#allocation2 + $0x4f0] sm:$0xff] %vm2852, %v2768
      %3012 = vst.msk [vmem:[#allocation2 + $0x4f8] sm:$0xff] %vm2852, %v2769
      %3013 = vst.msk [vmem:[#allocation2 + $0x500] sm:$0xff] %vm2852, %v2770
      %3014 = vst.msk [vmem:[#allocation2 + $0x508] sm:$0xff] %vm2852, %v2771
      %3015 = vst.msk [vmem:[#allocation2 + $0x510] sm:$0xff] %vm2852, %v2772
      %3016 = vst.msk [vmem:[#allocation2 + $0x518] sm:$0xff] %vm2852, %v2773
      %3017 = vst.msk [vmem:[#allocation2 + $0x520] sm:$0xff] %vm2852, %v2774
      %3018 = vst.msk [vmem:[#allocation2 + $0x528] sm:$0xff] %vm2852, %v2775
      %3019 = vst.msk [vmem:[#allocation2 + $0x530] sm:$0xff] %vm2852, %v2776
      %3020 = vst.msk [vmem:[#allocation2 + $0x538] sm:$0xff] %vm2852, %v2777
      %3021 = vst.msk [vmem:[#allocation2 + $0x540] sm:$0xff] %vm2852, %v2778
      %3022 = vst.msk [vmem:[#allocation2 + $0x548] sm:$0xff] %vm2852, %v2779
      %3023 = vst.msk [vmem:[#allocation2 + $0x550] sm:$0xff] %vm2852, %v2780
      %3024 = vst.msk [vmem:[#allocation2 + $0x558] sm:$0xff] %vm2852, %v2781
      %3025 = vst.msk [vmem:[#allocation2 + $0x560] sm:$0xff] %vm2852, %v2782
      %3026 = vst.msk [vmem:[#allocation2 + $0x568] sm:$0xff] %vm2852, %v2783
      %3027 = vst.msk [vmem:[#allocation2 + $0x570] sm:$0xff] %vm2852, %v2784
      %3028 = vst.msk [vmem:[#allocation2 + $0x578] sm:$0xff] %vm2852, %v2785
      %3029 = vst.msk [vmem:[#allocation2 + $0x580] sm:$0xff] %vm2852, %v2786
      %3030 = vst.msk [vmem:[#allocation2 + $0x588] sm:$0xff] %vm2852, %v2787
      %3031 = vst.msk [vmem:[#allocation2 + $0x590] sm:$0xff] %vm2852, %v2788
      %3032 = vst.msk [vmem:[#allocation2 + $0x598] sm:$0xff] %vm2852, %v2789
      %3033 = vst.msk [vmem:[#allocation2 + $0x5a0] sm:$0xff] %vm2852, %v2790
      %3034 = vst.msk [vmem:[#allocation2 + $0x5a8] sm:$0xff] %vm2852, %v2791
      %3035 = vst.msk [vmem:[#allocation2 + $0x5b0] sm:$0xff] %vm2852, %v2792
      %3036 = vst.msk [vmem:[#allocation2 + $0x5b8] sm:$0xff] %vm2852, %v2793
      %3037 = vst.msk [vmem:[#allocation2 + $0x5c0] sm:$0xff] %vm2852, %v2794
      %3038 = vst.msk [vmem:[#allocation2 + $0x5c8] sm:$0xff] %vm2852, %v2795
      %3039 = vst.msk [vmem:[#allocation2 + $0x5d0] sm:$0xff] %vm2852, %v2796
      %3040 = vst.msk [vmem:[#allocation2 + $0x5d8] sm:$0xff] %vm2852, %v2797
      %3041 = vst.msk [vmem:[#allocation2 + $0x5e0] sm:$0xff] %vm2852, %v2798
      %3042 = vst.msk [vmem:[#allocation2 + $0x5e8] sm:$0xff] %vm2852, %v2799
      %3043 = vst.msk [vmem:[#allocation2 + $0x5f0] sm:$0xff] %vm2852, %v2800
      %3044 = vst.msk [vmem:[#allocation2 + $0x5f8] sm:$0xff] %vm2852, %v2801
      %3045 = vst.msk [vmem:[#allocation2 + $0x600] sm:$0xff] %vm2852, %v2802
      %3046 = vst.msk [vmem:[#allocation2 + $0x608] sm:$0xff] %vm2852, %v2803
      %3047 = vst.msk [vmem:[#allocation2 + $0x610] sm:$0xff] %vm2852, %v2804
      %3048 = vst.msk [vmem:[#allocation2 + $0x618] sm:$0xff] %vm2852, %v2805
      %3049 = vst.msk [vmem:[#allocation2 + $0x620] sm:$0xff] %vm2852, %v2806
      %3050 = vst.msk [vmem:[#allocation2 + $0x628] sm:$0xff] %vm2852, %v2807
      %3051 = vst.msk [vmem:[#allocation2 + $0x630] sm:$0xff] %vm2852, %v2808
      %3052 = vst.msk [vmem:[#allocation2 + $0x638] sm:$0xff] %vm2852, %v2809
      %3053 = vst.msk [vmem:[#allocation2 + $0x640] sm:$0xff] %vm2852, %v2810
      %3054 = vst.msk [vmem:[#allocation2 + $0x648] sm:$0xff] %vm2852, %v2811
      %3055 = vst.msk [vmem:[#allocation2 + $0x650] sm:$0xff] %vm2852, %v2812
      %3056 = vst.msk [vmem:[#allocation2 + $0x658] sm:$0xff] %vm2852, %v2813
      %3057 = vst.msk [vmem:[#allocation2 + $0x660] sm:$0xff] %vm2852, %v2814
      %3058 = vst.msk [vmem:[#allocation2 + $0x668] sm:$0xff] %vm2852, %v2815
      %3059 = vst.msk [vmem:[#allocation2 + $0x670] sm:$0xff] %vm2852, %v2816
      %3060 = vst.msk [vmem:[#allocation2 + $0x678] sm:$0xff] %vm2852, %v2817
      %3061 = vst.msk [vmem:[#allocation2 + $0x680] sm:$0xff] %vm2852, %v2818
      %3062 = vst.msk [vmem:[#allocation2 + $0x688] sm:$0xff] %vm2852, %v2819
      %3063 = vst.msk [vmem:[#allocation2 + $0x690] sm:$0xff] %vm2852, %v2820
      %3064 = vst.msk [vmem:[#allocation2 + $0x698] sm:$0xff] %vm2852, %v2821
      %3065 = vst.msk [vmem:[#allocation2 + $0x6a0] sm:$0xff] %vm2852, %v2822
      %3066 = vst.msk [vmem:[#allocation2 + $0x6a8] sm:$0xff] %vm2852, %v2823
      %3067 = vst.msk [vmem:[#allocation2 + $0x6b0] sm:$0xff] %vm2852, %v2824
      %3068 = vst.msk [vmem:[#allocation2 + $0x6b8] sm:$0xff] %vm2852, %v2825
      %3069 = vst.msk [vmem:[#allocation2 + $0x6c0] sm:$0xff] %vm2852, %v2826
      %3070 = vst.msk [vmem:[#allocation2 + $0x6c8] sm:$0xff] %vm2852, %v2827
      %3071 = vst.msk [vmem:[#allocation2 + $0x6d0] sm:$0xff] %vm2852, %v2828
      %3072 = vst.msk [vmem:[#allocation2 + $0x6d8] sm:$0xff] %vm2852, %v2829
      %3073 = vst.msk [vmem:[#allocation2 + $0x6e0] sm:$0xff] %vm2852, %v2830
      %3074 = vst.msk [vmem:[#allocation2 + $0x6e8] sm:$0xff] %vm2852, %v2831
      %3075 = vst.msk [vmem:[#allocation2 + $0x6f0] sm:$0xff] %vm2852, %v2832
      %3076 = vst.msk [vmem:[#allocation2 + $0x6f8] sm:$0xff] %vm2852, %v2833
      %3077 = vst.msk [vmem:[#allocation2 + $0x700] sm:$0xff] %vm2852, %v2834
      %3078 = vst.msk [vmem:[#allocation2 + $0x708] sm:$0xff] %vm2852, %v2835
      %3079 = vst.msk [vmem:[#allocation2 + $0x710] sm:$0xff] %vm2852, %v2836
      %3080 = vst.msk [vmem:[#allocation2 + $0x718] sm:$0xff] %vm2852, %v2837
      %3081 = vst.msk [vmem:[#allocation2 + $0x720] sm:$0xff] %vm2852, %v2838
      %3082 = vst.msk [vmem:[#allocation2 + $0x728] sm:$0xff] %vm2852, %v2839
      %3083 = vst.msk [vmem:[#allocation2 + $0x730] sm:$0xff] %vm2852, %v2840
      %3084 = vst.msk [vmem:[#allocation2 + $0x738] sm:$0xff] %vm2852, %v2841
      %3085 = vst.msk [vmem:[#allocation2 + $0x740] sm:$0xff] %vm2852, %v2842
      %3086 = vst.msk [vmem:[#allocation2 + $0x748] sm:$0xff] %vm2852, %v2843
      %3087 = vst.msk [vmem:[#allocation2 + $0x750] sm:$0xff] %vm2852, %v2844
      %3088 = vst.msk [vmem:[#allocation2 + $0x758] sm:$0xff] %vm2852, %v2845
      %3089 = vst.msk [vmem:[#allocation2 + $0x760] sm:$0xff] %vm2852, %v2846
      %3090 = vst.msk [vmem:[#allocation2 + $0x768] sm:$0xff] %vm2852, %v2847
      %3091 = vst.msk [vmem:[#allocation2 + $0x770] sm:$0xff] %vm2852, %v2848
      %3092 = vst.msk [vmem:[#allocation2 + $0x778] sm:$0xff] %vm2852, %v2849
      %3093 = vst.msk [vmem:[#allocation2 + $0x780] sm:$0xff] %vm2852, %v2850
      %3094 = vst.msk [vmem:[#allocation2 + $0x788] sm:$0xff] %vm2852, %v2851
      // Predicated region
      $region45: #{tpu_custom_call.1} parent=39 // pred_check
        %p3095 = pneg %p274
      $region46: #{tpu_custom_call.1} parent=39 // pred_check_branch
        %3097 = sbr.rel (%p3095) target = $region48
      $region47: #{tpu_custom_call.1} parent=39 // pred_region
        %v3098 = vld [vmem:[#allocation2] sm:$0xff]
        %v3099 = vld [vmem:[#allocation2 + $0x8] sm:$0xff]
        %v3100 = vld [vmem:[#allocation2 + $0x10] sm:$0xff]
        %v3101 = vld [vmem:[#allocation2 + $0x18] sm:$0xff]
        %v3102 = vld [vmem:[#allocation2 + $0x20] sm:$0xff]
        %v3103 = vld [vmem:[#allocation2 + $0x28] sm:$0xff]
        %v3104 = vld [vmem:[#allocation2 + $0x30] sm:$0xff]
        %v3105 = vld [vmem:[#allocation2 + $0x38] sm:$0xff]
        %v3106 = vld [vmem:[#allocation2 + $0x40] sm:$0xff]
        %v3107 = vld [vmem:[#allocation2 + $0x48] sm:$0xff]
        %v3108 = vld [vmem:[#allocation2 + $0x50] sm:$0xff]
        %v3109 = vld [vmem:[#allocation2 + $0x58] sm:$0xff]
        %v3110 = vld [vmem:[#allocation2 + $0x60] sm:$0xff]
        %v3111 = vld [vmem:[#allocation2 + $0x68] sm:$0xff]
        %v3112 = vld [vmem:[#allocation2 + $0x70] sm:$0xff]
        %v3113 = vld [vmem:[#allocation2 + $0x78] sm:$0xff]
        %v3114 = vld [vmem:[#allocation2 + $0x80] sm:$0xff]
        %v3115 = vld [vmem:[#allocation2 + $0x88] sm:$0xff]
        %v3116 = vld [vmem:[#allocation2 + $0x90] sm:$0xff]
        %v3117 = vld [vmem:[#allocation2 + $0x98] sm:$0xff]
        %v3118 = vld [vmem:[#allocation2 + $0xa0] sm:$0xff]
        %v3119 = vld [vmem:[#allocation2 + $0xa8] sm:$0xff]
        %v3120 = vld [vmem:[#allocation2 + $0xb0] sm:$0xff]
        %v3121 = vld [vmem:[#allocation2 + $0xb8] sm:$0xff]
        %v3122 = vld [vmem:[#allocation2 + $0xc0] sm:$0xff]
        %v3123 = vld [vmem:[#allocation2 + $0xc8] sm:$0xff]
        %v3124 = vld [vmem:[#allocation2 + $0xd0] sm:$0xff]
        %v3125 = vld [vmem:[#allocation2 + $0xd8] sm:$0xff]
        %v3126 = vld [vmem:[#allocation2 + $0xe0] sm:$0xff]
        %v3127 = vld [vmem:[#allocation2 + $0xe8] sm:$0xff]
        %v3128 = vld [vmem:[#allocation2 + $0xf0] sm:$0xff]
        %v3129 = vld [vmem:[#allocation2 + $0xf8] sm:$0xff]
        %v3130 = vld [vmem:[#allocation2 + $0x100] sm:$0xff]
        %v3131 = vld [vmem:[#allocation2 + $0x108] sm:$0xff]
        %v3132 = vld [vmem:[#allocation2 + $0x110] sm:$0xff]
        %v3133 = vld [vmem:[#allocation2 + $0x118] sm:$0xff]
        %v3134 = vld [vmem:[#allocation2 + $0x120] sm:$0xff]
        %v3135 = vld [vmem:[#allocation2 + $0x128] sm:$0xff]
        %v3136 = vld [vmem:[#allocation2 + $0x130] sm:$0xff]
        %v3137 = vld [vmem:[#allocation2 + $0x138] sm:$0xff]
        %v3138 = vld [vmem:[#allocation2 + $0x140] sm:$0xff]
        %v3139 = vld [vmem:[#allocation2 + $0x148] sm:$0xff]
        %v3140 = vld [vmem:[#allocation2 + $0x150] sm:$0xff]
        %v3141 = vld [vmem:[#allocation2 + $0x158] sm:$0xff]
        %v3142 = vld [vmem:[#allocation2 + $0x160] sm:$0xff]
        %v3143 = vld [vmem:[#allocation2 + $0x168] sm:$0xff]
        %v3144 = vld [vmem:[#allocation2 + $0x170] sm:$0xff]
        %v3145 = vld [vmem:[#allocation2 + $0x178] sm:$0xff]
        %v3146 = vld [vmem:[#allocation2 + $0x180] sm:$0xff]
        %v3147 = vld [vmem:[#allocation2 + $0x188] sm:$0xff]
        %v3148 = vld [vmem:[#allocation2 + $0x190] sm:$0xff]
        %v3149 = vld [vmem:[#allocation2 + $0x198] sm:$0xff]
        %v3150 = vld [vmem:[#allocation2 + $0x1a0] sm:$0xff]
        %v3151 = vld [vmem:[#allocation2 + $0x1a8] sm:$0xff]
        %v3152 = vld [vmem:[#allocation2 + $0x1b0] sm:$0xff]
        %v3153 = vld [vmem:[#allocation2 + $0x1b8] sm:$0xff]
        %v3154 = vld [vmem:[#allocation2 + $0x1c0] sm:$0xff]
        %v3155 = vld [vmem:[#allocation2 + $0x1c8] sm:$0xff]
        %v3156 = vld [vmem:[#allocation2 + $0x1d0] sm:$0xff]
        %v3157 = vld [vmem:[#allocation2 + $0x1d8] sm:$0xff]
        %v3158 = vld [vmem:[#allocation2 + $0x1e0] sm:$0xff]
        %v3159 = vld [vmem:[#allocation2 + $0x1e8] sm:$0xff]
        %v3160 = vld [vmem:[#allocation2 + $0x1f0] sm:$0xff]
        %v3161 = vld [vmem:[#allocation2 + $0x1f8] sm:$0xff]
        %v3162 = vld [vmem:[#allocation2 + $0x200] sm:$0xff]
        %v3163 = vld [vmem:[#allocation2 + $0x208] sm:$0xff]
        %v3164 = vld [vmem:[#allocation2 + $0x210] sm:$0xff]
        %v3165 = vld [vmem:[#allocation2 + $0x218] sm:$0xff]
        %v3166 = vld [vmem:[#allocation2 + $0x220] sm:$0xff]
        %v3167 = vld [vmem:[#allocation2 + $0x228] sm:$0xff]
        %v3168 = vld [vmem:[#allocation2 + $0x230] sm:$0xff]
        %v3169 = vld [vmem:[#allocation2 + $0x238] sm:$0xff]
        %v3170 = vld [vmem:[#allocation2 + $0x240] sm:$0xff]
        %v3171 = vld [vmem:[#allocation2 + $0x248] sm:$0xff]
        %v3172 = vld [vmem:[#allocation2 + $0x250] sm:$0xff]
        %v3173 = vld [vmem:[#allocation2 + $0x258] sm:$0xff]
        %v3174 = vld [vmem:[#allocation2 + $0x260] sm:$0xff]
        %v3175 = vld [vmem:[#allocation2 + $0x268] sm:$0xff]
        %v3176 = vld [vmem:[#allocation2 + $0x270] sm:$0xff]
        %v3177 = vld [vmem:[#allocation2 + $0x278] sm:$0xff]
        %v3178 = vld [vmem:[#allocation2 + $0x280] sm:$0xff]
        %v3179 = vld [vmem:[#allocation2 + $0x288] sm:$0xff]
        %v3180 = vld [vmem:[#allocation2 + $0x290] sm:$0xff]
        %v3181 = vld [vmem:[#allocation2 + $0x298] sm:$0xff]
        %v3182 = vld [vmem:[#allocation2 + $0x2a0] sm:$0xff]
        %v3183 = vld [vmem:[#allocation2 + $0x2a8] sm:$0xff]
        %v3184 = vld [vmem:[#allocation2 + $0x2b0] sm:$0xff]
        %v3185 = vld [vmem:[#allocation2 + $0x2b8] sm:$0xff]
        %v3186 = vld [vmem:[#allocation2 + $0x2c0] sm:$0xff]
        %v3187 = vld [vmem:[#allocation2 + $0x2c8] sm:$0xff]
        %v3188 = vld [vmem:[#allocation2 + $0x2d0] sm:$0xff]
        %v3189 = vld [vmem:[#allocation2 + $0x2d8] sm:$0xff]
        %v3190 = vld [vmem:[#allocation2 + $0x2e0] sm:$0xff]
        %v3191 = vld [vmem:[#allocation2 + $0x2e8] sm:$0xff]
        %v3192 = vld [vmem:[#allocation2 + $0x2f0] sm:$0xff]
        %v3193 = vld [vmem:[#allocation2 + $0x2f8] sm:$0xff]
        %v3194 = vld [vmem:[#allocation2 + $0x300] sm:$0xff]
        %v3195 = vld [vmem:[#allocation2 + $0x308] sm:$0xff]
        %v3196 = vld [vmem:[#allocation2 + $0x310] sm:$0xff]
        %v3197 = vld [vmem:[#allocation2 + $0x318] sm:$0xff]
        %v3198 = vld [vmem:[#allocation2 + $0x320] sm:$0xff]
        %v3199 = vld [vmem:[#allocation2 + $0x328] sm:$0xff]
        %v3200 = vld [vmem:[#allocation2 + $0x330] sm:$0xff]
        %v3201 = vld [vmem:[#allocation2 + $0x338] sm:$0xff]
        %v3202 = vld [vmem:[#allocation2 + $0x340] sm:$0xff]
        %v3203 = vld [vmem:[#allocation2 + $0x348] sm:$0xff]
        %v3204 = vld [vmem:[#allocation2 + $0x350] sm:$0xff]
        %v3205 = vld [vmem:[#allocation2 + $0x358] sm:$0xff]
        %v3206 = vld [vmem:[#allocation2 + $0x360] sm:$0xff]
        %v3207 = vld [vmem:[#allocation2 + $0x368] sm:$0xff]
        %v3208 = vld [vmem:[#allocation2 + $0x370] sm:$0xff]
        %v3209 = vld [vmem:[#allocation2 + $0x378] sm:$0xff]
        %v3210 = vld [vmem:[#allocation2 + $0x380] sm:$0xff]
        %v3211 = vld [vmem:[#allocation2 + $0x388] sm:$0xff]
        %v3212 = vld [vmem:[#allocation2 + $0x390] sm:$0xff]
        %v3213 = vld [vmem:[#allocation2 + $0x398] sm:$0xff]
        %v3214 = vld [vmem:[#allocation2 + $0x3a0] sm:$0xff]
        %v3215 = vld [vmem:[#allocation2 + $0x3a8] sm:$0xff]
        %v3216 = vld [vmem:[#allocation2 + $0x3b0] sm:$0xff]
        %v3217 = vld [vmem:[#allocation2 + $0x3b8] sm:$0xff]
        %v3218 = vld [vmem:[#allocation2 + $0x3c0] sm:$0xff]
        %v3219 = vld [vmem:[#allocation2 + $0x3c8] sm:$0xff]
        %v3220 = vld [vmem:[#allocation2 + $0x3d0] sm:$0xff]
        %v3221 = vld [vmem:[#allocation2 + $0x3d8] sm:$0xff]
        %v3222 = vld [vmem:[#allocation2 + $0x3e0] sm:$0xff]
        %v3223 = vld [vmem:[#allocation2 + $0x3e8] sm:$0xff]
        %v3224 = vld [vmem:[#allocation2 + $0x3f0] sm:$0xff]
        %v3225 = vld [vmem:[#allocation2 + $0x3f8] sm:$0xff]
        %v3226 = vld [vmem:[#allocation2 + $0x400] sm:$0xff]
        %v3227 = vld [vmem:[#allocation2 + $0x408] sm:$0xff]
        %v3228 = vld [vmem:[#allocation2 + $0x410] sm:$0xff]
        %v3229 = vld [vmem:[#allocation2 + $0x418] sm:$0xff]
        %v3230 = vld [vmem:[#allocation2 + $0x420] sm:$0xff]
        %v3231 = vld [vmem:[#allocation2 + $0x428] sm:$0xff]
        %v3232 = vld [vmem:[#allocation2 + $0x430] sm:$0xff]
        %v3233 = vld [vmem:[#allocation2 + $0x438] sm:$0xff]
        %v3234 = vld [vmem:[#allocation2 + $0x440] sm:$0xff]
        %v3235 = vld [vmem:[#allocation2 + $0x448] sm:$0xff]
        %v3236 = vld [vmem:[#allocation2 + $0x450] sm:$0xff]
        %v3237 = vld [vmem:[#allocation2 + $0x458] sm:$0xff]
        %v3238 = vld [vmem:[#allocation2 + $0x460] sm:$0xff]
        %v3239 = vld [vmem:[#allocation2 + $0x468] sm:$0xff]
        %v3240 = vld [vmem:[#allocation2 + $0x470] sm:$0xff]
        %v3241 = vld [vmem:[#allocation2 + $0x478] sm:$0xff]
        %v3242 = vld [vmem:[#allocation2 + $0x480] sm:$0xff]
        %v3243 = vld [vmem:[#allocation2 + $0x488] sm:$0xff]
        %v3244 = vld [vmem:[#allocation2 + $0x490] sm:$0xff]
        %v3245 = vld [vmem:[#allocation2 + $0x498] sm:$0xff]
        %v3246 = vld [vmem:[#allocation2 + $0x4a0] sm:$0xff]
        %v3247 = vld [vmem:[#allocation2 + $0x4a8] sm:$0xff]
        %v3248 = vld [vmem:[#allocation2 + $0x4b0] sm:$0xff]
        %v3249 = vld [vmem:[#allocation2 + $0x4b8] sm:$0xff]
        %v3250 = vld [vmem:[#allocation2 + $0x4c0] sm:$0xff]
        %v3251 = vld [vmem:[#allocation2 + $0x4c8] sm:$0xff]
        %v3252 = vld [vmem:[#allocation2 + $0x4d0] sm:$0xff]
        %v3253 = vld [vmem:[#allocation2 + $0x4d8] sm:$0xff]
        %v3254 = vld [vmem:[#allocation2 + $0x4e0] sm:$0xff]
        %v3255 = vld [vmem:[#allocation2 + $0x4e8] sm:$0xff]
        %v3256 = vld [vmem:[#allocation2 + $0x4f0] sm:$0xff]
        %v3257 = vld [vmem:[#allocation2 + $0x4f8] sm:$0xff]
        %v3258 = vld [vmem:[#allocation2 + $0x500] sm:$0xff]
        %v3259 = vld [vmem:[#allocation2 + $0x508] sm:$0xff]
        %v3260 = vld [vmem:[#allocation2 + $0x510] sm:$0xff]
        %v3261 = vld [vmem:[#allocation2 + $0x518] sm:$0xff]
        %v3262 = vld [vmem:[#allocation2 + $0x520] sm:$0xff]
        %v3263 = vld [vmem:[#allocation2 + $0x528] sm:$0xff]
        %v3264 = vld [vmem:[#allocation2 + $0x530] sm:$0xff]
        %v3265 = vld [vmem:[#allocation2 + $0x538] sm:$0xff]
        %v3266 = vld [vmem:[#allocation2 + $0x540] sm:$0xff]
        %v3267 = vld [vmem:[#allocation2 + $0x548] sm:$0xff]
        %v3268 = vld [vmem:[#allocation2 + $0x550] sm:$0xff]
        %v3269 = vld [vmem:[#allocation2 + $0x558] sm:$0xff]
        %v3270 = vld [vmem:[#allocation2 + $0x560] sm:$0xff]
        %v3271 = vld [vmem:[#allocation2 + $0x568] sm:$0xff]
        %v3272 = vld [vmem:[#allocation2 + $0x570] sm:$0xff]
        %v3273 = vld [vmem:[#allocation2 + $0x578] sm:$0xff]
        %v3274 = vld [vmem:[#allocation2 + $0x580] sm:$0xff]
        %v3275 = vld [vmem:[#allocation2 + $0x588] sm:$0xff]
        %v3276 = vld [vmem:[#allocation2 + $0x590] sm:$0xff]
        %v3277 = vld [vmem:[#allocation2 + $0x598] sm:$0xff]
        %v3278 = vld [vmem:[#allocation2 + $0x5a0] sm:$0xff]
        %v3279 = vld [vmem:[#allocation2 + $0x5a8] sm:$0xff]
        %v3280 = vld [vmem:[#allocation2 + $0x5b0] sm:$0xff]
        %v3281 = vld [vmem:[#allocation2 + $0x5b8] sm:$0xff]
        %v3282 = vld [vmem:[#allocation2 + $0x5c0] sm:$0xff]
        %v3283 = vld [vmem:[#allocation2 + $0x5c8] sm:$0xff]
        %v3284 = vld [vmem:[#allocation2 + $0x5d0] sm:$0xff]
        %v3285 = vld [vmem:[#allocation2 + $0x5d8] sm:$0xff]
        %v3286 = vld [vmem:[#allocation2 + $0x5e0] sm:$0xff]
        %v3287 = vld [vmem:[#allocation2 + $0x5e8] sm:$0xff]
        %v3288 = vld [vmem:[#allocation2 + $0x5f0] sm:$0xff]
        %v3289 = vld [vmem:[#allocation2 + $0x5f8] sm:$0xff]
        %v3290 = vld [vmem:[#allocation2 + $0x600] sm:$0xff]
        %v3291 = vld [vmem:[#allocation2 + $0x608] sm:$0xff]
        %v3292 = vld [vmem:[#allocation2 + $0x610] sm:$0xff]
        %v3293 = vld [vmem:[#allocation2 + $0x618] sm:$0xff]
        %v3294 = vld [vmem:[#allocation2 + $0x620] sm:$0xff]
        %v3295 = vld [vmem:[#allocation2 + $0x628] sm:$0xff]
        %v3296 = vld [vmem:[#allocation2 + $0x630] sm:$0xff]
        %v3297 = vld [vmem:[#allocation2 + $0x638] sm:$0xff]
        %v3298 = vld [vmem:[#allocation2 + $0x640] sm:$0xff]
        %v3299 = vld [vmem:[#allocation2 + $0x648] sm:$0xff]
        %v3300 = vld [vmem:[#allocation2 + $0x650] sm:$0xff]
        %v3301 = vld [vmem:[#allocation2 + $0x658] sm:$0xff]
        %v3302 = vld [vmem:[#allocation2 + $0x660] sm:$0xff]
        %v3303 = vld [vmem:[#allocation2 + $0x668] sm:$0xff]
        %v3304 = vld [vmem:[#allocation2 + $0x670] sm:$0xff]
        %v3305 = vld [vmem:[#allocation2 + $0x678] sm:$0xff]
        %v3306 = vld [vmem:[#allocation2 + $0x680] sm:$0xff]
        %v3307 = vld [vmem:[#allocation2 + $0x688] sm:$0xff]
        %v3308 = vld [vmem:[#allocation2 + $0x690] sm:$0xff]
        %v3309 = vld [vmem:[#allocation2 + $0x698] sm:$0xff]
        %v3310 = vld [vmem:[#allocation2 + $0x6a0] sm:$0xff]
        %v3311 = vld [vmem:[#allocation2 + $0x6a8] sm:$0xff]
        %v3312 = vld [vmem:[#allocation2 + $0x6b0] sm:$0xff]
        %v3313 = vld [vmem:[#allocation2 + $0x6b8] sm:$0xff]
        %v3314 = vld [vmem:[#allocation2 + $0x6c0] sm:$0xff]
        %v3315 = vld [vmem:[#allocation2 + $0x6c8] sm:$0xff]
        %v3316 = vld [vmem:[#allocation2 + $0x6d0] sm:$0xff]
        %v3317 = vld [vmem:[#allocation2 + $0x6d8] sm:$0xff]
        %v3318 = vld [vmem:[#allocation2 + $0x6e0] sm:$0xff]
        %v3319 = vld [vmem:[#allocation2 + $0x6e8] sm:$0xff]
        %v3320 = vld [vmem:[#allocation2 + $0x6f0] sm:$0xff]
        %v3321 = vld [vmem:[#allocation2 + $0x6f8] sm:$0xff]
        %v3322 = vld [vmem:[#allocation2 + $0x700] sm:$0xff]
        %v3323 = vld [vmem:[#allocation2 + $0x708] sm:$0xff]
        %v3324 = vld [vmem:[#allocation2 + $0x710] sm:$0xff]
        %v3325 = vld [vmem:[#allocation2 + $0x718] sm:$0xff]
        %v3326 = vld [vmem:[#allocation2 + $0x720] sm:$0xff]
        %v3327 = vld [vmem:[#allocation2 + $0x728] sm:$0xff]
        %v3328 = vld [vmem:[#allocation2 + $0x730] sm:$0xff]
        %v3329 = vld [vmem:[#allocation2 + $0x738] sm:$0xff]
        %v3330 = vld [vmem:[#allocation2 + $0x740] sm:$0xff]
        %v3331 = vld [vmem:[#allocation2 + $0x748] sm:$0xff]
        %v3332 = vld [vmem:[#allocation2 + $0x750] sm:$0xff]
        %v3333 = vld [vmem:[#allocation2 + $0x758] sm:$0xff]
        %v3334 = vld [vmem:[#allocation2 + $0x760] sm:$0xff]
        %v3335 = vld [vmem:[#allocation2 + $0x768] sm:$0xff]
        %v3336 = vld [vmem:[#allocation2 + $0x770] sm:$0xff]
        %v3337 = vld [vmem:[#allocation2 + $0x778] sm:$0xff]
        %v3338 = vld [vmem:[#allocation2 + $0x780] sm:$0xff]
        %v3339 = vld [vmem:[#allocation2 + $0x788] sm:$0xff]
        %v3340 = vld [vmem:[%s2] sm:$0x1]
        %v3342 = vperm.slane %v3340, 0
        %v3344 = vmul.f32 %v3098, %v3342
        %v3345 = vmul.f32 %v3099, %v3342
        %v3346 = vmul.f32 %v3100, %v3342
        %v3347 = vmul.f32 %v3101, %v3342
        %v3348 = vmul.f32 %v3102, %v3342
        %v3349 = vmul.f32 %v3103, %v3342
        %v3350 = vmul.f32 %v3104, %v3342
        %v3351 = vmul.f32 %v3105, %v3342
        %v3352 = vmul.f32 %v3106, %v3342
        %v3353 = vmul.f32 %v3107, %v3342
        %v3354 = vmul.f32 %v3108, %v3342
        %v3355 = vmul.f32 %v3109, %v3342
        %v3356 = vmul.f32 %v3110, %v3342
        %v3357 = vmul.f32 %v3111, %v3342
        %v3358 = vmul.f32 %v3112, %v3342
        %v3359 = vmul.f32 %v3113, %v3342
        %v3360 = vmul.f32 %v3114, %v3342
        %v3361 = vmul.f32 %v3115, %v3342
        %v3362 = vmul.f32 %v3116, %v3342
        %v3363 = vmul.f32 %v3117, %v3342
        %v3364 = vmul.f32 %v3118, %v3342
        %v3365 = vmul.f32 %v3119, %v3342
        %v3366 = vmul.f32 %v3120, %v3342
        %v3367 = vmul.f32 %v3121, %v3342
        %v3368 = vmul.f32 %v3122, %v3342
        %v3369 = vmul.f32 %v3123, %v3342
        %v3370 = vmul.f32 %v3124, %v3342
        %v3371 = vmul.f32 %v3125, %v3342
        %v3372 = vmul.f32 %v3126, %v3342
        %v3373 = vmul.f32 %v3127, %v3342
        %v3374 = vmul.f32 %v3128, %v3342
        %v3375 = vmul.f32 %v3129, %v3342
        %v3376 = vmul.f32 %v3130, %v3342
        %v3377 = vmul.f32 %v3131, %v3342
        %v3378 = vmul.f32 %v3132, %v3342
        %v3379 = vmul.f32 %v3133, %v3342
        %v3380 = vmul.f32 %v3134, %v3342
        %v3381 = vmul.f32 %v3135, %v3342
        %v3382 = vmul.f32 %v3136, %v3342
        %v3383 = vmul.f32 %v3137, %v3342
        %v3384 = vmul.f32 %v3138, %v3342
        %v3385 = vmul.f32 %v3139, %v3342
        %v3386 = vmul.f32 %v3140, %v3342
        %v3387 = vmul.f32 %v3141, %v3342
        %v3388 = vmul.f32 %v3142, %v3342
        %v3389 = vmul.f32 %v3143, %v3342
        %v3390 = vmul.f32 %v3144, %v3342
        %v3391 = vmul.f32 %v3145, %v3342
        %v3392 = vmul.f32 %v3146, %v3342
        %v3393 = vmul.f32 %v3147, %v3342
        %v3394 = vmul.f32 %v3148, %v3342
        %v3395 = vmul.f32 %v3149, %v3342
        %v3396 = vmul.f32 %v3150, %v3342
        %v3397 = vmul.f32 %v3151, %v3342
        %v3398 = vmul.f32 %v3152, %v3342
        %v3399 = vmul.f32 %v3153, %v3342
        %v3400 = vmul.f32 %v3154, %v3342
        %v3401 = vmul.f32 %v3155, %v3342
        %v3402 = vmul.f32 %v3156, %v3342
        %v3403 = vmul.f32 %v3157, %v3342
        %v3404 = vmul.f32 %v3158, %v3342
        %v3405 = vmul.f32 %v3159, %v3342
        %v3406 = vmul.f32 %v3160, %v3342
        %v3407 = vmul.f32 %v3161, %v3342
        %v3408 = vmul.f32 %v3162, %v3342
        %v3409 = vmul.f32 %v3163, %v3342
        %v3410 = vmul.f32 %v3164, %v3342
        %v3411 = vmul.f32 %v3165, %v3342
        %v3412 = vmul.f32 %v3166, %v3342
        %v3413 = vmul.f32 %v3167, %v3342
        %v3414 = vmul.f32 %v3168, %v3342
        %v3415 = vmul.f32 %v3169, %v3342
        %v3416 = vmul.f32 %v3170, %v3342
        %v3417 = vmul.f32 %v3171, %v3342
        %v3418 = vmul.f32 %v3172, %v3342
        %v3419 = vmul.f32 %v3173, %v3342
        %v3420 = vmul.f32 %v3174, %v3342
        %v3421 = vmul.f32 %v3175, %v3342
        %v3422 = vmul.f32 %v3176, %v3342
        %v3423 = vmul.f32 %v3177, %v3342
        %v3424 = vmul.f32 %v3178, %v3342
        %v3425 = vmul.f32 %v3179, %v3342
        %v3426 = vmul.f32 %v3180, %v3342
        %v3427 = vmul.f32 %v3181, %v3342
        %v3428 = vmul.f32 %v3182, %v3342
        %v3429 = vmul.f32 %v3183, %v3342
        %v3430 = vmul.f32 %v3184, %v3342
        %v3431 = vmul.f32 %v3185, %v3342
        %v3432 = vmul.f32 %v3186, %v3342
        %v3433 = vmul.f32 %v3187, %v3342
        %v3434 = vmul.f32 %v3188, %v3342
        %v3435 = vmul.f32 %v3189, %v3342
        %v3436 = vmul.f32 %v3190, %v3342
        %v3437 = vmul.f32 %v3191, %v3342
        %v3438 = vmul.f32 %v3192, %v3342
        %v3439 = vmul.f32 %v3193, %v3342
        %v3440 = vmul.f32 %v3194, %v3342
        %v3441 = vmul.f32 %v3195, %v3342
        %v3442 = vmul.f32 %v3196, %v3342
        %v3443 = vmul.f32 %v3197, %v3342
        %v3444 = vmul.f32 %v3198, %v3342
        %v3445 = vmul.f32 %v3199, %v3342
        %v3446 = vmul.f32 %v3200, %v3342
        %v3447 = vmul.f32 %v3201, %v3342
        %v3448 = vmul.f32 %v3202, %v3342
        %v3449 = vmul.f32 %v3203, %v3342
        %v3450 = vmul.f32 %v3204, %v3342
        %v3451 = vmul.f32 %v3205, %v3342
        %v3452 = vmul.f32 %v3206, %v3342
        %v3453 = vmul.f32 %v3207, %v3342
        %v3454 = vmul.f32 %v3208, %v3342
        %v3455 = vmul.f32 %v3209, %v3342
        %v3456 = vmul.f32 %v3210, %v3342
        %v3457 = vmul.f32 %v3211, %v3342
        %v3458 = vmul.f32 %v3212, %v3342
        %v3459 = vmul.f32 %v3213, %v3342
        %v3460 = vmul.f32 %v3214, %v3342
        %v3461 = vmul.f32 %v3215, %v3342
        %v3462 = vmul.f32 %v3216, %v3342
        %v3463 = vmul.f32 %v3217, %v3342
        %v3464 = vmul.f32 %v3218, %v3342
        %v3465 = vmul.f32 %v3219, %v3342
        %v3466 = vmul.f32 %v3220, %v3342
        %v3467 = vmul.f32 %v3221, %v3342
        %v3468 = vmul.f32 %v3222, %v3342
        %v3469 = vmul.f32 %v3223, %v3342
        %v3470 = vmul.f32 %v3224, %v3342
        %v3471 = vmul.f32 %v3225, %v3342
        %v3472 = vmul.f32 %v3226, %v3342
        %v3473 = vmul.f32 %v3227, %v3342
        %v3474 = vmul.f32 %v3228, %v3342
        %v3475 = vmul.f32 %v3229, %v3342
        %v3476 = vmul.f32 %v3230, %v3342
        %v3477 = vmul.f32 %v3231, %v3342
        %v3478 = vmul.f32 %v3232, %v3342
        %v3479 = vmul.f32 %v3233, %v3342
        %v3480 = vmul.f32 %v3234, %v3342
        %v3481 = vmul.f32 %v3235, %v3342
        %v3482 = vmul.f32 %v3236, %v3342
        %v3483 = vmul.f32 %v3237, %v3342
        %v3484 = vmul.f32 %v3238, %v3342
        %v3485 = vmul.f32 %v3239, %v3342
        %v3486 = vmul.f32 %v3240, %v3342
        %v3487 = vmul.f32 %v3241, %v3342
        %v3488 = vmul.f32 %v3242, %v3342
        %v3489 = vmul.f32 %v3243, %v3342
        %v3490 = vmul.f32 %v3244, %v3342
        %v3491 = vmul.f32 %v3245, %v3342
        %v3492 = vmul.f32 %v3246, %v3342
        %v3493 = vmul.f32 %v3247, %v3342
        %v3494 = vmul.f32 %v3248, %v3342
        %v3495 = vmul.f32 %v3249, %v3342
        %v3496 = vmul.f32 %v3250, %v3342
        %v3497 = vmul.f32 %v3251, %v3342
        %v3498 = vmul.f32 %v3252, %v3342
        %v3499 = vmul.f32 %v3253, %v3342
        %v3500 = vmul.f32 %v3254, %v3342
        %v3501 = vmul.f32 %v3255, %v3342
        %v3502 = vmul.f32 %v3256, %v3342
        %v3503 = vmul.f32 %v3257, %v3342
        %v3504 = vmul.f32 %v3258, %v3342
        %v3505 = vmul.f32 %v3259, %v3342
        %v3506 = vmul.f32 %v3260, %v3342
        %v3507 = vmul.f32 %v3261, %v3342
        %v3508 = vmul.f32 %v3262, %v3342
        %v3509 = vmul.f32 %v3263, %v3342
        %v3510 = vmul.f32 %v3264, %v3342
        %v3511 = vmul.f32 %v3265, %v3342
        %v3512 = vmul.f32 %v3266, %v3342
        %v3513 = vmul.f32 %v3267, %v3342
        %v3514 = vmul.f32 %v3268, %v3342
        %v3515 = vmul.f32 %v3269, %v3342
        %v3516 = vmul.f32 %v3270, %v3342
        %v3517 = vmul.f32 %v3271, %v3342
        %v3518 = vmul.f32 %v3272, %v3342
        %v3519 = vmul.f32 %v3273, %v3342
        %v3520 = vmul.f32 %v3274, %v3342
        %v3521 = vmul.f32 %v3275, %v3342
        %v3522 = vmul.f32 %v3276, %v3342
        %v3523 = vmul.f32 %v3277, %v3342
        %v3524 = vmul.f32 %v3278, %v3342
        %v3525 = vmul.f32 %v3279, %v3342
        %v3526 = vmul.f32 %v3280, %v3342
        %v3527 = vmul.f32 %v3281, %v3342
        %v3528 = vmul.f32 %v3282, %v3342
        %v3529 = vmul.f32 %v3283, %v3342
        %v3530 = vmul.f32 %v3284, %v3342
        %v3531 = vmul.f32 %v3285, %v3342
        %v3532 = vmul.f32 %v3286, %v3342
        %v3533 = vmul.f32 %v3287, %v3342
        %v3534 = vmul.f32 %v3288, %v3342
        %v3535 = vmul.f32 %v3289, %v3342
        %v3536 = vmul.f32 %v3290, %v3342
        %v3537 = vmul.f32 %v3291, %v3342
        %v3538 = vmul.f32 %v3292, %v3342
        %v3539 = vmul.f32 %v3293, %v3342
        %v3540 = vmul.f32 %v3294, %v3342
        %v3541 = vmul.f32 %v3295, %v3342
        %v3542 = vmul.f32 %v3296, %v3342
        %v3543 = vmul.f32 %v3297, %v3342
        %v3544 = vmul.f32 %v3298, %v3342
        %v3545 = vmul.f32 %v3299, %v3342
        %v3546 = vmul.f32 %v3300, %v3342
        %v3547 = vmul.f32 %v3301, %v3342
        %v3548 = vmul.f32 %v3302, %v3342
        %v3549 = vmul.f32 %v3303, %v3342
        %v3550 = vmul.f32 %v3304, %v3342
        %v3551 = vmul.f32 %v3305, %v3342
        %v3552 = vmul.f32 %v3306, %v3342
        %v3553 = vmul.f32 %v3307, %v3342
        %v3554 = vmul.f32 %v3308, %v3342
        %v3555 = vmul.f32 %v3309, %v3342
        %v3556 = vmul.f32 %v3310, %v3342
        %v3557 = vmul.f32 %v3311, %v3342
        %v3558 = vmul.f32 %v3312, %v3342
        %v3559 = vmul.f32 %v3313, %v3342
        %v3560 = vmul.f32 %v3314, %v3342
        %v3561 = vmul.f32 %v3315, %v3342
        %v3562 = vmul.f32 %v3316, %v3342
        %v3563 = vmul.f32 %v3317, %v3342
        %v3564 = vmul.f32 %v3318, %v3342
        %v3565 = vmul.f32 %v3319, %v3342
        %v3566 = vmul.f32 %v3320, %v3342
        %v3567 = vmul.f32 %v3321, %v3342
        %v3568 = vmul.f32 %v3322, %v3342
        %v3569 = vmul.f32 %v3323, %v3342
        %v3570 = vmul.f32 %v3324, %v3342
        %v3571 = vmul.f32 %v3325, %v3342
        %v3572 = vmul.f32 %v3326, %v3342
        %v3573 = vmul.f32 %v3327, %v3342
        %v3574 = vmul.f32 %v3328, %v3342
        %v3575 = vmul.f32 %v3329, %v3342
        %v3576 = vmul.f32 %v3330, %v3342
        %v3577 = vmul.f32 %v3331, %v3342
        %v3578 = vmul.f32 %v3332, %v3342
        %v3579 = vmul.f32 %v3333, %v3342
        %v3580 = vmul.f32 %v3334, %v3342
        %v3581 = vmul.f32 %v3335, %v3342
        %v3582 = vmul.f32 %v3336, %v3342
        %v3583 = vmul.f32 %v3337, %v3342
        %v3584 = vmul.f32 %v3338, %v3342
        %v3585 = vmul.f32 %v3339, %v3342
        %v3586 = vld [vmem:[%s3] sm:$0x1]
        %v3588 = vperm.slane %v3586, 0
        %v3590 = vadd.f32 %v3344, %v3588
        %v3591 = vadd.f32 %v3345, %v3588
        %v3592 = vadd.f32 %v3346, %v3588
        %v3593 = vadd.f32 %v3347, %v3588
        %v3594 = vadd.f32 %v3348, %v3588
        %v3595 = vadd.f32 %v3349, %v3588
        %v3596 = vadd.f32 %v3350, %v3588
        %v3597 = vadd.f32 %v3351, %v3588
        %v3598 = vadd.f32 %v3352, %v3588
        %v3599 = vadd.f32 %v3353, %v3588
        %v3600 = vadd.f32 %v3354, %v3588
        %v3601 = vadd.f32 %v3355, %v3588
        %v3602 = vadd.f32 %v3356, %v3588
        %v3603 = vadd.f32 %v3357, %v3588
        %v3604 = vadd.f32 %v3358, %v3588
        %v3605 = vadd.f32 %v3359, %v3588
        %v3606 = vadd.f32 %v3360, %v3588
        %v3607 = vadd.f32 %v3361, %v3588
        %v3608 = vadd.f32 %v3362, %v3588
        %v3609 = vadd.f32 %v3363, %v3588
        %v3610 = vadd.f32 %v3364, %v3588
        %v3611 = vadd.f32 %v3365, %v3588
        %v3612 = vadd.f32 %v3366, %v3588
        %v3613 = vadd.f32 %v3367, %v3588
        %v3614 = vadd.f32 %v3368, %v3588
        %v3615 = vadd.f32 %v3369, %v3588
        %v3616 = vadd.f32 %v3370, %v3588
        %v3617 = vadd.f32 %v3371, %v3588
        %v3618 = vadd.f32 %v3372, %v3588
        %v3619 = vadd.f32 %v3373, %v3588
        %v3620 = vadd.f32 %v3374, %v3588
        %v3621 = vadd.f32 %v3375, %v3588
        %v3622 = vadd.f32 %v3376, %v3588
        %v3623 = vadd.f32 %v3377, %v3588
        %v3624 = vadd.f32 %v3378, %v3588
        %v3625 = vadd.f32 %v3379, %v3588
        %v3626 = vadd.f32 %v3380, %v3588
        %v3627 = vadd.f32 %v3381, %v3588
        %v3628 = vadd.f32 %v3382, %v3588
        %v3629 = vadd.f32 %v3383, %v3588
        %v3630 = vadd.f32 %v3384, %v3588
        %v3631 = vadd.f32 %v3385, %v3588
        %v3632 = vadd.f32 %v3386, %v3588
        %v3633 = vadd.f32 %v3387, %v3588
        %v3634 = vadd.f32 %v3388, %v3588
        %v3635 = vadd.f32 %v3389, %v3588
        %v3636 = vadd.f32 %v3390, %v3588
        %v3637 = vadd.f32 %v3391, %v3588
        %v3638 = vadd.f32 %v3392, %v3588
        %v3639 = vadd.f32 %v3393, %v3588
        %v3640 = vadd.f32 %v3394, %v3588
        %v3641 = vadd.f32 %v3395, %v3588
        %v3642 = vadd.f32 %v3396, %v3588
        %v3643 = vadd.f32 %v3397, %v3588
        %v3644 = vadd.f32 %v3398, %v3588
        %v3645 = vadd.f32 %v3399, %v3588
        %v3646 = vadd.f32 %v3400, %v3588
        %v3647 = vadd.f32 %v3401, %v3588
        %v3648 = vadd.f32 %v3402, %v3588
        %v3649 = vadd.f32 %v3403, %v3588
        %v3650 = vadd.f32 %v3404, %v3588
        %v3651 = vadd.f32 %v3405, %v3588
        %v3652 = vadd.f32 %v3406, %v3588
        %v3653 = vadd.f32 %v3407, %v3588
        %v3654 = vadd.f32 %v3408, %v3588
        %v3655 = vadd.f32 %v3409, %v3588
        %v3656 = vadd.f32 %v3410, %v3588
        %v3657 = vadd.f32 %v3411, %v3588
        %v3658 = vadd.f32 %v3412, %v3588
        %v3659 = vadd.f32 %v3413, %v3588
        %v3660 = vadd.f32 %v3414, %v3588
        %v3661 = vadd.f32 %v3415, %v3588
        %v3662 = vadd.f32 %v3416, %v3588
        %v3663 = vadd.f32 %v3417, %v3588
        %v3664 = vadd.f32 %v3418, %v3588
        %v3665 = vadd.f32 %v3419, %v3588
        %v3666 = vadd.f32 %v3420, %v3588
        %v3667 = vadd.f32 %v3421, %v3588
        %v3668 = vadd.f32 %v3422, %v3588
        %v3669 = vadd.f32 %v3423, %v3588
        %v3670 = vadd.f32 %v3424, %v3588
        %v3671 = vadd.f32 %v3425, %v3588
        %v3672 = vadd.f32 %v3426, %v3588
        %v3673 = vadd.f32 %v3427, %v3588
        %v3674 = vadd.f32 %v3428, %v3588
        %v3675 = vadd.f32 %v3429, %v3588
        %v3676 = vadd.f32 %v3430, %v3588
        %v3677 = vadd.f32 %v3431, %v3588
        %v3678 = vadd.f32 %v3432, %v3588
        %v3679 = vadd.f32 %v3433, %v3588
        %v3680 = vadd.f32 %v3434, %v3588
        %v3681 = vadd.f32 %v3435, %v3588
        %v3682 = vadd.f32 %v3436, %v3588
        %v3683 = vadd.f32 %v3437, %v3588
        %v3684 = vadd.f32 %v3438, %v3588
        %v3685 = vadd.f32 %v3439, %v3588
        %v3686 = vadd.f32 %v3440, %v3588
        %v3687 = vadd.f32 %v3441, %v3588
        %v3688 = vadd.f32 %v3442, %v3588
        %v3689 = vadd.f32 %v3443, %v3588
        %v3690 = vadd.f32 %v3444, %v3588
        %v3691 = vadd.f32 %v3445, %v3588
        %v3692 = vadd.f32 %v3446, %v3588
        %v3693 = vadd.f32 %v3447, %v3588
        %v3694 = vadd.f32 %v3448, %v3588
        %v3695 = vadd.f32 %v3449, %v3588
        %v3696 = vadd.f32 %v3450, %v3588
        %v3697 = vadd.f32 %v3451, %v3588
        %v3698 = vadd.f32 %v3452, %v3588
        %v3699 = vadd.f32 %v3453, %v3588
        %v3700 = vadd.f32 %v3454, %v3588
        %v3701 = vadd.f32 %v3455, %v3588
        %v3702 = vadd.f32 %v3456, %v3588
        %v3703 = vadd.f32 %v3457, %v3588
        %v3704 = vadd.f32 %v3458, %v3588
        %v3705 = vadd.f32 %v3459, %v3588
        %v3706 = vadd.f32 %v3460, %v3588
        %v3707 = vadd.f32 %v3461, %v3588
        %v3708 = vadd.f32 %v3462, %v3588
        %v3709 = vadd.f32 %v3463, %v3588
        %v3710 = vadd.f32 %v3464, %v3588
        %v3711 = vadd.f32 %v3465, %v3588
        %v3712 = vadd.f32 %v3466, %v3588
        %v3713 = vadd.f32 %v3467, %v3588
        %v3714 = vadd.f32 %v3468, %v3588
        %v3715 = vadd.f32 %v3469, %v3588
        %v3716 = vadd.f32 %v3470, %v3588
        %v3717 = vadd.f32 %v3471, %v3588
        %v3718 = vadd.f32 %v3472, %v3588
        %v3719 = vadd.f32 %v3473, %v3588
        %v3720 = vadd.f32 %v3474, %v3588
        %v3721 = vadd.f32 %v3475, %v3588
        %v3722 = vadd.f32 %v3476, %v3588
        %v3723 = vadd.f32 %v3477, %v3588
        %v3724 = vadd.f32 %v3478, %v3588
        %v3725 = vadd.f32 %v3479, %v3588
        %v3726 = vadd.f32 %v3480, %v3588
        %v3727 = vadd.f32 %v3481, %v3588
        %v3728 = vadd.f32 %v3482, %v3588
        %v3729 = vadd.f32 %v3483, %v3588
        %v3730 = vadd.f32 %v3484, %v3588
        %v3731 = vadd.f32 %v3485, %v3588
        %v3732 = vadd.f32 %v3486, %v3588
        %v3733 = vadd.f32 %v3487, %v3588
        %v3734 = vadd.f32 %v3488, %v3588
        %v3735 = vadd.f32 %v3489, %v3588
        %v3736 = vadd.f32 %v3490, %v3588
        %v3737 = vadd.f32 %v3491, %v3588
        %v3738 = vadd.f32 %v3492, %v3588
        %v3739 = vadd.f32 %v3493, %v3588
        %v3740 = vadd.f32 %v3494, %v3588
        %v3741 = vadd.f32 %v3495, %v3588
        %v3742 = vadd.f32 %v3496, %v3588
        %v3743 = vadd.f32 %v3497, %v3588
        %v3744 = vadd.f32 %v3498, %v3588
        %v3745 = vadd.f32 %v3499, %v3588
        %v3746 = vadd.f32 %v3500, %v3588
        %v3747 = vadd.f32 %v3501, %v3588
        %v3748 = vadd.f32 %v3502, %v3588
        %v3749 = vadd.f32 %v3503, %v3588
        %v3750 = vadd.f32 %v3504, %v3588
        %v3751 = vadd.f32 %v3505, %v3588
        %v3752 = vadd.f32 %v3506, %v3588
        %v3753 = vadd.f32 %v3507, %v3588
        %v3754 = vadd.f32 %v3508, %v3588
        %v3755 = vadd.f32 %v3509, %v3588
        %v3756 = vadd.f32 %v3510, %v3588
        %v3757 = vadd.f32 %v3511, %v3588
        %v3758 = vadd.f32 %v3512, %v3588
        %v3759 = vadd.f32 %v3513, %v3588
        %v3760 = vadd.f32 %v3514, %v3588
        %v3761 = vadd.f32 %v3515, %v3588
        %v3762 = vadd.f32 %v3516, %v3588
        %v3763 = vadd.f32 %v3517, %v3588
        %v3764 = vadd.f32 %v3518, %v3588
        %v3765 = vadd.f32 %v3519, %v3588
        %v3766 = vadd.f32 %v3520, %v3588
        %v3767 = vadd.f32 %v3521, %v3588
        %v3768 = vadd.f32 %v3522, %v3588
        %v3769 = vadd.f32 %v3523, %v3588
        %v3770 = vadd.f32 %v3524, %v3588
        %v3771 = vadd.f32 %v3525, %v3588
        %v3772 = vadd.f32 %v3526, %v3588
        %v3773 = vadd.f32 %v3527, %v3588
        %v3774 = vadd.f32 %v3528, %v3588
        %v3775 = vadd.f32 %v3529, %v3588
        %v3776 = vadd.f32 %v3530, %v3588
        %v3777 = vadd.f32 %v3531, %v3588
        %v3778 = vadd.f32 %v3532, %v3588
        %v3779 = vadd.f32 %v3533, %v3588
        %v3780 = vadd.f32 %v3534, %v3588
        %v3781 = vadd.f32 %v3535, %v3588
        %v3782 = vadd.f32 %v3536, %v3588
        %v3783 = vadd.f32 %v3537, %v3588
        %v3784 = vadd.f32 %v3538, %v3588
        %v3785 = vadd.f32 %v3539, %v3588
        %v3786 = vadd.f32 %v3540, %v3588
        %v3787 = vadd.f32 %v3541, %v3588
        %v3788 = vadd.f32 %v3542, %v3588
        %v3789 = vadd.f32 %v3543, %v3588
        %v3790 = vadd.f32 %v3544, %v3588
        %v3791 = vadd.f32 %v3545, %v3588
        %v3792 = vadd.f32 %v3546, %v3588
        %v3793 = vadd.f32 %v3547, %v3588
        %v3794 = vadd.f32 %v3548, %v3588
        %v3795 = vadd.f32 %v3549, %v3588
        %v3796 = vadd.f32 %v3550, %v3588
        %v3797 = vadd.f32 %v3551, %v3588
        %v3798 = vadd.f32 %v3552, %v3588
        %v3799 = vadd.f32 %v3553, %v3588
        %v3800 = vadd.f32 %v3554, %v3588
        %v3801 = vadd.f32 %v3555, %v3588
        %v3802 = vadd.f32 %v3556, %v3588
        %v3803 = vadd.f32 %v3557, %v3588
        %v3804 = vadd.f32 %v3558, %v3588
        %v3805 = vadd.f32 %v3559, %v3588
        %v3806 = vadd.f32 %v3560, %v3588
        %v3807 = vadd.f32 %v3561, %v3588
        %v3808 = vadd.f32 %v3562, %v3588
        %v3809 = vadd.f32 %v3563, %v3588
        %v3810 = vadd.f32 %v3564, %v3588
        %v3811 = vadd.f32 %v3565, %v3588
        %v3812 = vadd.f32 %v3566, %v3588
        %v3813 = vadd.f32 %v3567, %v3588
        %v3814 = vadd.f32 %v3568, %v3588
        %v3815 = vadd.f32 %v3569, %v3588
        %v3816 = vadd.f32 %v3570, %v3588
        %v3817 = vadd.f32 %v3571, %v3588
        %v3818 = vadd.f32 %v3572, %v3588
        %v3819 = vadd.f32 %v3573, %v3588
        %v3820 = vadd.f32 %v3574, %v3588
        %v3821 = vadd.f32 %v3575, %v3588
        %v3822 = vadd.f32 %v3576, %v3588
        %v3823 = vadd.f32 %v3577, %v3588
        %v3824 = vadd.f32 %v3578, %v3588
        %v3825 = vadd.f32 %v3579, %v3588
        %v3826 = vadd.f32 %v3580, %v3588
        %v3827 = vadd.f32 %v3581, %v3588
        %v3828 = vadd.f32 %v3582, %v3588
        %v3829 = vadd.f32 %v3583, %v3588
        %v3830 = vadd.f32 %v3584, %v3588
        %v3831 = vadd.f32 %v3585, %v3588
        %vm3832 = vcmp.gt.f32.partialorder %v3590, 0.0
        %vm3833 = vcmp.gt.f32.partialorder %v3591, 0.0
        %vm3834 = vcmp.gt.f32.partialorder %v3592, 0.0
        %vm3835 = vcmp.gt.f32.partialorder %v3593, 0.0
        %vm3836 = vcmp.gt.f32.partialorder %v3594, 0.0
        %vm3837 = vcmp.gt.f32.partialorder %v3595, 0.0
        %vm3838 = vcmp.gt.f32.partialorder %v3596, 0.0
        %vm3839 = vcmp.gt.f32.partialorder %v3597, 0.0
        %vm3840 = vcmp.gt.f32.partialorder %v3598, 0.0
        %vm3841 = vcmp.gt.f32.partialorder %v3599, 0.0
        %vm3842 = vcmp.gt.f32.partialorder %v3600, 0.0
        %vm3843 = vcmp.gt.f32.partialorder %v3601, 0.0
        %vm3844 = vcmp.gt.f32.partialorder %v3602, 0.0
        %vm3845 = vcmp.gt.f32.partialorder %v3603, 0.0
        %vm3846 = vcmp.gt.f32.partialorder %v3604, 0.0
        %vm3847 = vcmp.gt.f32.partialorder %v3605, 0.0
        %vm3848 = vcmp.gt.f32.partialorder %v3606, 0.0
        %vm3849 = vcmp.gt.f32.partialorder %v3607, 0.0
        %vm3850 = vcmp.gt.f32.partialorder %v3608, 0.0
        %vm3851 = vcmp.gt.f32.partialorder %v3609, 0.0
        %vm3852 = vcmp.gt.f32.partialorder %v3610, 0.0
        %vm3853 = vcmp.gt.f32.partialorder %v3611, 0.0
        %vm3854 = vcmp.gt.f32.partialorder %v3612, 0.0
        %vm3855 = vcmp.gt.f32.partialorder %v3613, 0.0
        %vm3856 = vcmp.gt.f32.partialorder %v3614, 0.0
        %vm3857 = vcmp.gt.f32.partialorder %v3615, 0.0
        %vm3858 = vcmp.gt.f32.partialorder %v3616, 0.0
        %vm3859 = vcmp.gt.f32.partialorder %v3617, 0.0
        %vm3860 = vcmp.gt.f32.partialorder %v3618, 0.0
        %vm3861 = vcmp.gt.f32.partialorder %v3619, 0.0
        %vm3862 = vcmp.gt.f32.partialorder %v3620, 0.0
        %vm3863 = vcmp.gt.f32.partialorder %v3621, 0.0
        %vm3864 = vcmp.gt.f32.partialorder %v3622, 0.0
        %vm3865 = vcmp.gt.f32.partialorder %v3623, 0.0
        %vm3866 = vcmp.gt.f32.partialorder %v3624, 0.0
        %vm3867 = vcmp.gt.f32.partialorder %v3625, 0.0
        %vm3868 = vcmp.gt.f32.partialorder %v3626, 0.0
        %vm3869 = vcmp.gt.f32.partialorder %v3627, 0.0
        %vm3870 = vcmp.gt.f32.partialorder %v3628, 0.0
        %vm3871 = vcmp.gt.f32.partialorder %v3629, 0.0
        %vm3872 = vcmp.gt.f32.partialorder %v3630, 0.0
        %vm3873 = vcmp.gt.f32.partialorder %v3631, 0.0
        %vm3874 = vcmp.gt.f32.partialorder %v3632, 0.0
        %vm3875 = vcmp.gt.f32.partialorder %v3633, 0.0
        %vm3876 = vcmp.gt.f32.partialorder %v3634, 0.0
        %vm3877 = vcmp.gt.f32.partialorder %v3635, 0.0
        %vm3878 = vcmp.gt.f32.partialorder %v3636, 0.0
        %vm3879 = vcmp.gt.f32.partialorder %v3637, 0.0
        %vm3880 = vcmp.gt.f32.partialorder %v3638, 0.0
        %vm3881 = vcmp.gt.f32.partialorder %v3639, 0.0
        %vm3882 = vcmp.gt.f32.partialorder %v3640, 0.0
        %vm3883 = vcmp.gt.f32.partialorder %v3641, 0.0
        %vm3884 = vcmp.gt.f32.partialorder %v3642, 0.0
        %vm3885 = vcmp.gt.f32.partialorder %v3643, 0.0
        %vm3886 = vcmp.gt.f32.partialorder %v3644, 0.0
        %vm3887 = vcmp.gt.f32.partialorder %v3645, 0.0
        %vm3888 = vcmp.gt.f32.partialorder %v3646, 0.0
        %vm3889 = vcmp.gt.f32.partialorder %v3647, 0.0
        %vm3890 = vcmp.gt.f32.partialorder %v3648, 0.0
        %vm3891 = vcmp.gt.f32.partialorder %v3649, 0.0
        %vm3892 = vcmp.gt.f32.partialorder %v3650, 0.0
        %vm3893 = vcmp.gt.f32.partialorder %v3651, 0.0
        %vm3894 = vcmp.gt.f32.partialorder %v3652, 0.0
        %vm3895 = vcmp.gt.f32.partialorder %v3653, 0.0
        %vm3896 = vcmp.gt.f32.partialorder %v3654, 0.0
        %vm3897 = vcmp.gt.f32.partialorder %v3655, 0.0
        %vm3898 = vcmp.gt.f32.partialorder %v3656, 0.0
        %vm3899 = vcmp.gt.f32.partialorder %v3657, 0.0
        %vm3900 = vcmp.gt.f32.partialorder %v3658, 0.0
        %vm3901 = vcmp.gt.f32.partialorder %v3659, 0.0
        %vm3902 = vcmp.gt.f32.partialorder %v3660, 0.0
        %vm3903 = vcmp.gt.f32.partialorder %v3661, 0.0
        %vm3904 = vcmp.gt.f32.partialorder %v3662, 0.0
        %vm3905 = vcmp.gt.f32.partialorder %v3663, 0.0
        %vm3906 = vcmp.gt.f32.partialorder %v3664, 0.0
        %vm3907 = vcmp.gt.f32.partialorder %v3665, 0.0
        %vm3908 = vcmp.gt.f32.partialorder %v3666, 0.0
        %vm3909 = vcmp.gt.f32.partialorder %v3667, 0.0
        %vm3910 = vcmp.gt.f32.partialorder %v3668, 0.0
        %vm3911 = vcmp.gt.f32.partialorder %v3669, 0.0
        %vm3912 = vcmp.gt.f32.partialorder %v3670, 0.0
        %vm3913 = vcmp.gt.f32.partialorder %v3671, 0.0
        %vm3914 = vcmp.gt.f32.partialorder %v3672, 0.0
        %vm3915 = vcmp.gt.f32.partialorder %v3673, 0.0
        %vm3916 = vcmp.gt.f32.partialorder %v3674, 0.0
        %vm3917 = vcmp.gt.f32.partialorder %v3675, 0.0
        %vm3918 = vcmp.gt.f32.partialorder %v3676, 0.0
        %vm3919 = vcmp.gt.f32.partialorder %v3677, 0.0
        %vm3920 = vcmp.gt.f32.partialorder %v3678, 0.0
        %vm3921 = vcmp.gt.f32.partialorder %v3679, 0.0
        %vm3922 = vcmp.gt.f32.partialorder %v3680, 0.0
        %vm3923 = vcmp.gt.f32.partialorder %v3681, 0.0
        %vm3924 = vcmp.gt.f32.partialorder %v3682, 0.0
        %vm3925 = vcmp.gt.f32.partialorder %v3683, 0.0
        %vm3926 = vcmp.gt.f32.partialorder %v3684, 0.0
        %vm3927 = vcmp.gt.f32.partialorder %v3685, 0.0
        %vm3928 = vcmp.gt.f32.partialorder %v3686, 0.0
        %vm3929 = vcmp.gt.f32.partialorder %v3687, 0.0
        %vm3930 = vcmp.gt.f32.partialorder %v3688, 0.0
        %vm3931 = vcmp.gt.f32.partialorder %v3689, 0.0
        %vm3932 = vcmp.gt.f32.partialorder %v3690, 0.0
        %vm3933 = vcmp.gt.f32.partialorder %v3691, 0.0
        %vm3934 = vcmp.gt.f32.partialorder %v3692, 0.0
        %vm3935 = vcmp.gt.f32.partialorder %v3693, 0.0
        %vm3936 = vcmp.gt.f32.partialorder %v3694, 0.0
        %vm3937 = vcmp.gt.f32.partialorder %v3695, 0.0
        %vm3938 = vcmp.gt.f32.partialorder %v3696, 0.0
        %vm3939 = vcmp.gt.f32.partialorder %v3697, 0.0
        %vm3940 = vcmp.gt.f32.partialorder %v3698, 0.0
        %vm3941 = vcmp.gt.f32.partialorder %v3699, 0.0
        %vm3942 = vcmp.gt.f32.partialorder %v3700, 0.0
        %vm3943 = vcmp.gt.f32.partialorder %v3701, 0.0
        %vm3944 = vcmp.gt.f32.partialorder %v3702, 0.0
        %vm3945 = vcmp.gt.f32.partialorder %v3703, 0.0
        %vm3946 = vcmp.gt.f32.partialorder %v3704, 0.0
        %vm3947 = vcmp.gt.f32.partialorder %v3705, 0.0
        %vm3948 = vcmp.gt.f32.partialorder %v3706, 0.0
        %vm3949 = vcmp.gt.f32.partialorder %v3707, 0.0
        %vm3950 = vcmp.gt.f32.partialorder %v3708, 0.0
        %vm3951 = vcmp.gt.f32.partialorder %v3709, 0.0
        %vm3952 = vcmp.gt.f32.partialorder %v3710, 0.0
        %vm3953 = vcmp.gt.f32.partialorder %v3711, 0.0
        %vm3954 = vcmp.gt.f32.partialorder %v3712, 0.0
        %vm3955 = vcmp.gt.f32.partialorder %v3713, 0.0
        %vm3956 = vcmp.gt.f32.partialorder %v3714, 0.0
        %vm3957 = vcmp.gt.f32.partialorder %v3715, 0.0
        %vm3958 = vcmp.gt.f32.partialorder %v3716, 0.0
        %vm3959 = vcmp.gt.f32.partialorder %v3717, 0.0
        %vm3960 = vcmp.gt.f32.partialorder %v3718, 0.0
        %vm3961 = vcmp.gt.f32.partialorder %v3719, 0.0
        %vm3962 = vcmp.gt.f32.partialorder %v3720, 0.0
        %vm3963 = vcmp.gt.f32.partialorder %v3721, 0.0
        %vm3964 = vcmp.gt.f32.partialorder %v3722, 0.0
        %vm3965 = vcmp.gt.f32.partialorder %v3723, 0.0
        %vm3966 = vcmp.gt.f32.partialorder %v3724, 0.0
        %vm3967 = vcmp.gt.f32.partialorder %v3725, 0.0
        %vm3968 = vcmp.gt.f32.partialorder %v3726, 0.0
        %vm3969 = vcmp.gt.f32.partialorder %v3727, 0.0
        %vm3970 = vcmp.gt.f32.partialorder %v3728, 0.0
        %vm3971 = vcmp.gt.f32.partialorder %v3729, 0.0
        %vm3972 = vcmp.gt.f32.partialorder %v3730, 0.0
        %vm3973 = vcmp.gt.f32.partialorder %v3731, 0.0
        %vm3974 = vcmp.gt.f32.partialorder %v3732, 0.0
        %vm3975 = vcmp.gt.f32.partialorder %v3733, 0.0
        %vm3976 = vcmp.gt.f32.partialorder %v3734, 0.0
        %vm3977 = vcmp.gt.f32.partialorder %v3735, 0.0
        %vm3978 = vcmp.gt.f32.partialorder %v3736, 0.0
        %vm3979 = vcmp.gt.f32.partialorder %v3737, 0.0
        %vm3980 = vcmp.gt.f32.partialorder %v3738, 0.0
        %vm3981 = vcmp.gt.f32.partialorder %v3739, 0.0
        %vm3982 = vcmp.gt.f32.partialorder %v3740, 0.0
        %vm3983 = vcmp.gt.f32.partialorder %v3741, 0.0
        %vm3984 = vcmp.gt.f32.partialorder %v3742, 0.0
        %vm3985 = vcmp.gt.f32.partialorder %v3743, 0.0
        %vm3986 = vcmp.gt.f32.partialorder %v3744, 0.0
        %vm3987 = vcmp.gt.f32.partialorder %v3745, 0.0
        %vm3988 = vcmp.gt.f32.partialorder %v3746, 0.0
        %vm3989 = vcmp.gt.f32.partialorder %v3747, 0.0
        %vm3990 = vcmp.gt.f32.partialorder %v3748, 0.0
        %vm3991 = vcmp.gt.f32.partialorder %v3749, 0.0
        %vm3992 = vcmp.gt.f32.partialorder %v3750, 0.0
        %vm3993 = vcmp.gt.f32.partialorder %v3751, 0.0
        %vm3994 = vcmp.gt.f32.partialorder %v3752, 0.0
        %vm3995 = vcmp.gt.f32.partialorder %v3753, 0.0
        %vm3996 = vcmp.gt.f32.partialorder %v3754, 0.0
        %vm3997 = vcmp.gt.f32.partialorder %v3755, 0.0
        %vm3998 = vcmp.gt.f32.partialorder %v3756, 0.0
        %vm3999 = vcmp.gt.f32.partialorder %v3757, 0.0
        %vm4000 = vcmp.gt.f32.partialorder %v3758, 0.0
        %vm4001 = vcmp.gt.f32.partialorder %v3759, 0.0
        %vm4002 = vcmp.gt.f32.partialorder %v3760, 0.0
        %vm4003 = vcmp.gt.f32.partialorder %v3761, 0.0
        %vm4004 = vcmp.gt.f32.partialorder %v3762, 0.0
        %vm4005 = vcmp.gt.f32.partialorder %v3763, 0.0
        %vm4006 = vcmp.gt.f32.partialorder %v3764, 0.0
        %vm4007 = vcmp.gt.f32.partialorder %v3765, 0.0
        %vm4008 = vcmp.gt.f32.partialorder %v3766, 0.0
        %vm4009 = vcmp.gt.f32.partialorder %v3767, 0.0
        %vm4010 = vcmp.gt.f32.partialorder %v3768, 0.0
        %vm4011 = vcmp.gt.f32.partialorder %v3769, 0.0
        %vm4012 = vcmp.gt.f32.partialorder %v3770, 0.0
        %vm4013 = vcmp.gt.f32.partialorder %v3771, 0.0
        %vm4014 = vcmp.gt.f32.partialorder %v3772, 0.0
        %vm4015 = vcmp.gt.f32.partialorder %v3773, 0.0
        %vm4016 = vcmp.gt.f32.partialorder %v3774, 0.0
        %vm4017 = vcmp.gt.f32.partialorder %v3775, 0.0
        %vm4018 = vcmp.gt.f32.partialorder %v3776, 0.0
        %vm4019 = vcmp.gt.f32.partialorder %v3777, 0.0
        %vm4020 = vcmp.gt.f32.partialorder %v3778, 0.0
        %vm4021 = vcmp.gt.f32.partialorder %v3779, 0.0
        %vm4022 = vcmp.gt.f32.partialorder %v3780, 0.0
        %vm4023 = vcmp.gt.f32.partialorder %v3781, 0.0
        %vm4024 = vcmp.gt.f32.partialorder %v3782, 0.0
        %vm4025 = vcmp.gt.f32.partialorder %v3783, 0.0
        %vm4026 = vcmp.gt.f32.partialorder %v3784, 0.0
        %vm4027 = vcmp.gt.f32.partialorder %v3785, 0.0
        %vm4028 = vcmp.gt.f32.partialorder %v3786, 0.0
        %vm4029 = vcmp.gt.f32.partialorder %v3787, 0.0
        %vm4030 = vcmp.gt.f32.partialorder %v3788, 0.0
        %vm4031 = vcmp.gt.f32.partialorder %v3789, 0.0
        %vm4032 = vcmp.gt.f32.partialorder %v3790, 0.0
        %vm4033 = vcmp.gt.f32.partialorder %v3791, 0.0
        %vm4034 = vcmp.gt.f32.partialorder %v3792, 0.0
        %vm4035 = vcmp.gt.f32.partialorder %v3793, 0.0
        %vm4036 = vcmp.gt.f32.partialorder %v3794, 0.0
        %vm4037 = vcmp.gt.f32.partialorder %v3795, 0.0
        %vm4038 = vcmp.gt.f32.partialorder %v3796, 0.0
        %vm4039 = vcmp.gt.f32.partialorder %v3797, 0.0
        %vm4040 = vcmp.gt.f32.partialorder %v3798, 0.0
        %vm4041 = vcmp.gt.f32.partialorder %v3799, 0.0
        %vm4042 = vcmp.gt.f32.partialorder %v3800, 0.0
        %vm4043 = vcmp.gt.f32.partialorder %v3801, 0.0
        %vm4044 = vcmp.gt.f32.partialorder %v3802, 0.0
        %vm4045 = vcmp.gt.f32.partialorder %v3803, 0.0
        %vm4046 = vcmp.gt.f32.partialorder %v3804, 0.0
        %vm4047 = vcmp.gt.f32.partialorder %v3805, 0.0
        %vm4048 = vcmp.gt.f32.partialorder %v3806, 0.0
        %vm4049 = vcmp.gt.f32.partialorder %v3807, 0.0
        %vm4050 = vcmp.gt.f32.partialorder %v3808, 0.0
        %vm4051 = vcmp.gt.f32.partialorder %v3809, 0.0
        %vm4052 = vcmp.gt.f32.partialorder %v3810, 0.0
        %vm4053 = vcmp.gt.f32.partialorder %v3811, 0.0
        %vm4054 = vcmp.gt.f32.partialorder %v3812, 0.0
        %vm4055 = vcmp.gt.f32.partialorder %v3813, 0.0
        %vm4056 = vcmp.gt.f32.partialorder %v3814, 0.0
        %vm4057 = vcmp.gt.f32.partialorder %v3815, 0.0
        %vm4058 = vcmp.gt.f32.partialorder %v3816, 0.0
        %vm4059 = vcmp.gt.f32.partialorder %v3817, 0.0
        %vm4060 = vcmp.gt.f32.partialorder %v3818, 0.0
        %vm4061 = vcmp.gt.f32.partialorder %v3819, 0.0
        %vm4062 = vcmp.gt.f32.partialorder %v3820, 0.0
        %vm4063 = vcmp.gt.f32.partialorder %v3821, 0.0
        %vm4064 = vcmp.gt.f32.partialorder %v3822, 0.0
        %vm4065 = vcmp.gt.f32.partialorder %v3823, 0.0
        %vm4066 = vcmp.gt.f32.partialorder %v3824, 0.0
        %vm4067 = vcmp.gt.f32.partialorder %v3825, 0.0
        %vm4068 = vcmp.gt.f32.partialorder %v3826, 0.0
        %vm4069 = vcmp.gt.f32.partialorder %v3827, 0.0
        %vm4070 = vcmp.gt.f32.partialorder %v3828, 0.0
        %vm4071 = vcmp.gt.f32.partialorder %v3829, 0.0
        %vm4072 = vcmp.gt.f32.partialorder %v3830, 0.0
        %vm4073 = vcmp.gt.f32.partialorder %v3831, 0.0
        %v4074 = vld [vmem:[%s4] sm:$0x1]
        %v4076 = vperm.slane %v4074, 0
        %v4078 = vmul.f32 %v4076, %v3590
        %v4079 = vmul.f32 %v4076, %v3591
        %v4080 = vmul.f32 %v4076, %v3592
        %v4081 = vmul.f32 %v4076, %v3593
        %v4082 = vmul.f32 %v4076, %v3594
        %v4083 = vmul.f32 %v4076, %v3595
        %v4084 = vmul.f32 %v4076, %v3596
        %v4085 = vmul.f32 %v4076, %v3597
        %v4086 = vmul.f32 %v4076, %v3598
        %v4087 = vmul.f32 %v4076, %v3599
        %v4088 = vmul.f32 %v4076, %v3600
        %v4089 = vmul.f32 %v4076, %v3601
        %v4090 = vmul.f32 %v4076, %v3602
        %v4091 = vmul.f32 %v4076, %v3603
        %v4092 = vmul.f32 %v4076, %v3604
        %v4093 = vmul.f32 %v4076, %v3605
        %v4094 = vmul.f32 %v4076, %v3606
        %v4095 = vmul.f32 %v4076, %v3607
        %v4096 = vmul.f32 %v4076, %v3608
        %v4097 = vmul.f32 %v4076, %v3609
        %v4098 = vmul.f32 %v4076, %v3610
        %v4099 = vmul.f32 %v4076, %v3611
        %v4100 = vmul.f32 %v4076, %v3612
        %v4101 = vmul.f32 %v4076, %v3613
        %v4102 = vmul.f32 %v4076, %v3614
        %v4103 = vmul.f32 %v4076, %v3615
        %v4104 = vmul.f32 %v4076, %v3616
        %v4105 = vmul.f32 %v4076, %v3617
        %v4106 = vmul.f32 %v4076, %v3618
        %v4107 = vmul.f32 %v4076, %v3619
        %v4108 = vmul.f32 %v4076, %v3620
        %v4109 = vmul.f32 %v4076, %v3621
        %v4110 = vmul.f32 %v4076, %v3622
        %v4111 = vmul.f32 %v4076, %v3623
        %v4112 = vmul.f32 %v4076, %v3624
        %v4113 = vmul.f32 %v4076, %v3625
        %v4114 = vmul.f32 %v4076, %v3626
        %v4115 = vmul.f32 %v4076, %v3627
        %v4116 = vmul.f32 %v4076, %v3628
        %v4117 = vmul.f32 %v4076, %v3629
        %v4118 = vmul.f32 %v4076, %v3630
        %v4119 = vmul.f32 %v4076, %v3631
        %v4120 = vmul.f32 %v4076, %v3632
        %v4121 = vmul.f32 %v4076, %v3633
        %v4122 = vmul.f32 %v4076, %v3634
        %v4123 = vmul.f32 %v4076, %v3635
        %v4124 = vmul.f32 %v4076, %v3636
        %v4125 = vmul.f32 %v4076, %v3637
        %v4126 = vmul.f32 %v4076, %v3638
        %v4127 = vmul.f32 %v4076, %v3639
        %v4128 = vmul.f32 %v4076, %v3640
        %v4129 = vmul.f32 %v4076, %v3641
        %v4130 = vmul.f32 %v4076, %v3642
        %v4131 = vmul.f32 %v4076, %v3643
        %v4132 = vmul.f32 %v4076, %v3644
        %v4133 = vmul.f32 %v4076, %v3645
        %v4134 = vmul.f32 %v4076, %v3646
        %v4135 = vmul.f32 %v4076, %v3647
        %v4136 = vmul.f32 %v4076, %v3648
        %v4137 = vmul.f32 %v4076, %v3649
        %v4138 = vmul.f32 %v4076, %v3650
        %v4139 = vmul.f32 %v4076, %v3651
        %v4140 = vmul.f32 %v4076, %v3652
        %v4141 = vmul.f32 %v4076, %v3653
        %v4142 = vmul.f32 %v4076, %v3654
        %v4143 = vmul.f32 %v4076, %v3655
        %v4144 = vmul.f32 %v4076, %v3656
        %v4145 = vmul.f32 %v4076, %v3657
        %v4146 = vmul.f32 %v4076, %v3658
        %v4147 = vmul.f32 %v4076, %v3659
        %v4148 = vmul.f32 %v4076, %v3660
        %v4149 = vmul.f32 %v4076, %v3661
        %v4150 = vmul.f32 %v4076, %v3662
        %v4151 = vmul.f32 %v4076, %v3663
        %v4152 = vmul.f32 %v4076, %v3664
        %v4153 = vmul.f32 %v4076, %v3665
        %v4154 = vmul.f32 %v4076, %v3666
        %v4155 = vmul.f32 %v4076, %v3667
        %v4156 = vmul.f32 %v4076, %v3668
        %v4157 = vmul.f32 %v4076, %v3669
        %v4158 = vmul.f32 %v4076, %v3670
        %v4159 = vmul.f32 %v4076, %v3671
        %v4160 = vmul.f32 %v4076, %v3672
        %v4161 = vmul.f32 %v4076, %v3673
        %v4162 = vmul.f32 %v4076, %v3674
        %v4163 = vmul.f32 %v4076, %v3675
        %v4164 = vmul.f32 %v4076, %v3676
        %v4165 = vmul.f32 %v4076, %v3677
        %v4166 = vmul.f32 %v4076, %v3678
        %v4167 = vmul.f32 %v4076, %v3679
        %v4168 = vmul.f32 %v4076, %v3680
        %v4169 = vmul.f32 %v4076, %v3681
        %v4170 = vmul.f32 %v4076, %v3682
        %v4171 = vmul.f32 %v4076, %v3683
        %v4172 = vmul.f32 %v4076, %v3684
        %v4173 = vmul.f32 %v4076, %v3685
        %v4174 = vmul.f32 %v4076, %v3686
        %v4175 = vmul.f32 %v4076, %v3687
        %v4176 = vmul.f32 %v4076, %v3688
        %v4177 = vmul.f32 %v4076, %v3689
        %v4178 = vmul.f32 %v4076, %v3690
        %v4179 = vmul.f32 %v4076, %v3691
        %v4180 = vmul.f32 %v4076, %v3692
        %v4181 = vmul.f32 %v4076, %v3693
        %v4182 = vmul.f32 %v4076, %v3694
        %v4183 = vmul.f32 %v4076, %v3695
        %v4184 = vmul.f32 %v4076, %v3696
        %v4185 = vmul.f32 %v4076, %v3697
        %v4186 = vmul.f32 %v4076, %v3698
        %v4187 = vmul.f32 %v4076, %v3699
        %v4188 = vmul.f32 %v4076, %v3700
        %v4189 = vmul.f32 %v4076, %v3701
        %v4190 = vmul.f32 %v4076, %v3702
        %v4191 = vmul.f32 %v4076, %v3703
        %v4192 = vmul.f32 %v4076, %v3704
        %v4193 = vmul.f32 %v4076, %v3705
        %v4194 = vmul.f32 %v4076, %v3706
        %v4195 = vmul.f32 %v4076, %v3707
        %v4196 = vmul.f32 %v4076, %v3708
        %v4197 = vmul.f32 %v4076, %v3709
        %v4198 = vmul.f32 %v4076, %v3710
        %v4199 = vmul.f32 %v4076, %v3711
        %v4200 = vmul.f32 %v4076, %v3712
        %v4201 = vmul.f32 %v4076, %v3713
        %v4202 = vmul.f32 %v4076, %v3714
        %v4203 = vmul.f32 %v4076, %v3715
        %v4204 = vmul.f32 %v4076, %v3716
        %v4205 = vmul.f32 %v4076, %v3717
        %v4206 = vmul.f32 %v4076, %v3718
        %v4207 = vmul.f32 %v4076, %v3719
        %v4208 = vmul.f32 %v4076, %v3720
        %v4209 = vmul.f32 %v4076, %v3721
        %v4210 = vmul.f32 %v4076, %v3722
        %v4211 = vmul.f32 %v4076, %v3723
        %v4212 = vmul.f32 %v4076, %v3724
        %v4213 = vmul.f32 %v4076, %v3725
        %v4214 = vmul.f32 %v4076, %v3726
        %v4215 = vmul.f32 %v4076, %v3727
        %v4216 = vmul.f32 %v4076, %v3728
        %v4217 = vmul.f32 %v4076, %v3729
        %v4218 = vmul.f32 %v4076, %v3730
        %v4219 = vmul.f32 %v4076, %v3731
        %v4220 = vmul.f32 %v4076, %v3732
        %v4221 = vmul.f32 %v4076, %v3733
        %v4222 = vmul.f32 %v4076, %v3734
        %v4223 = vmul.f32 %v4076, %v3735
        %v4224 = vmul.f32 %v4076, %v3736
        %v4225 = vmul.f32 %v4076, %v3737
        %v4226 = vmul.f32 %v4076, %v3738
        %v4227 = vmul.f32 %v4076, %v3739
        %v4228 = vmul.f32 %v4076, %v3740
        %v4229 = vmul.f32 %v4076, %v3741
        %v4230 = vmul.f32 %v4076, %v3742
        %v4231 = vmul.f32 %v4076, %v3743
        %v4232 = vmul.f32 %v4076, %v3744
        %v4233 = vmul.f32 %v4076, %v3745
        %v4234 = vmul.f32 %v4076, %v3746
        %v4235 = vmul.f32 %v4076, %v3747
        %v4236 = vmul.f32 %v4076, %v3748
        %v4237 = vmul.f32 %v4076, %v3749
        %v4238 = vmul.f32 %v4076, %v3750
        %v4239 = vmul.f32 %v4076, %v3751
        %v4240 = vmul.f32 %v4076, %v3752
        %v4241 = vmul.f32 %v4076, %v3753
        %v4242 = vmul.f32 %v4076, %v3754
        %v4243 = vmul.f32 %v4076, %v3755
        %v4244 = vmul.f32 %v4076, %v3756
        %v4245 = vmul.f32 %v4076, %v3757
        %v4246 = vmul.f32 %v4076, %v3758
        %v4247 = vmul.f32 %v4076, %v3759
        %v4248 = vmul.f32 %v4076, %v3760
        %v4249 = vmul.f32 %v4076, %v3761
        %v4250 = vmul.f32 %v4076, %v3762
        %v4251 = vmul.f32 %v4076, %v3763
        %v4252 = vmul.f32 %v4076, %v3764
        %v4253 = vmul.f32 %v4076, %v3765
        %v4254 = vmul.f32 %v4076, %v3766
        %v4255 = vmul.f32 %v4076, %v3767
        %v4256 = vmul.f32 %v4076, %v3768
        %v4257 = vmul.f32 %v4076, %v3769
        %v4258 = vmul.f32 %v4076, %v3770
        %v4259 = vmul.f32 %v4076, %v3771
        %v4260 = vmul.f32 %v4076, %v3772
        %v4261 = vmul.f32 %v4076, %v3773
        %v4262 = vmul.f32 %v4076, %v3774
        %v4263 = vmul.f32 %v4076, %v3775
        %v4264 = vmul.f32 %v4076, %v3776
        %v4265 = vmul.f32 %v4076, %v3777
        %v4266 = vmul.f32 %v4076, %v3778
        %v4267 = vmul.f32 %v4076, %v3779
        %v4268 = vmul.f32 %v4076, %v3780
        %v4269 = vmul.f32 %v4076, %v3781
        %v4270 = vmul.f32 %v4076, %v3782
        %v4271 = vmul.f32 %v4076, %v3783
        %v4272 = vmul.f32 %v4076, %v3784
        %v4273 = vmul.f32 %v4076, %v3785
        %v4274 = vmul.f32 %v4076, %v3786
        %v4275 = vmul.f32 %v4076, %v3787
        %v4276 = vmul.f32 %v4076, %v3788
        %v4277 = vmul.f32 %v4076, %v3789
        %v4278 = vmul.f32 %v4076, %v3790
        %v4279 = vmul.f32 %v4076, %v3791
        %v4280 = vmul.f32 %v4076, %v3792
        %v4281 = vmul.f32 %v4076, %v3793
        %v4282 = vmul.f32 %v4076, %v3794
        %v4283 = vmul.f32 %v4076, %v3795
        %v4284 = vmul.f32 %v4076, %v3796
        %v4285 = vmul.f32 %v4076, %v3797
        %v4286 = vmul.f32 %v4076, %v3798
        %v4287 = vmul.f32 %v4076, %v3799
        %v4288 = vmul.f32 %v4076, %v3800
        %v4289 = vmul.f32 %v4076, %v3801
        %v4290 = vmul.f32 %v4076, %v3802
        %v4291 = vmul.f32 %v4076, %v3803
        %v4292 = vmul.f32 %v4076, %v3804
        %v4293 = vmul.f32 %v4076, %v3805
        %v4294 = vmul.f32 %v4076, %v3806
        %v4295 = vmul.f32 %v4076, %v3807
        %v4296 = vmul.f32 %v4076, %v3808
        %v4297 = vmul.f32 %v4076, %v3809
        %v4298 = vmul.f32 %v4076, %v3810
        %v4299 = vmul.f32 %v4076, %v3811
        %v4300 = vmul.f32 %v4076, %v3812
        %v4301 = vmul.f32 %v4076, %v3813
        %v4302 = vmul.f32 %v4076, %v3814
        %v4303 = vmul.f32 %v4076, %v3815
        %v4304 = vmul.f32 %v4076, %v3816
        %v4305 = vmul.f32 %v4076, %v3817
        %v4306 = vmul.f32 %v4076, %v3818
        %v4307 = vmul.f32 %v4076, %v3819
        %v4308 = vmul.f32 %v4076, %v3820
        %v4309 = vmul.f32 %v4076, %v3821
        %v4310 = vmul.f32 %v4076, %v3822
        %v4311 = vmul.f32 %v4076, %v3823
        %v4312 = vmul.f32 %v4076, %v3824
        %v4313 = vmul.f32 %v4076, %v3825
        %v4314 = vmul.f32 %v4076, %v3826
        %v4315 = vmul.f32 %v4076, %v3827
        %v4316 = vmul.f32 %v4076, %v3828
        %v4317 = vmul.f32 %v4076, %v3829
        %v4318 = vmul.f32 %v4076, %v3830
        %v4319 = vmul.f32 %v4076, %v3831
        %v4320 = vsel %vm3832, %v3590, %v4078
        %v4321 = vsel %vm3833, %v3591, %v4079
        %v4322 = vsel %vm3834, %v3592, %v4080
        %v4323 = vsel %vm3835, %v3593, %v4081
        %v4324 = vsel %vm3836, %v3594, %v4082
        %v4325 = vsel %vm3837, %v3595, %v4083
        %v4326 = vsel %vm3838, %v3596, %v4084
        %v4327 = vsel %vm3839, %v3597, %v4085
        %v4328 = vsel %vm3840, %v3598, %v4086
        %v4329 = vsel %vm3841, %v3599, %v4087
        %v4330 = vsel %vm3842, %v3600, %v4088
        %v4331 = vsel %vm3843, %v3601, %v4089
        %v4332 = vsel %vm3844, %v3602, %v4090
        %v4333 = vsel %vm3845, %v3603, %v4091
        %v4334 = vsel %vm3846, %v3604, %v4092
        %v4335 = vsel %vm3847, %v3605, %v4093
        %v4336 = vsel %vm3848, %v3606, %v4094
        %v4337 = vsel %vm3849, %v3607, %v4095
        %v4338 = vsel %vm3850, %v3608, %v4096
        %v4339 = vsel %vm3851, %v3609, %v4097
        %v4340 = vsel %vm3852, %v3610, %v4098
        %v4341 = vsel %vm3853, %v3611, %v4099
        %v4342 = vsel %vm3854, %v3612, %v4100
        %v4343 = vsel %vm3855, %v3613, %v4101
        %v4344 = vsel %vm3856, %v3614, %v4102
        %v4345 = vsel %vm3857, %v3615, %v4103
        %v4346 = vsel %vm3858, %v3616, %v4104
        %v4347 = vsel %vm3859, %v3617, %v4105
        %v4348 = vsel %vm3860, %v3618, %v4106
        %v4349 = vsel %vm3861, %v3619, %v4107
        %v4350 = vsel %vm3862, %v3620, %v4108
        %v4351 = vsel %vm3863, %v3621, %v4109
        %v4352 = vsel %vm3864, %v3622, %v4110
        %v4353 = vsel %vm3865, %v3623, %v4111
        %v4354 = vsel %vm3866, %v3624, %v4112
        %v4355 = vsel %vm3867, %v3625, %v4113
        %v4356 = vsel %vm3868, %v3626, %v4114
        %v4357 = vsel %vm3869, %v3627, %v4115
        %v4358 = vsel %vm3870, %v3628, %v4116
        %v4359 = vsel %vm3871, %v3629, %v4117
        %v4360 = vsel %vm3872, %v3630, %v4118
        %v4361 = vsel %vm3873, %v3631, %v4119
        %v4362 = vsel %vm3874, %v3632, %v4120
        %v4363 = vsel %vm3875, %v3633, %v4121
        %v4364 = vsel %vm3876, %v3634, %v4122
        %v4365 = vsel %vm3877, %v3635, %v4123
        %v4366 = vsel %vm3878, %v3636, %v4124
        %v4367 = vsel %vm3879, %v3637, %v4125
        %v4368 = vsel %vm3880, %v3638, %v4126
        %v4369 = vsel %vm3881, %v3639, %v4127
        %v4370 = vsel %vm3882, %v3640, %v4128
        %v4371 = vsel %vm3883, %v3641, %v4129
        %v4372 = vsel %vm3884, %v3642, %v4130
        %v4373 = vsel %vm3885, %v3643, %v4131
        %v4374 = vsel %vm3886, %v3644, %v4132
        %v4375 = vsel %vm3887, %v3645, %v4133
        %v4376 = vsel %vm3888, %v3646, %v4134
        %v4377 = vsel %vm3889, %v3647, %v4135
        %v4378 = vsel %vm3890, %v3648, %v4136
        %v4379 = vsel %vm3891, %v3649, %v4137
        %v4380 = vsel %vm3892, %v3650, %v4138
        %v4381 = vsel %vm3893, %v3651, %v4139
        %v4382 = vsel %vm3894, %v3652, %v4140
        %v4383 = vsel %vm3895, %v3653, %v4141
        %v4384 = vsel %vm3896, %v3654, %v4142
        %v4385 = vsel %vm3897, %v3655, %v4143
        %v4386 = vsel %vm3898, %v3656, %v4144
        %v4387 = vsel %vm3899, %v3657, %v4145
        %v4388 = vsel %vm3900, %v3658, %v4146
        %v4389 = vsel %vm3901, %v3659, %v4147
        %v4390 = vsel %vm3902, %v3660, %v4148
        %v4391 = vsel %vm3903, %v3661, %v4149
        %v4392 = vsel %vm3904, %v3662, %v4150
        %v4393 = vsel %vm3905, %v3663, %v4151
        %v4394 = vsel %vm3906, %v3664, %v4152
        %v4395 = vsel %vm3907, %v3665, %v4153
        %v4396 = vsel %vm3908, %v3666, %v4154
        %v4397 = vsel %vm3909, %v3667, %v4155
        %v4398 = vsel %vm3910, %v3668, %v4156
        %v4399 = vsel %vm3911, %v3669, %v4157
        %v4400 = vsel %vm3912, %v3670, %v4158
        %v4401 = vsel %vm3913, %v3671, %v4159
        %v4402 = vsel %vm3914, %v3672, %v4160
        %v4403 = vsel %vm3915, %v3673, %v4161
        %v4404 = vsel %vm3916, %v3674, %v4162
        %v4405 = vsel %vm3917, %v3675, %v4163
        %v4406 = vsel %vm3918, %v3676, %v4164
        %v4407 = vsel %vm3919, %v3677, %v4165
        %v4408 = vsel %vm3920, %v3678, %v4166
        %v4409 = vsel %vm3921, %v3679, %v4167
        %v4410 = vsel %vm3922, %v3680, %v4168
        %v4411 = vsel %vm3923, %v3681, %v4169
        %v4412 = vsel %vm3924, %v3682, %v4170
        %v4413 = vsel %vm3925, %v3683, %v4171
        %v4414 = vsel %vm3926, %v3684, %v4172
        %v4415 = vsel %vm3927, %v3685, %v4173
        %v4416 = vsel %vm3928, %v3686, %v4174
        %v4417 = vsel %vm3929, %v3687, %v4175
        %v4418 = vsel %vm3930, %v3688, %v4176
        %v4419 = vsel %vm3931, %v3689, %v4177
        %v4420 = vsel %vm3932, %v3690, %v4178
        %v4421 = vsel %vm3933, %v3691, %v4179
        %v4422 = vsel %vm3934, %v3692, %v4180
        %v4423 = vsel %vm3935, %v3693, %v4181
        %v4424 = vsel %vm3936, %v3694, %v4182
        %v4425 = vsel %vm3937, %v3695, %v4183
        %v4426 = vsel %vm3938, %v3696, %v4184
        %v4427 = vsel %vm3939, %v3697, %v4185
        %v4428 = vsel %vm3940, %v3698, %v4186
        %v4429 = vsel %vm3941, %v3699, %v4187
        %v4430 = vsel %vm3942, %v3700, %v4188
        %v4431 = vsel %vm3943, %v3701, %v4189
        %v4432 = vsel %vm3944, %v3702, %v4190
        %v4433 = vsel %vm3945, %v3703, %v4191
        %v4434 = vsel %vm3946, %v3704, %v4192
        %v4435 = vsel %vm3947, %v3705, %v4193
        %v4436 = vsel %vm3948, %v3706, %v4194
        %v4437 = vsel %vm3949, %v3707, %v4195
        %v4438 = vsel %vm3950, %v3708, %v4196
        %v4439 = vsel %vm3951, %v3709, %v4197
        %v4440 = vsel %vm3952, %v3710, %v4198
        %v4441 = vsel %vm3953, %v3711, %v4199
        %v4442 = vsel %vm3954, %v3712, %v4200
        %v4443 = vsel %vm3955, %v3713, %v4201
        %v4444 = vsel %vm3956, %v3714, %v4202
        %v4445 = vsel %vm3957, %v3715, %v4203
        %v4446 = vsel %vm3958, %v3716, %v4204
        %v4447 = vsel %vm3959, %v3717, %v4205
        %v4448 = vsel %vm3960, %v3718, %v4206
        %v4449 = vsel %vm3961, %v3719, %v4207
        %v4450 = vsel %vm3962, %v3720, %v4208
        %v4451 = vsel %vm3963, %v3721, %v4209
        %v4452 = vsel %vm3964, %v3722, %v4210
        %v4453 = vsel %vm3965, %v3723, %v4211
        %v4454 = vsel %vm3966, %v3724, %v4212
        %v4455 = vsel %vm3967, %v3725, %v4213
        %v4456 = vsel %vm3968, %v3726, %v4214
        %v4457 = vsel %vm3969, %v3727, %v4215
        %v4458 = vsel %vm3970, %v3728, %v4216
        %v4459 = vsel %vm3971, %v3729, %v4217
        %v4460 = vsel %vm3972, %v3730, %v4218
        %v4461 = vsel %vm3973, %v3731, %v4219
        %v4462 = vsel %vm3974, %v3732, %v4220
        %v4463 = vsel %vm3975, %v3733, %v4221
        %v4464 = vsel %vm3976, %v3734, %v4222
        %v4465 = vsel %vm3977, %v3735, %v4223
        %v4466 = vsel %vm3978, %v3736, %v4224
        %v4467 = vsel %vm3979, %v3737, %v4225
        %v4468 = vsel %vm3980, %v3738, %v4226
        %v4469 = vsel %vm3981, %v3739, %v4227
        %v4470 = vsel %vm3982, %v3740, %v4228
        %v4471 = vsel %vm3983, %v3741, %v4229
        %v4472 = vsel %vm3984, %v3742, %v4230
        %v4473 = vsel %vm3985, %v3743, %v4231
        %v4474 = vsel %vm3986, %v3744, %v4232
        %v4475 = vsel %vm3987, %v3745, %v4233
        %v4476 = vsel %vm3988, %v3746, %v4234
        %v4477 = vsel %vm3989, %v3747, %v4235
        %v4478 = vsel %vm3990, %v3748, %v4236
        %v4479 = vsel %vm3991, %v3749, %v4237
        %v4480 = vsel %vm3992, %v3750, %v4238
        %v4481 = vsel %vm3993, %v3751, %v4239
        %v4482 = vsel %vm3994, %v3752, %v4240
        %v4483 = vsel %vm3995, %v3753, %v4241
        %v4484 = vsel %vm3996, %v3754, %v4242
        %v4485 = vsel %vm3997, %v3755, %v4243
        %v4486 = vsel %vm3998, %v3756, %v4244
        %v4487 = vsel %vm3999, %v3757, %v4245
        %v4488 = vsel %vm4000, %v3758, %v4246
        %v4489 = vsel %vm4001, %v3759, %v4247
        %v4490 = vsel %vm4002, %v3760, %v4248
        %v4491 = vsel %vm4003, %v3761, %v4249
        %v4492 = vsel %vm4004, %v3762, %v4250
        %v4493 = vsel %vm4005, %v3763, %v4251
        %v4494 = vsel %vm4006, %v3764, %v4252
        %v4495 = vsel %vm4007, %v3765, %v4253
        %v4496 = vsel %vm4008, %v3766, %v4254
        %v4497 = vsel %vm4009, %v3767, %v4255
        %v4498 = vsel %vm4010, %v3768, %v4256
        %v4499 = vsel %vm4011, %v3769, %v4257
        %v4500 = vsel %vm4012, %v3770, %v4258
        %v4501 = vsel %vm4013, %v3771, %v4259
        %v4502 = vsel %vm4014, %v3772, %v4260
        %v4503 = vsel %vm4015, %v3773, %v4261
        %v4504 = vsel %vm4016, %v3774, %v4262
        %v4505 = vsel %vm4017, %v3775, %v4263
        %v4506 = vsel %vm4018, %v3776, %v4264
        %v4507 = vsel %vm4019, %v3777, %v4265
        %v4508 = vsel %vm4020, %v3778, %v4266
        %v4509 = vsel %vm4021, %v3779, %v4267
        %v4510 = vsel %vm4022, %v3780, %v4268
        %v4511 = vsel %vm4023, %v3781, %v4269
        %v4512 = vsel %vm4024, %v3782, %v4270
        %v4513 = vsel %vm4025, %v3783, %v4271
        %v4514 = vsel %vm4026, %v3784, %v4272
        %v4515 = vsel %vm4027, %v3785, %v4273
        %v4516 = vsel %vm4028, %v3786, %v4274
        %v4517 = vsel %vm4029, %v3787, %v4275
        %v4518 = vsel %vm4030, %v3788, %v4276
        %v4519 = vsel %vm4031, %v3789, %v4277
        %v4520 = vsel %vm4032, %v3790, %v4278
        %v4521 = vsel %vm4033, %v3791, %v4279
        %v4522 = vsel %vm4034, %v3792, %v4280
        %v4523 = vsel %vm4035, %v3793, %v4281
        %v4524 = vsel %vm4036, %v3794, %v4282
        %v4525 = vsel %vm4037, %v3795, %v4283
        %v4526 = vsel %vm4038, %v3796, %v4284
        %v4527 = vsel %vm4039, %v3797, %v4285
        %v4528 = vsel %vm4040, %v3798, %v4286
        %v4529 = vsel %vm4041, %v3799, %v4287
        %v4530 = vsel %vm4042, %v3800, %v4288
        %v4531 = vsel %vm4043, %v3801, %v4289
        %v4532 = vsel %vm4044, %v3802, %v4290
        %v4533 = vsel %vm4045, %v3803, %v4291
        %v4534 = vsel %vm4046, %v3804, %v4292
        %v4535 = vsel %vm4047, %v3805, %v4293
        %v4536 = vsel %vm4048, %v3806, %v4294
        %v4537 = vsel %vm4049, %v3807, %v4295
        %v4538 = vsel %vm4050, %v3808, %v4296
        %v4539 = vsel %vm4051, %v3809, %v4297
        %v4540 = vsel %vm4052, %v3810, %v4298
        %v4541 = vsel %vm4053, %v3811, %v4299
        %v4542 = vsel %vm4054, %v3812, %v4300
        %v4543 = vsel %vm4055, %v3813, %v4301
        %v4544 = vsel %vm4056, %v3814, %v4302
        %v4545 = vsel %vm4057, %v3815, %v4303
        %v4546 = vsel %vm4058, %v3816, %v4304
        %v4547 = vsel %vm4059, %v3817, %v4305
        %v4548 = vsel %vm4060, %v3818, %v4306
        %v4549 = vsel %vm4061, %v3819, %v4307
        %v4550 = vsel %vm4062, %v3820, %v4308
        %v4551 = vsel %vm4063, %v3821, %v4309
        %v4552 = vsel %vm4064, %v3822, %v4310
        %v4553 = vsel %vm4065, %v3823, %v4311
        %v4554 = vsel %vm4066, %v3824, %v4312
        %v4555 = vsel %vm4067, %v3825, %v4313
        %v4556 = vsel %vm4068, %v3826, %v4314
        %v4557 = vsel %vm4069, %v3827, %v4315
        %v4558 = vsel %vm4070, %v3828, %v4316
        %v4559 = vsel %vm4071, %v3829, %v4317
        %v4560 = vsel %vm4072, %v3830, %v4318
        %v4561 = vsel %vm4073, %v3831, %v4319
        %v4562 = vpack.c.bf16 %v4320, %v4320
        %v4563 = vpack.c.bf16 %v4321, %v4321
        %v4564 = vpack.c.bf16 %v4322, %v4322
        %v4565 = vpack.c.bf16 %v4323, %v4323
        %v4566 = vpack.c.bf16 %v4324, %v4324
        %v4567 = vpack.c.bf16 %v4325, %v4325
        %v4568 = vpack.c.bf16 %v4326, %v4326
        %v4569 = vpack.c.bf16 %v4327, %v4327
        %v4570 = vpack.c.bf16 %v4328, %v4328
        %v4571 = vpack.c.bf16 %v4329, %v4329
        %v4572 = vpack.c.bf16 %v4330, %v4330
        %v4573 = vpack.c.bf16 %v4331, %v4331
        %v4574 = vpack.c.bf16 %v4332, %v4332
        %v4575 = vpack.c.bf16 %v4333, %v4333
        %v4576 = vpack.c.bf16 %v4334, %v4334
        %v4577 = vpack.c.bf16 %v4335, %v4335
        %v4578 = vpack.c.bf16 %v4336, %v4336
        %v4579 = vpack.c.bf16 %v4337, %v4337
        %v4580 = vpack.c.bf16 %v4338, %v4338
        %v4581 = vpack.c.bf16 %v4339, %v4339
        %v4582 = vpack.c.bf16 %v4340, %v4340
        %v4583 = vpack.c.bf16 %v4341, %v4341
        %v4584 = vpack.c.bf16 %v4342, %v4342
        %v4585 = vpack.c.bf16 %v4343, %v4343
        %v4586 = vpack.c.bf16 %v4344, %v4344
        %v4587 = vpack.c.bf16 %v4345, %v4345
        %v4588 = vpack.c.bf16 %v4346, %v4346
        %v4589 = vpack.c.bf16 %v4347, %v4347
        %v4590 = vpack.c.bf16 %v4348, %v4348
        %v4591 = vpack.c.bf16 %v4349, %v4349
        %v4592 = vpack.c.bf16 %v4350, %v4350
        %v4593 = vpack.c.bf16 %v4351, %v4351
        %v4594 = vpack.c.bf16 %v4352, %v4352
        %v4595 = vpack.c.bf16 %v4353, %v4353
        %v4596 = vpack.c.bf16 %v4354, %v4354
        %v4597 = vpack.c.bf16 %v4355, %v4355
        %v4598 = vpack.c.bf16 %v4356, %v4356
        %v4599 = vpack.c.bf16 %v4357, %v4357
        %v4600 = vpack.c.bf16 %v4358, %v4358
        %v4601 = vpack.c.bf16 %v4359, %v4359
        %v4602 = vpack.c.bf16 %v4360, %v4360
        %v4603 = vpack.c.bf16 %v4361, %v4361
        %v4604 = vpack.c.bf16 %v4362, %v4362
        %v4605 = vpack.c.bf16 %v4363, %v4363
        %v4606 = vpack.c.bf16 %v4364, %v4364
        %v4607 = vpack.c.bf16 %v4365, %v4365
        %v4608 = vpack.c.bf16 %v4366, %v4366
        %v4609 = vpack.c.bf16 %v4367, %v4367
        %v4610 = vpack.c.bf16 %v4368, %v4368
        %v4611 = vpack.c.bf16 %v4369, %v4369
        %v4612 = vpack.c.bf16 %v4370, %v4370
        %v4613 = vpack.c.bf16 %v4371, %v4371
        %v4614 = vpack.c.bf16 %v4372, %v4372
        %v4615 = vpack.c.bf16 %v4373, %v4373
        %v4616 = vpack.c.bf16 %v4374, %v4374
        %v4617 = vpack.c.bf16 %v4375, %v4375
        %v4618 = vpack.c.bf16 %v4376, %v4376
        %v4619 = vpack.c.bf16 %v4377, %v4377
        %v4620 = vpack.c.bf16 %v4378, %v4378
        %v4621 = vpack.c.bf16 %v4379, %v4379
        %v4622 = vpack.c.bf16 %v4380, %v4380
        %v4623 = vpack.c.bf16 %v4381, %v4381
        %v4624 = vpack.c.bf16 %v4382, %v4382
        %v4625 = vpack.c.bf16 %v4383, %v4383
        %v4626 = vpack.c.bf16 %v4384, %v4384
        %v4627 = vpack.c.bf16 %v4385, %v4385
        %v4628 = vpack.c.bf16 %v4386, %v4386
        %v4629 = vpack.c.bf16 %v4387, %v4387
        %v4630 = vpack.c.bf16 %v4388, %v4388
        %v4631 = vpack.c.bf16 %v4389, %v4389
        %v4632 = vpack.c.bf16 %v4390, %v4390
        %v4633 = vpack.c.bf16 %v4391, %v4391
        %v4634 = vpack.c.bf16 %v4392, %v4392
        %v4635 = vpack.c.bf16 %v4393, %v4393
        %v4636 = vpack.c.bf16 %v4394, %v4394
        %v4637 = vpack.c.bf16 %v4395, %v4395
        %v4638 = vpack.c.bf16 %v4396, %v4396
        %v4639 = vpack.c.bf16 %v4397, %v4397
        %v4640 = vpack.c.bf16 %v4398, %v4398
        %v4641 = vpack.c.bf16 %v4399, %v4399
        %v4642 = vpack.c.bf16 %v4400, %v4400
        %v4643 = vpack.c.bf16 %v4401, %v4401
        %v4644 = vpack.c.bf16 %v4402, %v4402
        %v4645 = vpack.c.bf16 %v4403, %v4403
        %v4646 = vpack.c.bf16 %v4404, %v4404
        %v4647 = vpack.c.bf16 %v4405, %v4405
        %v4648 = vpack.c.bf16 %v4406, %v4406
        %v4649 = vpack.c.bf16 %v4407, %v4407
        %v4650 = vpack.c.bf16 %v4408, %v4408
        %v4651 = vpack.c.bf16 %v4409, %v4409
        %v4652 = vpack.c.bf16 %v4410, %v4410
        %v4653 = vpack.c.bf16 %v4411, %v4411
        %v4654 = vpack.c.bf16 %v4412, %v4412
        %v4655 = vpack.c.bf16 %v4413, %v4413
        %v4656 = vpack.c.bf16 %v4414, %v4414
        %v4657 = vpack.c.bf16 %v4415, %v4415
        %v4658 = vpack.c.bf16 %v4416, %v4416
        %v4659 = vpack.c.bf16 %v4417, %v4417
        %v4660 = vpack.c.bf16 %v4418, %v4418
        %v4661 = vpack.c.bf16 %v4419, %v4419
        %v4662 = vpack.c.bf16 %v4420, %v4420
        %v4663 = vpack.c.bf16 %v4421, %v4421
        %v4664 = vpack.c.bf16 %v4422, %v4422
        %v4665 = vpack.c.bf16 %v4423, %v4423
        %v4666 = vpack.c.bf16 %v4424, %v4424
        %v4667 = vpack.c.bf16 %v4425, %v4425
        %v4668 = vpack.c.bf16 %v4426, %v4426
        %v4669 = vpack.c.bf16 %v4427, %v4427
        %v4670 = vpack.c.bf16 %v4428, %v4428
        %v4671 = vpack.c.bf16 %v4429, %v4429
        %v4672 = vpack.c.bf16 %v4430, %v4430
        %v4673 = vpack.c.bf16 %v4431, %v4431
        %v4674 = vpack.c.bf16 %v4432, %v4432
        %v4675 = vpack.c.bf16 %v4433, %v4433
        %v4676 = vpack.c.bf16 %v4434, %v4434
        %v4677 = vpack.c.bf16 %v4435, %v4435
        %v4678 = vpack.c.bf16 %v4436, %v4436
        %v4679 = vpack.c.bf16 %v4437, %v4437
        %v4680 = vpack.c.bf16 %v4438, %v4438
        %v4681 = vpack.c.bf16 %v4439, %v4439
        %v4682 = vpack.c.bf16 %v4440, %v4440
        %v4683 = vpack.c.bf16 %v4441, %v4441
        %v4684 = vpack.c.bf16 %v4442, %v4442
        %v4685 = vpack.c.bf16 %v4443, %v4443
        %v4686 = vpack.c.bf16 %v4444, %v4444
        %v4687 = vpack.c.bf16 %v4445, %v4445
        %v4688 = vpack.c.bf16 %v4446, %v4446
        %v4689 = vpack.c.bf16 %v4447, %v4447
        %v4690 = vpack.c.bf16 %v4448, %v4448
        %v4691 = vpack.c.bf16 %v4449, %v4449
        %v4692 = vpack.c.bf16 %v4450, %v4450
        %v4693 = vpack.c.bf16 %v4451, %v4451
        %v4694 = vpack.c.bf16 %v4452, %v4452
        %v4695 = vpack.c.bf16 %v4453, %v4453
        %v4696 = vpack.c.bf16 %v4454, %v4454
        %v4697 = vpack.c.bf16 %v4455, %v4455
        %v4698 = vpack.c.bf16 %v4456, %v4456
        %v4699 = vpack.c.bf16 %v4457, %v4457
        %v4700 = vpack.c.bf16 %v4458, %v4458
        %v4701 = vpack.c.bf16 %v4459, %v4459
        %v4702 = vpack.c.bf16 %v4460, %v4460
        %v4703 = vpack.c.bf16 %v4461, %v4461
        %v4704 = vpack.c.bf16 %v4462, %v4462
        %v4705 = vpack.c.bf16 %v4463, %v4463
        %v4706 = vpack.c.bf16 %v4464, %v4464
        %v4707 = vpack.c.bf16 %v4465, %v4465
        %v4708 = vpack.c.bf16 %v4466, %v4466
        %v4709 = vpack.c.bf16 %v4467, %v4467
        %v4710 = vpack.c.bf16 %v4468, %v4468
        %v4711 = vpack.c.bf16 %v4469, %v4469
        %v4712 = vpack.c.bf16 %v4470, %v4470
        %v4713 = vpack.c.bf16 %v4471, %v4471
        %v4714 = vpack.c.bf16 %v4472, %v4472
        %v4715 = vpack.c.bf16 %v4473, %v4473
        %v4716 = vpack.c.bf16 %v4474, %v4474
        %v4717 = vpack.c.bf16 %v4475, %v4475
        %v4718 = vpack.c.bf16 %v4476, %v4476
        %v4719 = vpack.c.bf16 %v4477, %v4477
        %v4720 = vpack.c.bf16 %v4478, %v4478
        %v4721 = vpack.c.bf16 %v4479, %v4479
        %v4722 = vpack.c.bf16 %v4480, %v4480
        %v4723 = vpack.c.bf16 %v4481, %v4481
        %v4724 = vpack.c.bf16 %v4482, %v4482
        %v4725 = vpack.c.bf16 %v4483, %v4483
        %v4726 = vpack.c.bf16 %v4484, %v4484
        %v4727 = vpack.c.bf16 %v4485, %v4485
        %v4728 = vpack.c.bf16 %v4486, %v4486
        %v4729 = vpack.c.bf16 %v4487, %v4487
        %v4730 = vpack.c.bf16 %v4488, %v4488
        %v4731 = vpack.c.bf16 %v4489, %v4489
        %v4732 = vpack.c.bf16 %v4490, %v4490
        %v4733 = vpack.c.bf16 %v4491, %v4491
        %v4734 = vpack.c.bf16 %v4492, %v4492
        %v4735 = vpack.c.bf16 %v4493, %v4493
        %v4736 = vpack.c.bf16 %v4494, %v4494
        %v4737 = vpack.c.bf16 %v4495, %v4495
        %v4738 = vpack.c.bf16 %v4496, %v4496
        %v4739 = vpack.c.bf16 %v4497, %v4497
        %v4740 = vpack.c.bf16 %v4498, %v4498
        %v4741 = vpack.c.bf16 %v4499, %v4499
        %v4742 = vpack.c.bf16 %v4500, %v4500
        %v4743 = vpack.c.bf16 %v4501, %v4501
        %v4744 = vpack.c.bf16 %v4502, %v4502
        %v4745 = vpack.c.bf16 %v4503, %v4503
        %v4746 = vpack.c.bf16 %v4504, %v4504
        %v4747 = vpack.c.bf16 %v4505, %v4505
        %v4748 = vpack.c.bf16 %v4506, %v4506
        %v4749 = vpack.c.bf16 %v4507, %v4507
        %v4750 = vpack.c.bf16 %v4508, %v4508
        %v4751 = vpack.c.bf16 %v4509, %v4509
        %v4752 = vpack.c.bf16 %v4510, %v4510
        %v4753 = vpack.c.bf16 %v4511, %v4511
        %v4754 = vpack.c.bf16 %v4512, %v4512
        %v4755 = vpack.c.bf16 %v4513, %v4513
        %v4756 = vpack.c.bf16 %v4514, %v4514
        %v4757 = vpack.c.bf16 %v4515, %v4515
        %v4758 = vpack.c.bf16 %v4516, %v4516
        %v4759 = vpack.c.bf16 %v4517, %v4517
        %v4760 = vpack.c.bf16 %v4518, %v4518
        %v4761 = vpack.c.bf16 %v4519, %v4519
        %v4762 = vpack.c.bf16 %v4520, %v4520
        %v4763 = vpack.c.bf16 %v4521, %v4521
        %v4764 = vpack.c.bf16 %v4522, %v4522
        %v4765 = vpack.c.bf16 %v4523, %v4523
        %v4766 = vpack.c.bf16 %v4524, %v4524
        %v4767 = vpack.c.bf16 %v4525, %v4525
        %v4768 = vpack.c.bf16 %v4526, %v4526
        %v4769 = vpack.c.bf16 %v4527, %v4527
        %v4770 = vpack.c.bf16 %v4528, %v4528
        %v4771 = vpack.c.bf16 %v4529, %v4529
        %v4772 = vpack.c.bf16 %v4530, %v4530
        %v4773 = vpack.c.bf16 %v4531, %v4531
        %v4774 = vpack.c.bf16 %v4532, %v4532
        %v4775 = vpack.c.bf16 %v4533, %v4533
        %v4776 = vpack.c.bf16 %v4534, %v4534
        %v4777 = vpack.c.bf16 %v4535, %v4535
        %v4778 = vpack.c.bf16 %v4536, %v4536
        %v4779 = vpack.c.bf16 %v4537, %v4537
        %v4780 = vpack.c.bf16 %v4538, %v4538
        %v4781 = vpack.c.bf16 %v4539, %v4539
        %v4782 = vpack.c.bf16 %v4540, %v4540
        %v4783 = vpack.c.bf16 %v4541, %v4541
        %v4784 = vpack.c.bf16 %v4542, %v4542
        %v4785 = vpack.c.bf16 %v4543, %v4543
        %v4786 = vpack.c.bf16 %v4544, %v4544
        %v4787 = vpack.c.bf16 %v4545, %v4545
        %v4788 = vpack.c.bf16 %v4546, %v4546
        %v4789 = vpack.c.bf16 %v4547, %v4547
        %v4790 = vpack.c.bf16 %v4548, %v4548
        %v4791 = vpack.c.bf16 %v4549, %v4549
        %v4792 = vpack.c.bf16 %v4550, %v4550
        %v4793 = vpack.c.bf16 %v4551, %v4551
        %v4794 = vpack.c.bf16 %v4552, %v4552
        %v4795 = vpack.c.bf16 %v4553, %v4553
        %v4796 = vpack.c.bf16 %v4554, %v4554
        %v4797 = vpack.c.bf16 %v4555, %v4555
        %v4798 = vpack.c.bf16 %v4556, %v4556
        %v4799 = vpack.c.bf16 %v4557, %v4557
        %v4800 = vpack.c.bf16 %v4558, %v4558
        %v4801 = vpack.c.bf16 %v4559, %v4559
        %v4802 = vpack.c.bf16 %v4560, %v4560
        %v4803 = vpack.c.bf16 %v4561, %v4561
        %vm4804 = vcmask 519168
        %4805 = vst.msk [vmem:[%s271] sm:$0xf] %vm4804, %v4562
        %4806 = vst.msk [vmem:[%s271 + $0x4] sm:$0xf] %vm4804, %v4563
        %4807 = vst.msk [vmem:[%s271 + $0x8] sm:$0xf] %vm4804, %v4564
        %4808 = vst.msk [vmem:[%s271 + $0xc] sm:$0xf] %vm4804, %v4565
        %4809 = vst.msk [vmem:[%s271 + $0x10] sm:$0xf] %vm4804, %v4566
        %4810 = vst.msk [vmem:[%s271 + $0x14] sm:$0xf] %vm4804, %v4567
        %4811 = vst.msk [vmem:[%s271 + $0x18] sm:$0xf] %vm4804, %v4568
        %4812 = vst.msk [vmem:[%s271 + $0x1c] sm:$0xf] %vm4804, %v4569
        %4813 = vst.msk [vmem:[%s271 + $0x20] sm:$0xf] %vm4804, %v4570
        %4814 = vst.msk [vmem:[%s271 + $0x24] sm:$0xf] %vm4804, %v4571
        %4815 = vst.msk [vmem:[%s271 + $0x28] sm:$0xf] %vm4804, %v4572
        %4816 = vst.msk [vmem:[%s271 + $0x2c] sm:$0xf] %vm4804, %v4573
        %4817 = vst.msk [vmem:[%s271 + $0x30] sm:$0xf] %vm4804, %v4574
        %4818 = vst.msk [vmem:[%s271 + $0x34] sm:$0xf] %vm4804, %v4575
        %4819 = vst.msk [vmem:[%s271 + $0x38] sm:$0xf] %vm4804, %v4576
        %4820 = vst.msk [vmem:[%s271 + $0x3c] sm:$0xf] %vm4804, %v4577
        %4821 = vst.msk [vmem:[%s271 + $0x40] sm:$0xf] %vm4804, %v4578
        %4822 = vst.msk [vmem:[%s271 + $0x44] sm:$0xf] %vm4804, %v4579
        %4823 = vst.msk [vmem:[%s271 + $0x48] sm:$0xf] %vm4804, %v4580
        %4824 = vst.msk [vmem:[%s271 + $0x4c] sm:$0xf] %vm4804, %v4581
        %4825 = vst.msk [vmem:[%s271 + $0x50] sm:$0xf] %vm4804, %v4582
        %4826 = vst.msk [vmem:[%s271 + $0x54] sm:$0xf] %vm4804, %v4583
        %4827 = vst.msk [vmem:[%s271 + $0x58] sm:$0xf] %vm4804, %v4584
        %4828 = vst.msk [vmem:[%s271 + $0x5c] sm:$0xf] %vm4804, %v4585
        %4829 = vst.msk [vmem:[%s271 + $0x60] sm:$0xf] %vm4804, %v4586
        %4830 = vst.msk [vmem:[%s271 + $0x64] sm:$0xf] %vm4804, %v4587
        %4831 = vst.msk [vmem:[%s271 + $0x68] sm:$0xf] %vm4804, %v4588
        %4832 = vst.msk [vmem:[%s271 + $0x6c] sm:$0xf] %vm4804, %v4589
        %4833 = vst.msk [vmem:[%s271 + $0x70] sm:$0xf] %vm4804, %v4590
        %4834 = vst.msk [vmem:[%s271 + $0x74] sm:$0xf] %vm4804, %v4591
        %4835 = vst.msk [vmem:[%s271 + $0x78] sm:$0xf] %vm4804, %v4592
        %4836 = vst.msk [vmem:[%s271 + $0x7c] sm:$0xf] %vm4804, %v4593
        %4837 = vst.msk [vmem:[%s271 + $0x80] sm:$0xf] %vm4804, %v4594
        %4838 = vst.msk [vmem:[%s271 + $0x84] sm:$0xf] %vm4804, %v4595
        %4839 = vst.msk [vmem:[%s271 + $0x88] sm:$0xf] %vm4804, %v4596
        %4840 = vst.msk [vmem:[%s271 + $0x8c] sm:$0xf] %vm4804, %v4597
        %4841 = vst.msk [vmem:[%s271 + $0x90] sm:$0xf] %vm4804, %v4598
        %4842 = vst.msk [vmem:[%s271 + $0x94] sm:$0xf] %vm4804, %v4599
        %4843 = vst.msk [vmem:[%s271 + $0x98] sm:$0xf] %vm4804, %v4600
        %4844 = vst.msk [vmem:[%s271 + $0x9c] sm:$0xf] %vm4804, %v4601
        %4845 = vst.msk [vmem:[%s271 + $0xa0] sm:$0xf] %vm4804, %v4602
        %4846 = vst.msk [vmem:[%s271 + $0xa4] sm:$0xf] %vm4804, %v4603
        %4847 = vst.msk [vmem:[%s271 + $0xa8] sm:$0xf] %vm4804, %v4604
        %4848 = vst.msk [vmem:[%s271 + $0xac] sm:$0xf] %vm4804, %v4605
        %4849 = vst.msk [vmem:[%s271 + $0xb0] sm:$0xf] %vm4804, %v4606
        %4850 = vst.msk [vmem:[%s271 + $0xb4] sm:$0xf] %vm4804, %v4607
        %4851 = vst.msk [vmem:[%s271 + $0xb8] sm:$0xf] %vm4804, %v4608
        %4852 = vst.msk [vmem:[%s271 + $0xbc] sm:$0xf] %vm4804, %v4609
        %4853 = vst.msk [vmem:[%s271 + $0xc0] sm:$0xf] %vm4804, %v4610
        %4854 = vst.msk [vmem:[%s271 + $0xc4] sm:$0xf] %vm4804, %v4611
        %4855 = vst.msk [vmem:[%s271 + $0xc8] sm:$0xf] %vm4804, %v4612
        %4856 = vst.msk [vmem:[%s271 + $0xcc] sm:$0xf] %vm4804, %v4613
        %4857 = vst.msk [vmem:[%s271 + $0xd0] sm:$0xf] %vm4804, %v4614
        %4858 = vst.msk [vmem:[%s271 + $0xd4] sm:$0xf] %vm4804, %v4615
        %4859 = vst.msk [vmem:[%s271 + $0xd8] sm:$0xf] %vm4804, %v4616
        %4860 = vst.msk [vmem:[%s271 + $0xdc] sm:$0xf] %vm4804, %v4617
        %4861 = vst.msk [vmem:[%s271 + $0xe0] sm:$0xf] %vm4804, %v4618
        %4862 = vst.msk [vmem:[%s271 + $0xe4] sm:$0xf] %vm4804, %v4619
        %4863 = vst.msk [vmem:[%s271 + $0xe8] sm:$0xf] %vm4804, %v4620
        %4864 = vst.msk [vmem:[%s271 + $0xec] sm:$0xf] %vm4804, %v4621
        %4865 = vst.msk [vmem:[%s271 + $0xf0] sm:$0xf] %vm4804, %v4622
        %4866 = vst.msk [vmem:[%s271 + $0xf4] sm:$0xf] %vm4804, %v4623
        %4867 = vst.msk [vmem:[%s271 + $0xf8] sm:$0xf] %vm4804, %v4624
        %4868 = vst.msk [vmem:[%s271 + $0xfc] sm:$0xf] %vm4804, %v4625
        %4869 = vst.msk [vmem:[%s271 + $0x100] sm:$0xf] %vm4804, %v4626
        %4870 = vst.msk [vmem:[%s271 + $0x104] sm:$0xf] %vm4804, %v4627
        %4871 = vst.msk [vmem:[%s271 + $0x108] sm:$0xf] %vm4804, %v4628
        %4872 = vst.msk [vmem:[%s271 + $0x10c] sm:$0xf] %vm4804, %v4629
        %4873 = vst.msk [vmem:[%s271 + $0x110] sm:$0xf] %vm4804, %v4630
        %4874 = vst.msk [vmem:[%s271 + $0x114] sm:$0xf] %vm4804, %v4631
        %4875 = vst.msk [vmem:[%s271 + $0x118] sm:$0xf] %vm4804, %v4632
        %4876 = vst.msk [vmem:[%s271 + $0x11c] sm:$0xf] %vm4804, %v4633
        %4877 = vst.msk [vmem:[%s271 + $0x120] sm:$0xf] %vm4804, %v4634
        %4878 = vst.msk [vmem:[%s271 + $0x124] sm:$0xf] %vm4804, %v4635
        %4879 = vst.msk [vmem:[%s271 + $0x128] sm:$0xf] %vm4804, %v4636
        %4880 = vst.msk [vmem:[%s271 + $0x12c] sm:$0xf] %vm4804, %v4637
        %4881 = vst.msk [vmem:[%s271 + $0x130] sm:$0xf] %vm4804, %v4638
        %4882 = vst.msk [vmem:[%s271 + $0x134] sm:$0xf] %vm4804, %v4639
        %4883 = vst.msk [vmem:[%s271 + $0x138] sm:$0xf] %vm4804, %v4640
        %4884 = vst.msk [vmem:[%s271 + $0x13c] sm:$0xf] %vm4804, %v4641
        %4885 = vst.msk [vmem:[%s271 + $0x140] sm:$0xf] %vm4804, %v4642
        %4886 = vst.msk [vmem:[%s271 + $0x144] sm:$0xf] %vm4804, %v4643
        %4887 = vst.msk [vmem:[%s271 + $0x148] sm:$0xf] %vm4804, %v4644
        %4888 = vst.msk [vmem:[%s271 + $0x14c] sm:$0xf] %vm4804, %v4645
        %4889 = vst.msk [vmem:[%s271 + $0x150] sm:$0xf] %vm4804, %v4646
        %4890 = vst.msk [vmem:[%s271 + $0x154] sm:$0xf] %vm4804, %v4647
        %4891 = vst.msk [vmem:[%s271 + $0x158] sm:$0xf] %vm4804, %v4648
        %4892 = vst.msk [vmem:[%s271 + $0x15c] sm:$0xf] %vm4804, %v4649
        %4893 = vst.msk [vmem:[%s271 + $0x160] sm:$0xf] %vm4804, %v4650
        %4894 = vst.msk [vmem:[%s271 + $0x164] sm:$0xf] %vm4804, %v4651
        %4895 = vst.msk [vmem:[%s271 + $0x168] sm:$0xf] %vm4804, %v4652
        %4896 = vst.msk [vmem:[%s271 + $0x16c] sm:$0xf] %vm4804, %v4653
        %4897 = vst.msk [vmem:[%s271 + $0x170] sm:$0xf] %vm4804, %v4654
        %4898 = vst.msk [vmem:[%s271 + $0x174] sm:$0xf] %vm4804, %v4655
        %4899 = vst.msk [vmem:[%s271 + $0x178] sm:$0xf] %vm4804, %v4656
        %4900 = vst.msk [vmem:[%s271 + $0x17c] sm:$0xf] %vm4804, %v4657
        %4901 = vst.msk [vmem:[%s271 + $0x180] sm:$0xf] %vm4804, %v4658
        %4902 = vst.msk [vmem:[%s271 + $0x184] sm:$0xf] %vm4804, %v4659
        %4903 = vst.msk [vmem:[%s271 + $0x188] sm:$0xf] %vm4804, %v4660
        %4904 = vst.msk [vmem:[%s271 + $0x18c] sm:$0xf] %vm4804, %v4661
        %4905 = vst.msk [vmem:[%s271 + $0x190] sm:$0xf] %vm4804, %v4662
        %4906 = vst.msk [vmem:[%s271 + $0x194] sm:$0xf] %vm4804, %v4663
        %4907 = vst.msk [vmem:[%s271 + $0x198] sm:$0xf] %vm4804, %v4664
        %4908 = vst.msk [vmem:[%s271 + $0x19c] sm:$0xf] %vm4804, %v4665
        %4909 = vst.msk [vmem:[%s271 + $0x1a0] sm:$0xf] %vm4804, %v4666
        %4910 = vst.msk [vmem:[%s271 + $0x1a4] sm:$0xf] %vm4804, %v4667
        %4911 = vst.msk [vmem:[%s271 + $0x1a8] sm:$0xf] %vm4804, %v4668
        %4912 = vst.msk [vmem:[%s271 + $0x1ac] sm:$0xf] %vm4804, %v4669
        %4913 = vst.msk [vmem:[%s271 + $0x1b0] sm:$0xf] %vm4804, %v4670
        %4914 = vst.msk [vmem:[%s271 + $0x1b4] sm:$0xf] %vm4804, %v4671
        %4915 = vst.msk [vmem:[%s271 + $0x1b8] sm:$0xf] %vm4804, %v4672
        %4916 = vst.msk [vmem:[%s271 + $0x1bc] sm:$0xf] %vm4804, %v4673
        %4917 = vst.msk [vmem:[%s271 + $0x1c0] sm:$0xf] %vm4804, %v4674
        %4918 = vst.msk [vmem:[%s271 + $0x1c4] sm:$0xf] %vm4804, %v4675
        %4919 = vst.msk [vmem:[%s271 + $0x1c8] sm:$0xf] %vm4804, %v4676
        %4920 = vst.msk [vmem:[%s271 + $0x1cc] sm:$0xf] %vm4804, %v4677
        %4921 = vst.msk [vmem:[%s271 + $0x1d0] sm:$0xf] %vm4804, %v4678
        %4922 = vst.msk [vmem:[%s271 + $0x1d4] sm:$0xf] %vm4804, %v4679
        %4923 = vst.msk [vmem:[%s271 + $0x1d8] sm:$0xf] %vm4804, %v4680
        %4924 = vst.msk [vmem:[%s271 + $0x1dc] sm:$0xf] %vm4804, %v4681
        %4925 = vst.msk [vmem:[%s271 + $0x1e0] sm:$0xf] %vm4804, %v4682
        %4926 = vst.msk [vmem:[%s271 + $0x1e4] sm:$0xf] %vm4804, %v4683
        %4927 = vst.msk [vmem:[%s271 + $0x1e8] sm:$0xf] %vm4804, %v4684
        %4928 = vst.msk [vmem:[%s271 + $0x1ec] sm:$0xf] %vm4804, %v4685
        %4929 = vst.msk [vmem:[%s271 + $0x1f0] sm:$0xf] %vm4804, %v4686
        %4930 = vst.msk [vmem:[%s271 + $0x1f4] sm:$0xf] %vm4804, %v4687
        %4931 = vst.msk [vmem:[%s271 + $0x1f8] sm:$0xf] %vm4804, %v4688
        %4932 = vst.msk [vmem:[%s271 + $0x1fc] sm:$0xf] %vm4804, %v4689
        %4933 = vst.msk [vmem:[%s271 + $0x200] sm:$0xf] %vm4804, %v4690
        %4934 = vst.msk [vmem:[%s271 + $0x204] sm:$0xf] %vm4804, %v4691
        %4935 = vst.msk [vmem:[%s271 + $0x208] sm:$0xf] %vm4804, %v4692
        %4936 = vst.msk [vmem:[%s271 + $0x20c] sm:$0xf] %vm4804, %v4693
        %4937 = vst.msk [vmem:[%s271 + $0x210] sm:$0xf] %vm4804, %v4694
        %4938 = vst.msk [vmem:[%s271 + $0x214] sm:$0xf] %vm4804, %v4695
        %4939 = vst.msk [vmem:[%s271 + $0x218] sm:$0xf] %vm4804, %v4696
        %4940 = vst.msk [vmem:[%s271 + $0x21c] sm:$0xf] %vm4804, %v4697
        %4941 = vst.msk [vmem:[%s271 + $0x220] sm:$0xf] %vm4804, %v4698
        %4942 = vst.msk [vmem:[%s271 + $0x224] sm:$0xf] %vm4804, %v4699
        %4943 = vst.msk [vmem:[%s271 + $0x228] sm:$0xf] %vm4804, %v4700
        %4944 = vst.msk [vmem:[%s271 + $0x22c] sm:$0xf] %vm4804, %v4701
        %4945 = vst.msk [vmem:[%s271 + $0x230] sm:$0xf] %vm4804, %v4702
        %4946 = vst.msk [vmem:[%s271 + $0x234] sm:$0xf] %vm4804, %v4703
        %4947 = vst.msk [vmem:[%s271 + $0x238] sm:$0xf] %vm4804, %v4704
        %4948 = vst.msk [vmem:[%s271 + $0x23c] sm:$0xf] %vm4804, %v4705
        %4949 = vst.msk [vmem:[%s271 + $0x240] sm:$0xf] %vm4804, %v4706
        %4950 = vst.msk [vmem:[%s271 + $0x244] sm:$0xf] %vm4804, %v4707
        %4951 = vst.msk [vmem:[%s271 + $0x248] sm:$0xf] %vm4804, %v4708
        %4952 = vst.msk [vmem:[%s271 + $0x24c] sm:$0xf] %vm4804, %v4709
        %4953 = vst.msk [vmem:[%s271 + $0x250] sm:$0xf] %vm4804, %v4710
        %4954 = vst.msk [vmem:[%s271 + $0x254] sm:$0xf] %vm4804, %v4711
        %4955 = vst.msk [vmem:[%s271 + $0x258] sm:$0xf] %vm4804, %v4712
        %4956 = vst.msk [vmem:[%s271 + $0x25c] sm:$0xf] %vm4804, %v4713
        %4957 = vst.msk [vmem:[%s271 + $0x260] sm:$0xf] %vm4804, %v4714
        %4958 = vst.msk [vmem:[%s271 + $0x264] sm:$0xf] %vm4804, %v4715
        %4959 = vst.msk [vmem:[%s271 + $0x268] sm:$0xf] %vm4804, %v4716
        %4960 = vst.msk [vmem:[%s271 + $0x26c] sm:$0xf] %vm4804, %v4717
        %4961 = vst.msk [vmem:[%s271 + $0x270] sm:$0xf] %vm4804, %v4718
        %4962 = vst.msk [vmem:[%s271 + $0x274] sm:$0xf] %vm4804, %v4719
        %4963 = vst.msk [vmem:[%s271 + $0x278] sm:$0xf] %vm4804, %v4720
        %4964 = vst.msk [vmem:[%s271 + $0x27c] sm:$0xf] %vm4804, %v4721
        %4965 = vst.msk [vmem:[%s271 + $0x280] sm:$0xf] %vm4804, %v4722
        %4966 = vst.msk [vmem:[%s271 + $0x284] sm:$0xf] %vm4804, %v4723
        %4967 = vst.msk [vmem:[%s271 + $0x288] sm:$0xf] %vm4804, %v4724
        %4968 = vst.msk [vmem:[%s271 + $0x28c] sm:$0xf] %vm4804, %v4725
        %4969 = vst.msk [vmem:[%s271 + $0x290] sm:$0xf] %vm4804, %v4726
        %4970 = vst.msk [vmem:[%s271 + $0x294] sm:$0xf] %vm4804, %v4727
        %4971 = vst.msk [vmem:[%s271 + $0x298] sm:$0xf] %vm4804, %v4728
        %4972 = vst.msk [vmem:[%s271 + $0x29c] sm:$0xf] %vm4804, %v4729
        %4973 = vst.msk [vmem:[%s271 + $0x2a0] sm:$0xf] %vm4804, %v4730
        %4974 = vst.msk [vmem:[%s271 + $0x2a4] sm:$0xf] %vm4804, %v4731
        %4975 = vst.msk [vmem:[%s271 + $0x2a8] sm:$0xf] %vm4804, %v4732
        %4976 = vst.msk [vmem:[%s271 + $0x2ac] sm:$0xf] %vm4804, %v4733
        %4977 = vst.msk [vmem:[%s271 + $0x2b0] sm:$0xf] %vm4804, %v4734
        %4978 = vst.msk [vmem:[%s271 + $0x2b4] sm:$0xf] %vm4804, %v4735
        %4979 = vst.msk [vmem:[%s271 + $0x2b8] sm:$0xf] %vm4804, %v4736
        %4980 = vst.msk [vmem:[%s271 + $0x2bc] sm:$0xf] %vm4804, %v4737
        %4981 = vst.msk [vmem:[%s271 + $0x2c0] sm:$0xf] %vm4804, %v4738
        %4982 = vst.msk [vmem:[%s271 + $0x2c4] sm:$0xf] %vm4804, %v4739
        %4983 = vst.msk [vmem:[%s271 + $0x2c8] sm:$0xf] %vm4804, %v4740
        %4984 = vst.msk [vmem:[%s271 + $0x2cc] sm:$0xf] %vm4804, %v4741
        %4985 = vst.msk [vmem:[%s271 + $0x2d0] sm:$0xf] %vm4804, %v4742
        %4986 = vst.msk [vmem:[%s271 + $0x2d4] sm:$0xf] %vm4804, %v4743
        %4987 = vst.msk [vmem:[%s271 + $0x2d8] sm:$0xf] %vm4804, %v4744
        %4988 = vst.msk [vmem:[%s271 + $0x2dc] sm:$0xf] %vm4804, %v4745
        %4989 = vst.msk [vmem:[%s271 + $0x2e0] sm:$0xf] %vm4804, %v4746
        %4990 = vst.msk [vmem:[%s271 + $0x2e4] sm:$0xf] %vm4804, %v4747
        %4991 = vst.msk [vmem:[%s271 + $0x2e8] sm:$0xf] %vm4804, %v4748
        %4992 = vst.msk [vmem:[%s271 + $0x2ec] sm:$0xf] %vm4804, %v4749
        %4993 = vst.msk [vmem:[%s271 + $0x2f0] sm:$0xf] %vm4804, %v4750
        %4994 = vst.msk [vmem:[%s271 + $0x2f4] sm:$0xf] %vm4804, %v4751
        %4995 = vst.msk [vmem:[%s271 + $0x2f8] sm:$0xf] %vm4804, %v4752
        %4996 = vst.msk [vmem:[%s271 + $0x2fc] sm:$0xf] %vm4804, %v4753
        %4997 = vst.msk [vmem:[%s271 + $0x300] sm:$0xf] %vm4804, %v4754
        %4998 = vst.msk [vmem:[%s271 + $0x304] sm:$0xf] %vm4804, %v4755
        %4999 = vst.msk [vmem:[%s271 + $0x308] sm:$0xf] %vm4804, %v4756
        %5000 = vst.msk [vmem:[%s271 + $0x30c] sm:$0xf] %vm4804, %v4757
        %5001 = vst.msk [vmem:[%s271 + $0x310] sm:$0xf] %vm4804, %v4758
        %5002 = vst.msk [vmem:[%s271 + $0x314] sm:$0xf] %vm4804, %v4759
        %5003 = vst.msk [vmem:[%s271 + $0x318] sm:$0xf] %vm4804, %v4760
        %5004 = vst.msk [vmem:[%s271 + $0x31c] sm:$0xf] %vm4804, %v4761
        %5005 = vst.msk [vmem:[%s271 + $0x320] sm:$0xf] %vm4804, %v4762
        %5006 = vst.msk [vmem:[%s271 + $0x324] sm:$0xf] %vm4804, %v4763
        %5007 = vst.msk [vmem:[%s271 + $0x328] sm:$0xf] %vm4804, %v4764
        %5008 = vst.msk [vmem:[%s271 + $0x32c] sm:$0xf] %vm4804, %v4765
        %5009 = vst.msk [vmem:[%s271 + $0x330] sm:$0xf] %vm4804, %v4766
        %5010 = vst.msk [vmem:[%s271 + $0x334] sm:$0xf] %vm4804, %v4767
        %5011 = vst.msk [vmem:[%s271 + $0x338] sm:$0xf] %vm4804, %v4768
        %5012 = vst.msk [vmem:[%s271 + $0x33c] sm:$0xf] %vm4804, %v4769
        %5013 = vst.msk [vmem:[%s271 + $0x340] sm:$0xf] %vm4804, %v4770
        %5014 = vst.msk [vmem:[%s271 + $0x344] sm:$0xf] %vm4804, %v4771
        %5015 = vst.msk [vmem:[%s271 + $0x348] sm:$0xf] %vm4804, %v4772
        %5016 = vst.msk [vmem:[%s271 + $0x34c] sm:$0xf] %vm4804, %v4773
        %5017 = vst.msk [vmem:[%s271 + $0x350] sm:$0xf] %vm4804, %v4774
        %5018 = vst.msk [vmem:[%s271 + $0x354] sm:$0xf] %vm4804, %v4775
        %5019 = vst.msk [vmem:[%s271 + $0x358] sm:$0xf] %vm4804, %v4776
        %5020 = vst.msk [vmem:[%s271 + $0x35c] sm:$0xf] %vm4804, %v4777
        %5021 = vst.msk [vmem:[%s271 + $0x360] sm:$0xf] %vm4804, %v4778
        %5022 = vst.msk [vmem:[%s271 + $0x364] sm:$0xf] %vm4804, %v4779
        %5023 = vst.msk [vmem:[%s271 + $0x368] sm:$0xf] %vm4804, %v4780
        %5024 = vst.msk [vmem:[%s271 + $0x36c] sm:$0xf] %vm4804, %v4781
        %5025 = vst.msk [vmem:[%s271 + $0x370] sm:$0xf] %vm4804, %v4782
        %5026 = vst.msk [vmem:[%s271 + $0x374] sm:$0xf] %vm4804, %v4783
        %5027 = vst.msk [vmem:[%s271 + $0x378] sm:$0xf] %vm4804, %v4784
        %5028 = vst.msk [vmem:[%s271 + $0x37c] sm:$0xf] %vm4804, %v4785
        %5029 = vst.msk [vmem:[%s271 + $0x380] sm:$0xf] %vm4804, %v4786
        %5030 = vst.msk [vmem:[%s271 + $0x384] sm:$0xf] %vm4804, %v4787
        %5031 = vst.msk [vmem:[%s271 + $0x388] sm:$0xf] %vm4804, %v4788
        %5032 = vst.msk [vmem:[%s271 + $0x38c] sm:$0xf] %vm4804, %v4789
        %5033 = vst.msk [vmem:[%s271 + $0x390] sm:$0xf] %vm4804, %v4790
        %5034 = vst.msk [vmem:[%s271 + $0x394] sm:$0xf] %vm4804, %v4791
        %5035 = vst.msk [vmem:[%s271 + $0x398] sm:$0xf] %vm4804, %v4792
        %5036 = vst.msk [vmem:[%s271 + $0x39c] sm:$0xf] %vm4804, %v4793
        %5037 = vst.msk [vmem:[%s271 + $0x3a0] sm:$0xf] %vm4804, %v4794
        %5038 = vst.msk [vmem:[%s271 + $0x3a4] sm:$0xf] %vm4804, %v4795
        %5039 = vst.msk [vmem:[%s271 + $0x3a8] sm:$0xf] %vm4804, %v4796
        %5040 = vst.msk [vmem:[%s271 + $0x3ac] sm:$0xf] %vm4804, %v4797
        %5041 = vst.msk [vmem:[%s271 + $0x3b0] sm:$0xf] %vm4804, %v4798
        %5042 = vst.msk [vmem:[%s271 + $0x3b4] sm:$0xf] %vm4804, %v4799
        %5043 = vst.msk [vmem:[%s271 + $0x3b8] sm:$0xf] %vm4804, %v4800
        %5044 = vst.msk [vmem:[%s271 + $0x3bc] sm:$0xf] %vm4804, %v4801
        %5045 = vst.msk [vmem:[%s271 + $0x3c0] sm:$0xf] %vm4804, %v4802
        %5046 = vst.msk [vmem:[%s271 + $0x3c4] sm:$0xf] %vm4804, %v4803
      $region48: #{tpu_custom_call.1} parent=39 // pred_fallthru
        _
      %s5047 = smul.u32 242, %s20
      %p5048 = scmp.lt.s32.totalorder %s5047, 3145
      %s5049 = scalar_select %p5048, %s5047, 3145
      %s5050 = smul.addr %s5049, 4
      %s5051 = scalar_lea.vmem %s5, %s5050
      // Predicated region
      $region49: #{tpu_custom_call.1} parent=39 // pred_check
        %p5052 = pneg %p163
      $region50: #{tpu_custom_call.1} parent=39 // pred_check_branch
        %5054 = sbr.rel (%p5052) target = $region52
      $region51: #{tpu_custom_call.1} parent=39 // pred_region
        %s5055 = smul.u32 242, %s20
      $region52: #{tpu_custom_call.1} parent=39 // pred_fallthru
        _
    $region40: #{tpu_custom_call.1} parent=5 // pred_fallthru
      _
    %p5056 = scmp.le.s32.totalorder 2, %s11
    // Predicated region
    $region53: #{tpu_custom_call.1} parent=5 // pred_check
      %p5057 = pneg %p5056
    $region54: #{tpu_custom_call.1} parent=5 // pred_check_branch
      %5059 = sbr.rel (%p5057) target = $region56
    $region55: #{tpu_custom_call.1} parent=5 // pred_region
      %s5060 = ssub.s32 %s11, 2
      // Predicated region
      $region57: #{tpu_custom_call.1} parent=55 // pred_check
        %p5061 = pneg %p169
      $region58: #{tpu_custom_call.1} parent=55 // pred_check_branch
        %5063 = sbr.rel (%p5061) target = $region60
      $region59: #{tpu_custom_call.1} parent=55 // pred_region
        %s5064 = smul.u32 242, %s22
        %p5065 = scmp.lt.s32.totalorder %s5064, 3145
        %s5066 = scalar_select %p5065, %s5064, 3145
        %s5067 = smul.addr %s5066, 4
        %s5068 = scalar_lea.vmem %s5, %s5067
      $region60: #{tpu_custom_call.1} parent=55 // pred_fallthru
        _
    $region56: #{tpu_custom_call.1} parent=5 // pred_fallthru
      _
  $region6: #{tpu_custom_call.1} parent=0 // loop_footer
    %s15 = sadd.s32 1, %s11
  $region7: #{tpu_custom_call.1} parent=0 // loop_footer_branch
    %10 = sbr.rel target = $region3
  $region8: #{tpu_custom_call.1} parent=0 // loop_exit
    _

</llo_original>
